<compile_context>
chip_gen: v5e
topology: v5e:2x2
jax: 0.10.0
libtpu: 0.0.40
codegen_flags: <defaults>
</compile_context>

<pallas_src>
import functools

import jax
import jax.numpy as jnp
from jax.experimental import pallas as pl
from jax.experimental.pallas import tpu as pltpu


# -----------------------------------------------------------------------------
# One LSTM layer, layer-major (whole sequence), inside the kernel.
# -----------------------------------------------------------------------------
def _lstm_layer(in_ref, w_ih_ref, w_hh_ref, b_ref, h0, c0, xp_ref, out_seq_ref,
                *, seq_len, batch, hidden_size):
    """Run one LSTM layer over the full sequence.

    in_ref:      (T*B, Din) VMEM ref   -- input sequence (time-major rows)
    w_ih_ref:    (Din, 4H)             -- input -> gates weights
    w_hh_ref:    (H, 4H)               -- hidden -> gates weights
    b_ref:       (1, 4H)               -- b_ih + b_hh (pre-folded)
    h0, c0:      (B, H) f32 values     -- initial state
    xp_ref:      (T*B, 4H) VMEM scratch
    out_seq_ref: (T*B, H) VMEM scratch or None
    Returns (h_T, c_T).
    """
    T, B, H = seq_len, batch, hidden_size

    # Hoisted input projection + bias for ALL timesteps: one MXU matmul,
    # bias broadcast happens exactly once per layer.
    xp_ref[...] = (
        jnp.dot(in_ref[...], w_ih_ref[...], preferred_element_type=jnp.float32)
        + b_ref[...])

    w_hh = w_hh_ref[...]
    h, c = h0, c0
    for t in range(T):  # T is small -> full static unroll, static offsets
        r0, r1 = t * B, (t + 1) * B
        gates = xp_ref[r0:r1, :] + jnp.dot(
            h, w_hh, preferred_element_type=jnp.float32)          # (B, 4H)
        i = jax.nn.sigmoid(gates[:, 0 * H:1 * H])
        f = jax.nn.sigmoid(gates[:, 1 * H:2 * H])
        g = jnp.tanh(gates[:, 2 * H:3 * H])
        o = jax.nn.sigmoid(gates[:, 3 * H:4 * H])
        c = f * c + i * g
        h = o * jnp.tanh(c)
        if out_seq_ref is not None:
            out_seq_ref[r0:r1, :] = h
    return h, c


# -----------------------------------------------------------------------------
# Fused whole-model kernel (no grid: single invocation, everything in VMEM).
# -----------------------------------------------------------------------------
def fused_lstm_model_kernel(*refs, seq_len, batch, hidden_size, num_layers,
                            num_fc):
    """refs layout:
      x_ref (T*B, I),
      (w_ih, w_hh, b) * num_layers   -- stack 1
      (w_ih, w_hh, b) * num_layers   -- stack 2
      (w, b) * num_fc                -- MLP head
      out_ref (B, O),
      xp_s (T*B, 4H), seq_a (T*B, H), seq_b (T*B, H)   -- VMEM scratch
    """
    T, B, H, L = seq_len, batch, hidden_size, num_layers

    idx = 0
    x_ref = refs[idx]; idx += 1
    stack1 = [(refs[idx + 3 * l], refs[idx + 3 * l + 1], refs[idx + 3 * l + 2])
              for l in range(L)]
    idx += 3 * L
    stack2 = [(refs[idx + 3 * l], refs[idx + 3 * l + 1], refs[idx + 3 * l + 2])
              for l in range(L)]
    idx += 3 * L
    fcs = [(refs[idx + 2 * k], refs[idx + 2 * k + 1]) for k in range(num_fc)]
    idx += 2 * num_fc
    out_ref = refs[idx]; idx += 1
    xp_s = refs[idx]; idx += 1
    seq_s = (refs[idx], refs[idx + 1])

    zero = jnp.zeros((B, H), jnp.float32)

    # ---------------- stack 1 (zero-initialized state), layer-major ---------
    hs1, cs1 = [], []
    in_ref = x_ref
    for l in range(L):
        w_ih, w_hh, b = stack1[l]
        out_seq = seq_s[l % 2]
        h, c = _lstm_layer(in_ref, w_ih, w_hh, b, zero, zero, xp_s, out_seq,
                           seq_len=T, batch=B, hidden_size=H)
        hs1.append(h)
        cs1.append(c)
        in_ref = out_seq

    # ---- stack 2 (initialized with stack 1's final (hn, cn)), layer-major ---
    h_top = None
    for l in range(L):
        w_ih, w_hh, b = stack2[l]
        last = (l == L - 1)
        out_seq = None if last else seq_s[(L + l) % 2]
        h_top, _ = _lstm_layer(in_ref, w_ih, w_hh, b, hs1[l], cs1[l], xp_s,
                               out_seq, seq_len=T, batch=B, hidden_size=H)
        if not last:
            in_ref = out_seq

    # ---------------- MLP head on out2[:, -1, :] ----------------------------
    out = h_top
    for k, (w_ref, b_ref) in enumerate(fcs):
        out = jnp.dot(out, w_ref[...],
                      preferred_element_type=jnp.float32) + b_ref[...]
        if k < num_fc - 1:
            out = jnp.maximum(out, 0.0)
    out_ref[...] = out.astype(out_ref.dtype)


# -----------------------------------------------------------------------------
# Wrapper
# -----------------------------------------------------------------------------
def lstm_model_forward(x, params, *, hidden_size, num_layers):
    """x: (B, T, num_contents), batch_first like PyTorch. Returns (B, output)."""
    B, T, I = x.shape
    H = hidden_size

    # Time-major, flattened to lane-dense 2D rows: row t*B + b = (t, b).
    x_flat = jnp.transpose(x, (1, 0, 2)).reshape(T * B, I)

    fcs = params["fcs"]
    num_fc = len(fcs)
    out_dim = fcs[-1][0].shape[1]

    inputs = [x_flat]
    for stack in ("lstm1", "lstm2"):
        for (w_ih, w_hh, b) in params[stack]:
            inputs += [w_ih, w_hh, b]
    for (w, b) in fcs:
        inputs += [w, b]

    # Advisory cost estimate (prevents XLA from assuming zero compute).
    flops = 0
    for stack in ("lstm1", "lstm2"):
        for (w_ih, w_hh, _) in params[stack]:
            flops += 2 * T * B * w_ih.shape[0] * w_ih.shape[1]   # input proj
            flops += 2 * T * B * w_hh.shape[0] * w_hh.shape[1]   # recurrence
            flops += 10 * T * B * H                              # gate math
    for (w, _) in fcs:
        flops += 2 * B * w.shape[0] * w.shape[1]
    transcendentals = 2 * num_layers * T * B * 5 * H
    bytes_accessed = sum(int(a.size) * 4 for a in inputs) + B * out_dim * 4

    kernel = functools.partial(
        fused_lstm_model_kernel, seq_len=T, batch=B, hidden_size=H,
        num_layers=num_layers, num_fc=num_fc)

    return pl.pallas_call(
        kernel,
        out_shape=jax.ShapeDtypeStruct((B, out_dim), jnp.float32),
        scratch_shapes=[
            pltpu.VMEM((T * B, 4 * H), jnp.float32),   # gate pre-activations
            pltpu.VMEM((T * B, H), jnp.float32),       # inter-layer seq (ping)
            pltpu.VMEM((T * B, H), jnp.float32),       # inter-layer seq (pong)
        ],
        cost_estimate=pl.CostEstimate(
            flops=int(flops),
            transcendentals=int(transcendentals),
            bytes_accessed=int(bytes_accessed)),
    )(*inputs)


# -----------------------------------------------------------------------------
# Deterministic parameter init (PyTorch-style uniform(-k, k)).
# Per LSTM layer: w_ih (Din, 4H), w_hh (H, 4H), b = b_ih + b_hh (1, 4H).
# Gate order is PyTorch's (i, f, g, o).
# -----------------------------------------------------------------------------
def init_params(key, *, input_size, hidden_size, output_size,
                num_layers, num_linear_layers):
    H = hidden_size

    def lstm_layer(key, in_dim):
        k = 1.0 / jnp.sqrt(H)
        k_ih, k_hh, k_bi, k_bh = jax.random.split(key, 4)
        w_ih = jax.random.uniform(k_ih, (in_dim, 4 * H), jnp.float32, -k, k)
        w_hh = jax.random.uniform(k_hh, (H, 4 * H), jnp.float32, -k, k)
        b_ih = jax.random.uniform(k_bi, (4 * H,), jnp.float32, -k, k)
        b_hh = jax.random.uniform(k_bh, (4 * H,), jnp.float32, -k, k)
        return (w_ih, w_hh, (b_ih + b_hh).reshape(1, -1))

    def linear(key, in_dim, out_dim):
        k = 1.0 / jnp.sqrt(in_dim)
        kw, kb = jax.random.split(key)
        w = jax.random.uniform(kw, (in_dim, out_dim), jnp.float32, -k, k)
        b = jax.random.uniform(kb, (1, out_dim), jnp.float32, -k, k)
        return (w, b)

    keys = jax.random.split(key, 2 * num_layers + num_linear_layers)
    params = {
        "lstm1": tuple(
            lstm_layer(keys[l], input_size if l == 0 else H)
            for l in range(num_layers)),
        "lstm2": tuple(
            lstm_layer(keys[num_layers + l], H)
            for l in range(num_layers)),
    }
    fcs = [linear(keys[2 * num_layers + i], H, H)
           for i in range(num_linear_layers - 1)]
    fcs.append(linear(keys[2 * num_layers + num_linear_layers - 1],
                      H, output_size))
    params["fcs"] = tuple(fcs)
    return params


# -----------------------------------------------------------------------------
# Pure-JAX reference (correctness check)
# -----------------------------------------------------------------------------
def lstm_stack_ref(x_tm, h_init, c_init, layers, hidden_size):
    H = hidden_size
    T = x_tm.shape[0]
    h = list(h_init)
    c = list(c_init)
    outs = []
    for t in range(T):
        inp = x_tm[t]
        for l, (w_ih, w_hh, b) in enumerate(layers):
            gates = inp @ w_ih + h[l] @ w_hh + b
            i = jax.nn.sigmoid(gates[:, 0 * H:1 * H])
            f = jax.nn.sigmoid(gates[:, 1 * H:2 * H])
            g = jnp.tanh(gates[:, 2 * H:3 * H])
            o = jax.nn.sigmoid(gates[:, 3 * H:4 * H])
            c[l] = f * c[l] + i * g
            h[l] = o * jnp.tanh(c[l])
            inp = h[l]
        outs.append(inp)
    return jnp.stack(outs), h, c


def model_ref(x, params, *, hidden_size, num_layers):
    B = x.shape[0]
    x_tm = jnp.transpose(x, (1, 0, 2))
    zeros = [jnp.zeros((B, hidden_size), jnp.float32) for _ in range(num_layers)]
    out1, hn, cn = lstm_stack_ref(x_tm, zeros, list(zeros),
                                  params["lstm1"], hidden_size)
    out2, _, _ = lstm_stack_ref(out1, hn, cn, params["lstm2"], hidden_size)
    out = out2[-1]
    for w, b in params["fcs"][:-1]:
        out = jnp.maximum(out @ w + b, 0.0)
    w, b = params["fcs"][-1]
    return out @ w + b


# -----------------------------------------------------------------------------
if __name__ == "__main__":
    # config: num_contents=16, hidden_size=32, num_layers=2, dropout=0.0,
    #         num_linear_layers=2
    NUM_CONTENTS = 16
    HIDDEN = 32
    NUM_LAYERS = 2
    NUM_LINEAR = 2
    B, T = 2, 8

    key = jax.random.PRNGKey(0)
    k_x, k_p = jax.random.split(key)
    x = jax.random.normal(k_x, (B, T, NUM_CONTENTS), jnp.float32)
    params = init_params(k_p, input_size=NUM_CONTENTS, hidden_size=HIDDEN,
                         output_size=NUM_CONTENTS, num_layers=NUM_LAYERS,
                         num_linear_layers=NUM_LINEAR)

    fwd = jax.jit(functools.partial(lstm_model_forward,
                                    hidden_size=HIDDEN, num_layers=NUM_LAYERS))
    y = fwd(x, params)
    y = jax.block_until_ready(y)

    y_ref = model_ref(x, params, hidden_size=HIDDEN, num_layers=NUM_LAYERS)
    assert y.shape == (B, NUM_CONTENTS)
    assert jnp.allclose(y, y_ref, atol=1e-4, rtol=1e-4)
    print("KERNEL_OK")
</pallas_src>

<mosaic_0001>
module attributes {stable_mosaic.version = 11 : i64} {
  func.func @fused_lstm_model_kernel(%arg0: memref<16x16xf32, #tpu.memory_space<vmem>>, %arg1: memref<16x128xf32, #tpu.memory_space<vmem>>, %arg2: memref<32x128xf32, #tpu.memory_space<vmem>>, %arg3: memref<1x128xf32, #tpu.memory_space<vmem>>, %arg4: memref<32x128xf32, #tpu.memory_space<vmem>>, %arg5: memref<32x128xf32, #tpu.memory_space<vmem>>, %arg6: memref<1x128xf32, #tpu.memory_space<vmem>>, %arg7: memref<32x128xf32, #tpu.memory_space<vmem>>, %arg8: memref<32x128xf32, #tpu.memory_space<vmem>>, %arg9: memref<1x128xf32, #tpu.memory_space<vmem>>, %arg10: memref<32x128xf32, #tpu.memory_space<vmem>>, %arg11: memref<32x128xf32, #tpu.memory_space<vmem>>, %arg12: memref<1x128xf32, #tpu.memory_space<vmem>>, %arg13: memref<32x32xf32, #tpu.memory_space<vmem>>, %arg14: memref<1x32xf32, #tpu.memory_space<vmem>>, %arg15: memref<32x16xf32, #tpu.memory_space<vmem>>, %arg16: memref<1x16xf32, #tpu.memory_space<vmem>>, %arg17: memref<2x16xf32, #tpu.memory_space<vmem>>, %arg18: memref<16x128xf32, #tpu.memory_space<vmem>>, %arg19: memref<16x32xf32, #tpu.memory_space<vmem>>, %arg20: memref<16x32xf32, #tpu.memory_space<vmem>>) attributes {dimension_semantics = [], scalar_prefetch = 0 : i64, scratch_operands = 3 : i64, tpu.core_type = #tpu.core_type<tc>} {
    %cst = arith.constant 0.000000e+00 : f32
    %0 = vector.broadcast %cst : f32 to vector<2x32xf32>
    %c0 = arith.constant 0 : index
    %c0_0 = arith.constant 0 : index
    %1 = vector.load %arg0[%c0, %c0_0] : memref<16x16xf32, #tpu.memory_space<vmem>>, vector<16x16xf32>
    %c0_1 = arith.constant 0 : index
    %c0_2 = arith.constant 0 : index
    %2 = vector.load %arg1[%c0_1, %c0_2] : memref<16x128xf32, #tpu.memory_space<vmem>>, vector<16x128xf32>
    %cst_3 = arith.constant dense<0.000000e+00> : vector<16x128xf32>
    %3 = tpu.matmul %1, %2, %cst_3 {dimension_numbers = #tpu.dot_dimension_numbers<[1], [0], [0], [1], [0, 0, 1, 1], [], []>} : vector<16x16xf32>, vector<16x128xf32>, vector<16x128xf32> -> vector<16x128xf32>
    %c0_4 = arith.constant 0 : index
    %c0_5 = arith.constant 0 : index
    %4 = vector.load %arg3[%c0_4, %c0_5] : memref<1x128xf32, #tpu.memory_space<vmem>>, vector<1x128xf32>
    %5 = vector.broadcast %4 : vector<1x128xf32> to vector<16x128xf32>
    %6 = arith.addf %3, %5 : vector<16x128xf32>
    %c0_6 = arith.constant 0 : index
    %c0_7 = arith.constant 0 : index
    %7 = vector.load %arg18[%c0_6, %c0_7] : memref<16x128xf32, #tpu.memory_space<vmem>>, vector<16x128xf32>
    tpu.vector_store %arg18[%c0_6, %c0_7], %6 {strides = array<i32>} : memref<16x128xf32, #tpu.memory_space<vmem>>, vector<16x128xf32>,
    %c0_8 = arith.constant 0 : index
    %c0_9 = arith.constant 0 : index
    %8 = vector.load %arg2[%c0_8, %c0_9] : memref<32x128xf32, #tpu.memory_space<vmem>>, vector<32x128xf32>
    %c0_10 = arith.constant 0 : index
    %c0_11 = arith.constant 0 : index
    %9 = vector.load %arg18[%c0_10, %c0_11] : memref<16x128xf32, #tpu.memory_space<vmem>>, vector<2x128xf32>
    %cst_12 = arith.constant dense<0.000000e+00> : vector<2x128xf32>
    %10 = tpu.matmul %0, %8, %cst_12 {dimension_numbers = #tpu.dot_dimension_numbers<[1], [0], [0], [1], [0, 0, 1, 1], [], []>} : vector<2x32xf32>, vector<32x128xf32>, vector<2x128xf32> -> vector<2x128xf32>
    %11 = arith.addf %9, %10 : vector<2x128xf32>
    %12 = vector.extract_strided_slice %11 {offsets = [0, 0], sizes = [2, 32], strides = [1, 1]} : vector<2x128xf32> to vector<2x32xf32>
    %13 = arith.negf %12 : vector<2x32xf32>
    %14 = math.exp %13 : vector<2x32xf32>
    %cst_13 = arith.constant 1.000000e+00 : f32
    %15 = vector.broadcast %cst_13 : f32 to vector<2x32xf32>
    %16 = arith.addf %15, %14 : vector<2x32xf32>
    %17 = arith.divf %15, %16 : vector<2x32xf32>
    %18 = vector.extract_strided_slice %11 {offsets = [0, 32], sizes = [2, 32], strides = [1, 1]} : vector<2x128xf32> to vector<2x32xf32>
    %19 = arith.negf %18 : vector<2x32xf32>
    %20 = math.exp %19 : vector<2x32xf32>
    %cst_14 = arith.constant 1.000000e+00 : f32
    %21 = vector.broadcast %cst_14 : f32 to vector<2x32xf32>
    %22 = arith.addf %21, %20 : vector<2x32xf32>
    %23 = arith.divf %21, %22 : vector<2x32xf32>
    %24 = vector.extract_strided_slice %11 {offsets = [0, 64], sizes = [2, 32], strides = [1, 1]} : vector<2x128xf32> to vector<2x32xf32>
    %25 = math.tanh %24 : vector<2x32xf32>
    %26 = vector.extract_strided_slice %11 {offsets = [0, 96], sizes = [2, 32], strides = [1, 1]} : vector<2x128xf32> to vector<2x32xf32>
    %27 = arith.negf %26 : vector<2x32xf32>
    %28 = math.exp %27 : vector<2x32xf32>
    %cst_15 = arith.constant 1.000000e+00 : f32
    %29 = vector.broadcast %cst_15 : f32 to vector<2x32xf32>
    %30 = arith.addf %29, %28 : vector<2x32xf32>
    %31 = arith.divf %29, %30 : vector<2x32xf32>
    %32 = arith.mulf %23, %0 : vector<2x32xf32>
    %33 = arith.mulf %17, %25 : vector<2x32xf32>
    %34 = arith.addf %32, %33 : vector<2x32xf32>
    %35 = math.tanh %34 : vector<2x32xf32>
    %36 = arith.mulf %31, %35 : vector<2x32xf32>
    %c0_16 = arith.constant 0 : index
    %c0_17 = arith.constant 0 : index
    %37 = vector.load %arg19[%c0_16, %c0_17] : memref<16x32xf32, #tpu.memory_space<vmem>>, vector<2x32xf32>
    tpu.vector_store %arg19[%c0_16, %c0_17], %36 {strides = array<i32>} : memref<16x32xf32, #tpu.memory_space<vmem>>, vector<2x32xf32>,
    %c2 = arith.constant 2 : index
    %c0_18 = arith.constant 0 : index
    %38 = vector.load %arg18[%c2, %c0_18] : memref<16x128xf32, #tpu.memory_space<vmem>>, vector<2x128xf32>
    %cst_19 = arith.constant dense<0.000000e+00> : vector<2x128xf32>
    %39 = tpu.matmul %36, %8, %cst_19 {dimension_numbers = #tpu.dot_dimension_numbers<[1], [0], [0], [1], [0, 0, 1, 1], [], []>} : vector<2x32xf32>, vector<32x128xf32>, vector<2x128xf32> -> vector<2x128xf32>
    %40 = arith.addf %38, %39 : vector<2x128xf32>
    %41 = vector.extract_strided_slice %40 {offsets = [0, 0], sizes = [2, 32], strides = [1, 1]} : vector<2x128xf32> to vector<2x32xf32>
    %42 = arith.negf %41 : vector<2x32xf32>
    %43 = math.exp %42 : vector<2x32xf32>
    %cst_20 = arith.constant 1.000000e+00 : f32
    %44 = vector.broadcast %cst_20 : f32 to vector<2x32xf32>
    %45 = arith.addf %44, %43 : vector<2x32xf32>
    %46 = arith.divf %44, %45 : vector<2x32xf32>
    %47 = vector.extract_strided_slice %40 {offsets = [0, 32], sizes = [2, 32], strides = [1, 1]} : vector<2x128xf32> to vector<2x32xf32>
    %48 = arith.negf %47 : vector<2x32xf32>
    %49 = math.exp %48 : vector<2x32xf32>
    %cst_21 = arith.constant 1.000000e+00 : f32
    %50 = vector.broadcast %cst_21 : f32 to vector<2x32xf32>
    %51 = arith.addf %50, %49 : vector<2x32xf32>
    %52 = arith.divf %50, %51 : vector<2x32xf32>
    %53 = vector.extract_strided_slice %40 {offsets = [0, 64], sizes = [2, 32], strides = [1, 1]} : vector<2x128xf32> to vector<2x32xf32>
    %54 = math.tanh %53 : vector<2x32xf32>
    %55 = vector.extract_strided_slice %40 {offsets = [0, 96], sizes = [2, 32], strides = [1, 1]} : vector<2x128xf32> to vector<2x32xf32>
    %56 = arith.negf %55 : vector<2x32xf32>
    %57 = math.exp %56 : vector<2x32xf32>
    %cst_22 = arith.constant 1.000000e+00 : f32
    %58 = vector.broadcast %cst_22 : f32 to vector<2x32xf32>
    %59 = arith.addf %58, %57 : vector<2x32xf32>
    %60 = arith.divf %58, %59 : vector<2x32xf32>
    %61 = arith.mulf %52, %34 : vector<2x32xf32>
    %62 = arith.mulf %46, %54 : vector<2x32xf32>
    %63 = arith.addf %61, %62 : vector<2x32xf32>
    %64 = math.tanh %63 : vector<2x32xf32>
    %65 = arith.mulf %60, %64 : vector<2x32xf32>
    %c2_23 = arith.constant 2 : index
    %c0_24 = arith.constant 0 : index
    %66 = vector.load %arg19[%c2_23, %c0_24] : memref<16x32xf32, #tpu.memory_space<vmem>>, vector<2x32xf32>
    tpu.vector_store %arg19[%c2_23, %c0_24], %65 {strides = array<i32>} : memref<16x32xf32, #tpu.memory_space<vmem>>, vector<2x32xf32>,
    %c4 = arith.constant 4 : index
    %c0_25 = arith.constant 0 : index
    %67 = vector.load %arg18[%c4, %c0_25] : memref<16x128xf32, #tpu.memory_space<vmem>>, vector<2x128xf32>
    %cst_26 = arith.constant dense<0.000000e+00> : vector<2x128xf32>
    %68 = tpu.matmul %65, %8, %cst_26 {dimension_numbers = #tpu.dot_dimension_numbers<[1], [0], [0], [1], [0, 0, 1, 1], [], []>} : vector<2x32xf32>, vector<32x128xf32>, vector<2x128xf32> -> vector<2x128xf32>
    %69 = arith.addf %67, %68 : vector<2x128xf32>
    %70 = vector.extract_strided_slice %69 {offsets = [0, 0], sizes = [2, 32], strides = [1, 1]} : vector<2x128xf32> to vector<2x32xf32>
    %71 = arith.negf %70 : vector<2x32xf32>
    %72 = math.exp %71 : vector<2x32xf32>
    %cst_27 = arith.constant 1.000000e+00 : f32
    %73 = vector.broadcast %cst_27 : f32 to vector<2x32xf32>
    %74 = arith.addf %73, %72 : vector<2x32xf32>
    %75 = arith.divf %73, %74 : vector<2x32xf32>
    %76 = vector.extract_strided_slice %69 {offsets = [0, 32], sizes = [2, 32], strides = [1, 1]} : vector<2x128xf32> to vector<2x32xf32>
    %77 = arith.negf %76 : vector<2x32xf32>
    %78 = math.exp %77 : vector<2x32xf32>
    %cst_28 = arith.constant 1.000000e+00 : f32
    %79 = vector.broadcast %cst_28 : f32 to vector<2x32xf32>
    %80 = arith.addf %79, %78 : vector<2x32xf32>
    %81 = arith.divf %79, %80 : vector<2x32xf32>
    %82 = vector.extract_strided_slice %69 {offsets = [0, 64], sizes = [2, 32], strides = [1, 1]} : vector<2x128xf32> to vector<2x32xf32>
    %83 = math.tanh %82 : vector<2x32xf32>
    %84 = vector.extract_strided_slice %69 {offsets = [0, 96], sizes = [2, 32], strides = [1, 1]} : vector<2x128xf32> to vector<2x32xf32>
    %85 = arith.negf %84 : vector<2x32xf32>
    %86 = math.exp %85 : vector<2x32xf32>
    %cst_29 = arith.constant 1.000000e+00 : f32
    %87 = vector.broadcast %cst_29 : f32 to vector<2x32xf32>
    %88 = arith.addf %87, %86 : vector<2x32xf32>
    %89 = arith.divf %87, %88 : vector<2x32xf32>
    %90 = arith.mulf %81, %63 : vector<2x32xf32>
    %91 = arith.mulf %75, %83 : vector<2x32xf32>
    %92 = arith.addf %90, %91 : vector<2x32xf32>
    %93 = math.tanh %92 : vector<2x32xf32>
    %94 = arith.mulf %89, %93 : vector<2x32xf32>
    %c4_30 = arith.constant 4 : index
    %c0_31 = arith.constant 0 : index
    %95 = vector.load %arg19[%c4_30, %c0_31] : memref<16x32xf32, #tpu.memory_space<vmem>>, vector<2x32xf32>
    tpu.vector_store %arg19[%c4_30, %c0_31], %94 {strides = array<i32>} : memref<16x32xf32, #tpu.memory_space<vmem>>, vector<2x32xf32>,
    %c6 = arith.constant 6 : index
    %c0_32 = arith.constant 0 : index
    %96 = vector.load %arg18[%c6, %c0_32] : memref<16x128xf32, #tpu.memory_space<vmem>>, vector<2x128xf32>
    %cst_33 = arith.constant dense<0.000000e+00> : vector<2x128xf32>
    %97 = tpu.matmul %94, %8, %cst_33 {dimension_numbers = #tpu.dot_dimension_numbers<[1], [0], [0], [1], [0, 0, 1, 1], [], []>} : vector<2x32xf32>, vector<32x128xf32>, vector<2x128xf32> -> vector<2x128xf32>
    %98 = arith.addf %96, %97 : vector<2x128xf32>
    %99 = vector.extract_strided_slice %98 {offsets = [0, 0], sizes = [2, 32], strides = [1, 1]} : vector<2x128xf32> to vector<2x32xf32>
    %100 = arith.negf %99 : vector<2x32xf32>
    %101 = math.exp %100 : vector<2x32xf32>
    %cst_34 = arith.constant 1.000000e+00 : f32
    %102 = vector.broadcast %cst_34 : f32 to vector<2x32xf32>
    %103 = arith.addf %102, %101 : vector<2x32xf32>
    %104 = arith.divf %102, %103 : vector<2x32xf32>
    %105 = vector.extract_strided_slice %98 {offsets = [0, 32], sizes = [2, 32], strides = [1, 1]} : vector<2x128xf32> to vector<2x32xf32>
    %106 = arith.negf %105 : vector<2x32xf32>
    %107 = math.exp %106 : vector<2x32xf32>
    %cst_35 = arith.constant 1.000000e+00 : f32
    %108 = vector.broadcast %cst_35 : f32 to vector<2x32xf32>
    %109 = arith.addf %108, %107 : vector<2x32xf32>
    %110 = arith.divf %108, %109 : vector<2x32xf32>
    %111 = vector.extract_strided_slice %98 {offsets = [0, 64], sizes = [2, 32], strides = [1, 1]} : vector<2x128xf32> to vector<2x32xf32>
    %112 = math.tanh %111 : vector<2x32xf32>
    %113 = vector.extract_strided_slice %98 {offsets = [0, 96], sizes = [2, 32], strides = [1, 1]} : vector<2x128xf32> to vector<2x32xf32>
    %114 = arith.negf %113 : vector<2x32xf32>
    %115 = math.exp %114 : vector<2x32xf32>
    %cst_36 = arith.constant 1.000000e+00 : f32
    %116 = vector.broadcast %cst_36 : f32 to vector<2x32xf32>
    %117 = arith.addf %116, %115 : vector<2x32xf32>
    %118 = arith.divf %116, %117 : vector<2x32xf32>
    %119 = arith.mulf %110, %92 : vector<2x32xf32>
    %120 = arith.mulf %104, %112 : vector<2x32xf32>
    %121 = arith.addf %119, %120 : vector<2x32xf32>
    %122 = math.tanh %121 : vector<2x32xf32>
    %123 = arith.mulf %118, %122 : vector<2x32xf32>
    %c6_37 = arith.constant 6 : index
    %c0_38 = arith.constant 0 : index
    %124 = vector.load %arg19[%c6_37, %c0_38] : memref<16x32xf32, #tpu.memory_space<vmem>>, vector<2x32xf32>
    tpu.vector_store %arg19[%c6_37, %c0_38], %123 {strides = array<i32>} : memref<16x32xf32, #tpu.memory_space<vmem>>, vector<2x32xf32>,
    %c8 = arith.constant 8 : index
    %c0_39 = arith.constant 0 : index
    %125 = vector.load %arg18[%c8, %c0_39] : memref<16x128xf32, #tpu.memory_space<vmem>>, vector<2x128xf32>
    %cst_40 = arith.constant dense<0.000000e+00> : vector<2x128xf32>
    %126 = tpu.matmul %123, %8, %cst_40 {dimension_numbers = #tpu.dot_dimension_numbers<[1], [0], [0], [1], [0, 0, 1, 1], [], []>} : vector<2x32xf32>, vector<32x128xf32>, vector<2x128xf32> -> vector<2x128xf32>
    %127 = arith.addf %125, %126 : vector<2x128xf32>
    %128 = vector.extract_strided_slice %127 {offsets = [0, 0], sizes = [2, 32], strides = [1, 1]} : vector<2x128xf32> to vector<2x32xf32>
    %129 = arith.negf %128 : vector<2x32xf32>
    %130 = math.exp %129 : vector<2x32xf32>
    %cst_41 = arith.constant 1.000000e+00 : f32
    %131 = vector.broadcast %cst_41 : f32 to vector<2x32xf32>
    %132 = arith.addf %131, %130 : vector<2x32xf32>
    %133 = arith.divf %131, %132 : vector<2x32xf32>
    %134 = vector.extract_strided_slice %127 {offsets = [0, 32], sizes = [2, 32], strides = [1, 1]} : vector<2x128xf32> to vector<2x32xf32>
    %135 = arith.negf %134 : vector<2x32xf32>
    %136 = math.exp %135 : vector<2x32xf32>
    %cst_42 = arith.constant 1.000000e+00 : f32
    %137 = vector.broadcast %cst_42 : f32 to vector<2x32xf32>
    %138 = arith.addf %137, %136 : vector<2x32xf32>
    %139 = arith.divf %137, %138 : vector<2x32xf32>
    %140 = vector.extract_strided_slice %127 {offsets = [0, 64], sizes = [2, 32], strides = [1, 1]} : vector<2x128xf32> to vector<2x32xf32>
    %141 = math.tanh %140 : vector<2x32xf32>
    %142 = vector.extract_strided_slice %127 {offsets = [0, 96], sizes = [2, 32], strides = [1, 1]} : vector<2x128xf32> to vector<2x32xf32>
    %143 = arith.negf %142 : vector<2x32xf32>
    %144 = math.exp %143 : vector<2x32xf32>
    %cst_43 = arith.constant 1.000000e+00 : f32
    %145 = vector.broadcast %cst_43 : f32 to vector<2x32xf32>
    %146 = arith.addf %145, %144 : vector<2x32xf32>
    %147 = arith.divf %145, %146 : vector<2x32xf32>
    %148 = arith.mulf %139, %121 : vector<2x32xf32>
    %149 = arith.mulf %133, %141 : vector<2x32xf32>
    %150 = arith.addf %148, %149 : vector<2x32xf32>
    %151 = math.tanh %150 : vector<2x32xf32>
    %152 = arith.mulf %147, %151 : vector<2x32xf32>
    %c8_44 = arith.constant 8 : index
    %c0_45 = arith.constant 0 : index
    %153 = vector.load %arg19[%c8_44, %c0_45] : memref<16x32xf32, #tpu.memory_space<vmem>>, vector<2x32xf32>
    tpu.vector_store %arg19[%c8_44, %c0_45], %152 {strides = array<i32>} : memref<16x32xf32, #tpu.memory_space<vmem>>, vector<2x32xf32>,
    %c10 = arith.constant 10 : index
    %c0_46 = arith.constant 0 : index
    %154 = vector.load %arg18[%c10, %c0_46] : memref<16x128xf32, #tpu.memory_space<vmem>>, vector<2x128xf32>
    %cst_47 = arith.constant dense<0.000000e+00> : vector<2x128xf32>
    %155 = tpu.matmul %152, %8, %cst_47 {dimension_numbers = #tpu.dot_dimension_numbers<[1], [0], [0], [1], [0, 0, 1, 1], [], []>} : vector<2x32xf32>, vector<32x128xf32>, vector<2x128xf32> -> vector<2x128xf32>
    %156 = arith.addf %154, %155 : vector<2x128xf32>
    %157 = vector.extract_strided_slice %156 {offsets = [0, 0], sizes = [2, 32], strides = [1, 1]} : vector<2x128xf32> to vector<2x32xf32>
    %158 = arith.negf %157 : vector<2x32xf32>
    %159 = math.exp %158 : vector<2x32xf32>
    %cst_48 = arith.constant 1.000000e+00 : f32
    %160 = vector.broadcast %cst_48 : f32 to vector<2x32xf32>
    %161 = arith.addf %160, %159 : vector<2x32xf32>
    %162 = arith.divf %160, %161 : vector<2x32xf32>
    %163 = vector.extract_strided_slice %156 {offsets = [0, 32], sizes = [2, 32], strides = [1, 1]} : vector<2x128xf32> to vector<2x32xf32>
    %164 = arith.negf %163 : vector<2x32xf32>
    %165 = math.exp %164 : vector<2x32xf32>
    %cst_49 = arith.constant 1.000000e+00 : f32
    %166 = vector.broadcast %cst_49 : f32 to vector<2x32xf32>
    %167 = arith.addf %166, %165 : vector<2x32xf32>
    %168 = arith.divf %166, %167 : vector<2x32xf32>
    %169 = vector.extract_strided_slice %156 {offsets = [0, 64], sizes = [2, 32], strides = [1, 1]} : vector<2x128xf32> to vector<2x32xf32>
    %170 = math.tanh %169 : vector<2x32xf32>
    %171 = vector.extract_strided_slice %156 {offsets = [0, 96], sizes = [2, 32], strides = [1, 1]} : vector<2x128xf32> to vector<2x32xf32>
    %172 = arith.negf %171 : vector<2x32xf32>
    %173 = math.exp %172 : vector<2x32xf32>
    %cst_50 = arith.constant 1.000000e+00 : f32
    %174 = vector.broadcast %cst_50 : f32 to vector<2x32xf32>
    %175 = arith.addf %174, %173 : vector<2x32xf32>
    %176 = arith.divf %174, %175 : vector<2x32xf32>
    %177 = arith.mulf %168, %150 : vector<2x32xf32>
    %178 = arith.mulf %162, %170 : vector<2x32xf32>
    %179 = arith.addf %177, %178 : vector<2x32xf32>
    %180 = math.tanh %179 : vector<2x32xf32>
    %181 = arith.mulf %176, %180 : vector<2x32xf32>
    %c10_51 = arith.constant 10 : index
    %c0_52 = arith.constant 0 : index
    %182 = vector.load %arg19[%c10_51, %c0_52] : memref<16x32xf32, #tpu.memory_space<vmem>>, vector<2x32xf32>
    tpu.vector_store %arg19[%c10_51, %c0_52], %181 {strides = array<i32>} : memref<16x32xf32, #tpu.memory_space<vmem>>, vector<2x32xf32>,
    %c12 = arith.constant 12 : index
    %c0_53 = arith.constant 0 : index
    %183 = vector.load %arg18[%c12, %c0_53] : memref<16x128xf32, #tpu.memory_space<vmem>>, vector<2x128xf32>
    %cst_54 = arith.constant dense<0.000000e+00> : vector<2x128xf32>
    %184 = tpu.matmul %181, %8, %cst_54 {dimension_numbers = #tpu.dot_dimension_numbers<[1], [0], [0], [1], [0, 0, 1, 1], [], []>} : vector<2x32xf32>, vector<32x128xf32>, vector<2x128xf32> -> vector<2x128xf32>
    %185 = arith.addf %183, %184 : vector<2x128xf32>
    %186 = vector.extract_strided_slice %185 {offsets = [0, 0], sizes = [2, 32], strides = [1, 1]} : vector<2x128xf32> to vector<2x32xf32>
    %187 = arith.negf %186 : vector<2x32xf32>
    %188 = math.exp %187 : vector<2x32xf32>
    %cst_55 = arith.constant 1.000000e+00 : f32
    %189 = vector.broadcast %cst_55 : f32 to vector<2x32xf32>
    %190 = arith.addf %189, %188 : vector<2x32xf32>
    %191 = arith.divf %189, %190 : vector<2x32xf32>
    %192 = vector.extract_strided_slice %185 {offsets = [0, 32], sizes = [2, 32], strides = [1, 1]} : vector<2x128xf32> to vector<2x32xf32>
    %193 = arith.negf %192 : vector<2x32xf32>
    %194 = math.exp %193 : vector<2x32xf32>
    %cst_56 = arith.constant 1.000000e+00 : f32
    %195 = vector.broadcast %cst_56 : f32 to vector<2x32xf32>
    %196 = arith.addf %195, %194 : vector<2x32xf32>
    %197 = arith.divf %195, %196 : vector<2x32xf32>
    %198 = vector.extract_strided_slice %185 {offsets = [0, 64], sizes = [2, 32], strides = [1, 1]} : vector<2x128xf32> to vector<2x32xf32>
    %199 = math.tanh %198 : vector<2x32xf32>
    %200 = vector.extract_strided_slice %185 {offsets = [0, 96], sizes = [2, 32], strides = [1, 1]} : vector<2x128xf32> to vector<2x32xf32>
    %201 = arith.negf %200 : vector<2x32xf32>
    %202 = math.exp %201 : vector<2x32xf32>
    %cst_57 = arith.constant 1.000000e+00 : f32
    %203 = vector.broadcast %cst_57 : f32 to vector<2x32xf32>
    %204 = arith.addf %203, %202 : vector<2x32xf32>
    %205 = arith.divf %203, %204 : vector<2x32xf32>
    %206 = arith.mulf %197, %179 : vector<2x32xf32>
    %207 = arith.mulf %191, %199 : vector<2x32xf32>
    %208 = arith.addf %206, %207 : vector<2x32xf32>
    %209 = math.tanh %208 : vector<2x32xf32>
    %210 = arith.mulf %205, %209 : vector<2x32xf32>
    %c12_58 = arith.constant 12 : index
    %c0_59 = arith.constant 0 : index
    %211 = vector.load %arg19[%c12_58, %c0_59] : memref<16x32xf32, #tpu.memory_space<vmem>>, vector<2x32xf32>
    tpu.vector_store %arg19[%c12_58, %c0_59], %210 {strides = array<i32>} : memref<16x32xf32, #tpu.memory_space<vmem>>, vector<2x32xf32>,
    %c14 = arith.constant 14 : index
    %c0_60 = arith.constant 0 : index
    %212 = vector.load %arg18[%c14, %c0_60] : memref<16x128xf32, #tpu.memory_space<vmem>>, vector<2x128xf32>
    %cst_61 = arith.constant dense<0.000000e+00> : vector<2x128xf32>
    %213 = tpu.matmul %210, %8, %cst_61 {dimension_numbers = #tpu.dot_dimension_numbers<[1], [0], [0], [1], [0, 0, 1, 1], [], []>} : vector<2x32xf32>, vector<32x128xf32>, vector<2x128xf32> -> vector<2x128xf32>
    %214 = arith.addf %212, %213 : vector<2x128xf32>
    %215 = vector.extract_strided_slice %214 {offsets = [0, 0], sizes = [2, 32], strides = [1, 1]} : vector<2x128xf32> to vector<2x32xf32>
    %216 = arith.negf %215 : vector<2x32xf32>
    %217 = math.exp %216 : vector<2x32xf32>
    %cst_62 = arith.constant 1.000000e+00 : f32
    %218 = vector.broadcast %cst_62 : f32 to vector<2x32xf32>
    %219 = arith.addf %218, %217 : vector<2x32xf32>
    %220 = arith.divf %218, %219 : vector<2x32xf32>
    %221 = vector.extract_strided_slice %214 {offsets = [0, 32], sizes = [2, 32], strides = [1, 1]} : vector<2x128xf32> to vector<2x32xf32>
    %222 = arith.negf %221 : vector<2x32xf32>
    %223 = math.exp %222 : vector<2x32xf32>
    %cst_63 = arith.constant 1.000000e+00 : f32
    %224 = vector.broadcast %cst_63 : f32 to vector<2x32xf32>
    %225 = arith.addf %224, %223 : vector<2x32xf32>
    %226 = arith.divf %224, %225 : vector<2x32xf32>
    %227 = vector.extract_strided_slice %214 {offsets = [0, 64], sizes = [2, 32], strides = [1, 1]} : vector<2x128xf32> to vector<2x32xf32>
    %228 = math.tanh %227 : vector<2x32xf32>
    %229 = vector.extract_strided_slice %214 {offsets = [0, 96], sizes = [2, 32], strides = [1, 1]} : vector<2x128xf32> to vector<2x32xf32>
    %230 = arith.negf %229 : vector<2x32xf32>
    %231 = math.exp %230 : vector<2x32xf32>
    %cst_64 = arith.constant 1.000000e+00 : f32
    %232 = vector.broadcast %cst_64 : f32 to vector<2x32xf32>
    %233 = arith.addf %232, %231 : vector<2x32xf32>
    %234 = arith.divf %232, %233 : vector<2x32xf32>
    %235 = arith.mulf %226, %208 : vector<2x32xf32>
    %236 = arith.mulf %220, %228 : vector<2x32xf32>
    %237 = arith.addf %235, %236 : vector<2x32xf32>
    %238 = math.tanh %237 : vector<2x32xf32>
    %239 = arith.mulf %234, %238 : vector<2x32xf32>
    %c14_65 = arith.constant 14 : index
    %c0_66 = arith.constant 0 : index
    %240 = vector.load %arg19[%c14_65, %c0_66] : memref<16x32xf32, #tpu.memory_space<vmem>>, vector<2x32xf32>
    tpu.vector_store %arg19[%c14_65, %c0_66], %239 {strides = array<i32>} : memref<16x32xf32, #tpu.memory_space<vmem>>, vector<2x32xf32>,
    %c0_67 = arith.constant 0 : index
    %c0_68 = arith.constant 0 : index
    %241 = vector.load %arg19[%c0_67, %c0_68] : memref<16x32xf32, #tpu.memory_space<vmem>>, vector<16x32xf32>
    %c0_69 = arith.constant 0 : index
    %c0_70 = arith.constant 0 : index
    %242 = vector.load %arg4[%c0_69, %c0_70] : memref<32x128xf32, #tpu.memory_space<vmem>>, vector<32x128xf32>
    %cst_71 = arith.constant dense<0.000000e+00> : vector<16x128xf32>
    %243 = tpu.matmul %241, %242, %cst_71 {dimension_numbers = #tpu.dot_dimension_numbers<[1], [0], [0], [1], [0, 0, 1, 1], [], []>} : vector<16x32xf32>, vector<32x128xf32>, vector<16x128xf32> -> vector<16x128xf32>
    %c0_72 = arith.constant 0 : index
    %c0_73 = arith.constant 0 : index
    %244 = vector.load %arg6[%c0_72, %c0_73] : memref<1x128xf32, #tpu.memory_space<vmem>>, vector<1x128xf32>
    %245 = vector.broadcast %244 : vector<1x128xf32> to vector<16x128xf32>
    %246 = arith.addf %243, %245 : vector<16x128xf32>
    %c0_74 = arith.constant 0 : index
    %c0_75 = arith.constant 0 : index
    %247 = vector.load %arg18[%c0_74, %c0_75] : memref<16x128xf32, #tpu.memory_space<vmem>>, vector<16x128xf32>
    tpu.vector_store %arg18[%c0_74, %c0_75], %246 {strides = array<i32>} : memref<16x128xf32, #tpu.memory_space<vmem>>, vector<16x128xf32>,
    %c0_76 = arith.constant 0 : index
    %c0_77 = arith.constant 0 : index
    %248 = vector.load %arg5[%c0_76, %c0_77] : memref<32x128xf32, #tpu.memory_space<vmem>>, vector<32x128xf32>
    %c0_78 = arith.constant 0 : index
    %c0_79 = arith.constant 0 : index
    %249 = vector.load %arg18[%c0_78, %c0_79] : memref<16x128xf32, #tpu.memory_space<vmem>>, vector<2x128xf32>
    %cst_80 = arith.constant dense<0.000000e+00> : vector<2x128xf32>
    %250 = tpu.matmul %0, %248, %cst_80 {dimension_numbers = #tpu.dot_dimension_numbers<[1], [0], [0], [1], [0, 0, 1, 1], [], []>} : vector<2x32xf32>, vector<32x128xf32>, vector<2x128xf32> -> vector<2x128xf32>
    %251 = arith.addf %249, %250 : vector<2x128xf32>
    %252 = vector.extract_strided_slice %251 {offsets = [0, 0], sizes = [2, 32], strides = [1, 1]} : vector<2x128xf32> to vector<2x32xf32>
    %253 = arith.negf %252 : vector<2x32xf32>
    %254 = math.exp %253 : vector<2x32xf32>
    %cst_81 = arith.constant 1.000000e+00 : f32
    %255 = vector.broadcast %cst_81 : f32 to vector<2x32xf32>
    %256 = arith.addf %255, %254 : vector<2x32xf32>
    %257 = arith.divf %255, %256 : vector<2x32xf32>
    %258 = vector.extract_strided_slice %251 {offsets = [0, 32], sizes = [2, 32], strides = [1, 1]} : vector<2x128xf32> to vector<2x32xf32>
    %259 = arith.negf %258 : vector<2x32xf32>
    %260 = math.exp %259 : vector<2x32xf32>
    %cst_82 = arith.constant 1.000000e+00 : f32
    %261 = vector.broadcast %cst_82 : f32 to vector<2x32xf32>
    %262 = arith.addf %261, %260 : vector<2x32xf32>
    %263 = arith.divf %261, %262 : vector<2x32xf32>
    %264 = vector.extract_strided_slice %251 {offsets = [0, 64], sizes = [2, 32], strides = [1, 1]} : vector<2x128xf32> to vector<2x32xf32>
    %265 = math.tanh %264 : vector<2x32xf32>
    %266 = vector.extract_strided_slice %251 {offsets = [0, 96], sizes = [2, 32], strides = [1, 1]} : vector<2x128xf32> to vector<2x32xf32>
    %267 = arith.negf %266 : vector<2x32xf32>
    %268 = math.exp %267 : vector<2x32xf32>
    %cst_83 = arith.constant 1.000000e+00 : f32
    %269 = vector.broadcast %cst_83 : f32 to vector<2x32xf32>
    %270 = arith.addf %269, %268 : vector<2x32xf32>
    %271 = arith.divf %269, %270 : vector<2x32xf32>
    %272 = arith.mulf %263, %0 : vector<2x32xf32>
    %273 = arith.mulf %257, %265 : vector<2x32xf32>
    %274 = arith.addf %272, %273 : vector<2x32xf32>
    %275 = math.tanh %274 : vector<2x32xf32>
    %276 = arith.mulf %271, %275 : vector<2x32xf32>
    %c0_84 = arith.constant 0 : index
    %c0_85 = arith.constant 0 : index
    %277 = vector.load %arg20[%c0_84, %c0_85] : memref<16x32xf32, #tpu.memory_space<vmem>>, vector<2x32xf32>
    tpu.vector_store %arg20[%c0_84, %c0_85], %276 {strides = array<i32>} : memref<16x32xf32, #tpu.memory_space<vmem>>, vector<2x32xf32>,
    %c2_86 = arith.constant 2 : index
    %c0_87 = arith.constant 0 : index
    %278 = vector.load %arg18[%c2_86, %c0_87] : memref<16x128xf32, #tpu.memory_space<vmem>>, vector<2x128xf32>
    %cst_88 = arith.constant dense<0.000000e+00> : vector<2x128xf32>
    %279 = tpu.matmul %276, %248, %cst_88 {dimension_numbers = #tpu.dot_dimension_numbers<[1], [0], [0], [1], [0, 0, 1, 1], [], []>} : vector<2x32xf32>, vector<32x128xf32>, vector<2x128xf32> -> vector<2x128xf32>
    %280 = arith.addf %278, %279 : vector<2x128xf32>
    %281 = vector.extract_strided_slice %280 {offsets = [0, 0], sizes = [2, 32], strides = [1, 1]} : vector<2x128xf32> to vector<2x32xf32>
    %282 = arith.negf %281 : vector<2x32xf32>
    %283 = math.exp %282 : vector<2x32xf32>
    %cst_89 = arith.constant 1.000000e+00 : f32
    %284 = vector.broadcast %cst_89 : f32 to vector<2x32xf32>
    %285 = arith.addf %284, %283 : vector<2x32xf32>
    %286 = arith.divf %284, %285 : vector<2x32xf32>
    %287 = vector.extract_strided_slice %280 {offsets = [0, 32], sizes = [2, 32], strides = [1, 1]} : vector<2x128xf32> to vector<2x32xf32>
    %288 = arith.negf %287 : vector<2x32xf32>
    %289 = math.exp %288 : vector<2x32xf32>
    %cst_90 = arith.constant 1.000000e+00 : f32
    %290 = vector.broadcast %cst_90 : f32 to vector<2x32xf32>
    %291 = arith.addf %290, %289 : vector<2x32xf32>
    %292 = arith.divf %290, %291 : vector<2x32xf32>
    %293 = vector.extract_strided_slice %280 {offsets = [0, 64], sizes = [2, 32], strides = [1, 1]} : vector<2x128xf32> to vector<2x32xf32>
    %294 = math.tanh %293 : vector<2x32xf32>
    %295 = vector.extract_strided_slice %280 {offsets = [0, 96], sizes = [2, 32], strides = [1, 1]} : vector<2x128xf32> to vector<2x32xf32>
    %296 = arith.negf %295 : vector<2x32xf32>
    %297 = math.exp %296 : vector<2x32xf32>
    %cst_91 = arith.constant 1.000000e+00 : f32
    %298 = vector.broadcast %cst_91 : f32 to vector<2x32xf32>
    %299 = arith.addf %298, %297 : vector<2x32xf32>
    %300 = arith.divf %298, %299 : vector<2x32xf32>
    %301 = arith.mulf %292, %274 : vector<2x32xf32>
    %302 = arith.mulf %286, %294 : vector<2x32xf32>
    %303 = arith.addf %301, %302 : vector<2x32xf32>
    %304 = math.tanh %303 : vector<2x32xf32>
    %305 = arith.mulf %300, %304 : vector<2x32xf32>
    %c2_92 = arith.constant 2 : index
    %c0_93 = arith.constant 0 : index
    %306 = vector.load %arg20[%c2_92, %c0_93] : memref<16x32xf32, #tpu.memory_space<vmem>>, vector<2x32xf32>
    tpu.vector_store %arg20[%c2_92, %c0_93], %305 {strides = array<i32>} : memref<16x32xf32, #tpu.memory_space<vmem>>, vector<2x32xf32>,
    %c4_94 = arith.constant 4 : index
    %c0_95 = arith.constant 0 : index
    %307 = vector.load %arg18[%c4_94, %c0_95] : memref<16x128xf32, #tpu.memory_space<vmem>>, vector<2x128xf32>
    %cst_96 = arith.constant dense<0.000000e+00> : vector<2x128xf32>
    %308 = tpu.matmul %305, %248, %cst_96 {dimension_numbers = #tpu.dot_dimension_numbers<[1], [0], [0], [1], [0, 0, 1, 1], [], []>} : vector<2x32xf32>, vector<32x128xf32>, vector<2x128xf32> -> vector<2x128xf32>
    %309 = arith.addf %307, %308 : vector<2x128xf32>
    %310 = vector.extract_strided_slice %309 {offsets = [0, 0], sizes = [2, 32], strides = [1, 1]} : vector<2x128xf32> to vector<2x32xf32>
    %311 = arith.negf %310 : vector<2x32xf32>
    %312 = math.exp %311 : vector<2x32xf32>
    %cst_97 = arith.constant 1.000000e+00 : f32
    %313 = vector.broadcast %cst_97 : f32 to vector<2x32xf32>
    %314 = arith.addf %313, %312 : vector<2x32xf32>
    %315 = arith.divf %313, %314 : vector<2x32xf32>
    %316 = vector.extract_strided_slice %309 {offsets = [0, 32], sizes = [2, 32], strides = [1, 1]} : vector<2x128xf32> to vector<2x32xf32>
    %317 = arith.negf %316 : vector<2x32xf32>
    %318 = math.exp %317 : vector<2x32xf32>
    %cst_98 = arith.constant 1.000000e+00 : f32
    %319 = vector.broadcast %cst_98 : f32 to vector<2x32xf32>
    %320 = arith.addf %319, %318 : vector<2x32xf32>
    %321 = arith.divf %319, %320 : vector<2x32xf32>
    %322 = vector.extract_strided_slice %309 {offsets = [0, 64], sizes = [2, 32], strides = [1, 1]} : vector<2x128xf32> to vector<2x32xf32>
    %323 = math.tanh %322 : vector<2x32xf32>
    %324 = vector.extract_strided_slice %309 {offsets = [0, 96], sizes = [2, 32], strides = [1, 1]} : vector<2x128xf32> to vector<2x32xf32>
    %325 = arith.negf %324 : vector<2x32xf32>
    %326 = math.exp %325 : vector<2x32xf32>
    %cst_99 = arith.constant 1.000000e+00 : f32
    %327 = vector.broadcast %cst_99 : f32 to vector<2x32xf32>
    %328 = arith.addf %327, %326 : vector<2x32xf32>
    %329 = arith.divf %327, %328 : vector<2x32xf32>
    %330 = arith.mulf %321, %303 : vector<2x32xf32>
    %331 = arith.mulf %315, %323 : vector<2x32xf32>
    %332 = arith.addf %330, %331 : vector<2x32xf32>
    %333 = math.tanh %332 : vector<2x32xf32>
    %334 = arith.mulf %329, %333 : vector<2x32xf32>
    %c4_100 = arith.constant 4 : index
    %c0_101 = arith.constant 0 : index
    %335 = vector.load %arg20[%c4_100, %c0_101] : memref<16x32xf32, #tpu.memory_space<vmem>>, vector<2x32xf32>
    tpu.vector_store %arg20[%c4_100, %c0_101], %334 {strides = array<i32>} : memref<16x32xf32, #tpu.memory_space<vmem>>, vector<2x32xf32>,
    %c6_102 = arith.constant 6 : index
    %c0_103 = arith.constant 0 : index
    %336 = vector.load %arg18[%c6_102, %c0_103] : memref<16x128xf32, #tpu.memory_space<vmem>>, vector<2x128xf32>
    %cst_104 = arith.constant dense<0.000000e+00> : vector<2x128xf32>
    %337 = tpu.matmul %334, %248, %cst_104 {dimension_numbers = #tpu.dot_dimension_numbers<[1], [0], [0], [1], [0, 0, 1, 1], [], []>} : vector<2x32xf32>, vector<32x128xf32>, vector<2x128xf32> -> vector<2x128xf32>
    %338 = arith.addf %336, %337 : vector<2x128xf32>
    %339 = vector.extract_strided_slice %338 {offsets = [0, 0], sizes = [2, 32], strides = [1, 1]} : vector<2x128xf32> to vector<2x32xf32>
    %340 = arith.negf %339 : vector<2x32xf32>
    %341 = math.exp %340 : vector<2x32xf32>
    %cst_105 = arith.constant 1.000000e+00 : f32
    %342 = vector.broadcast %cst_105 : f32 to vector<2x32xf32>
    %343 = arith.addf %342, %341 : vector<2x32xf32>
    %344 = arith.divf %342, %343 : vector<2x32xf32>
    %345 = vector.extract_strided_slice %338 {offsets = [0, 32], sizes = [2, 32], strides = [1, 1]} : vector<2x128xf32> to vector<2x32xf32>
    %346 = arith.negf %345 : vector<2x32xf32>
    %347 = math.exp %346 : vector<2x32xf32>
    %cst_106 = arith.constant 1.000000e+00 : f32
    %348 = vector.broadcast %cst_106 : f32 to vector<2x32xf32>
    %349 = arith.addf %348, %347 : vector<2x32xf32>
    %350 = arith.divf %348, %349 : vector<2x32xf32>
    %351 = vector.extract_strided_slice %338 {offsets = [0, 64], sizes = [2, 32], strides = [1, 1]} : vector<2x128xf32> to vector<2x32xf32>
    %352 = math.tanh %351 : vector<2x32xf32>
    %353 = vector.extract_strided_slice %338 {offsets = [0, 96], sizes = [2, 32], strides = [1, 1]} : vector<2x128xf32> to vector<2x32xf32>
    %354 = arith.negf %353 : vector<2x32xf32>
    %355 = math.exp %354 : vector<2x32xf32>
    %cst_107 = arith.constant 1.000000e+00 : f32
    %356 = vector.broadcast %cst_107 : f32 to vector<2x32xf32>
    %357 = arith.addf %356, %355 : vector<2x32xf32>
    %358 = arith.divf %356, %357 : vector<2x32xf32>
    %359 = arith.mulf %350, %332 : vector<2x32xf32>
    %360 = arith.mulf %344, %352 : vector<2x32xf32>
    %361 = arith.addf %359, %360 : vector<2x32xf32>
    %362 = math.tanh %361 : vector<2x32xf32>
    %363 = arith.mulf %358, %362 : vector<2x32xf32>
    %c6_108 = arith.constant 6 : index
    %c0_109 = arith.constant 0 : index
    %364 = vector.load %arg20[%c6_108, %c0_109] : memref<16x32xf32, #tpu.memory_space<vmem>>, vector<2x32xf32>
    tpu.vector_store %arg20[%c6_108, %c0_109], %363 {strides = array<i32>} : memref<16x32xf32, #tpu.memory_space<vmem>>, vector<2x32xf32>,
    %c8_110 = arith.constant 8 : index
    %c0_111 = arith.constant 0 : index
    %365 = vector.load %arg18[%c8_110, %c0_111] : memref<16x128xf32, #tpu.memory_space<vmem>>, vector<2x128xf32>
    %cst_112 = arith.constant dense<0.000000e+00> : vector<2x128xf32>
    %366 = tpu.matmul %363, %248, %cst_112 {dimension_numbers = #tpu.dot_dimension_numbers<[1], [0], [0], [1], [0, 0, 1, 1], [], []>} : vector<2x32xf32>, vector<32x128xf32>, vector<2x128xf32> -> vector<2x128xf32>
    %367 = arith.addf %365, %366 : vector<2x128xf32>
    %368 = vector.extract_strided_slice %367 {offsets = [0, 0], sizes = [2, 32], strides = [1, 1]} : vector<2x128xf32> to vector<2x32xf32>
    %369 = arith.negf %368 : vector<2x32xf32>
    %370 = math.exp %369 : vector<2x32xf32>
    %cst_113 = arith.constant 1.000000e+00 : f32
    %371 = vector.broadcast %cst_113 : f32 to vector<2x32xf32>
    %372 = arith.addf %371, %370 : vector<2x32xf32>
    %373 = arith.divf %371, %372 : vector<2x32xf32>
    %374 = vector.extract_strided_slice %367 {offsets = [0, 32], sizes = [2, 32], strides = [1, 1]} : vector<2x128xf32> to vector<2x32xf32>
    %375 = arith.negf %374 : vector<2x32xf32>
    %376 = math.exp %375 : vector<2x32xf32>
    %cst_114 = arith.constant 1.000000e+00 : f32
    %377 = vector.broadcast %cst_114 : f32 to vector<2x32xf32>
    %378 = arith.addf %377, %376 : vector<2x32xf32>
    %379 = arith.divf %377, %378 : vector<2x32xf32>
    %380 = vector.extract_strided_slice %367 {offsets = [0, 64], sizes = [2, 32], strides = [1, 1]} : vector<2x128xf32> to vector<2x32xf32>
    %381 = math.tanh %380 : vector<2x32xf32>
    %382 = vector.extract_strided_slice %367 {offsets = [0, 96], sizes = [2, 32], strides = [1, 1]} : vector<2x128xf32> to vector<2x32xf32>
    %383 = arith.negf %382 : vector<2x32xf32>
    %384 = math.exp %383 : vector<2x32xf32>
    %cst_115 = arith.constant 1.000000e+00 : f32
    %385 = vector.broadcast %cst_115 : f32 to vector<2x32xf32>
    %386 = arith.addf %385, %384 : vector<2x32xf32>
    %387 = arith.divf %385, %386 : vector<2x32xf32>
    %388 = arith.mulf %379, %361 : vector<2x32xf32>
    %389 = arith.mulf %373, %381 : vector<2x32xf32>
    %390 = arith.addf %388, %389 : vector<2x32xf32>
    %391 = math.tanh %390 : vector<2x32xf32>
    %392 = arith.mulf %387, %391 : vector<2x32xf32>
    %c8_116 = arith.constant 8 : index
    %c0_117 = arith.constant 0 : index
    %393 = vector.load %arg20[%c8_116, %c0_117] : memref<16x32xf32, #tpu.memory_space<vmem>>, vector<2x32xf32>
    tpu.vector_store %arg20[%c8_116, %c0_117], %392 {strides = array<i32>} : memref<16x32xf32, #tpu.memory_space<vmem>>, vector<2x32xf32>,
    %c10_118 = arith.constant 10 : index
    %c0_119 = arith.constant 0 : index
    %394 = vector.load %arg18[%c10_118, %c0_119] : memref<16x128xf32, #tpu.memory_space<vmem>>, vector<2x128xf32>
    %cst_120 = arith.constant dense<0.000000e+00> : vector<2x128xf32>
    %395 = tpu.matmul %392, %248, %cst_120 {dimension_numbers = #tpu.dot_dimension_numbers<[1], [0], [0], [1], [0, 0, 1, 1], [], []>} : vector<2x32xf32>, vector<32x128xf32>, vector<2x128xf32> -> vector<2x128xf32>
    %396 = arith.addf %394, %395 : vector<2x128xf32>
    %397 = vector.extract_strided_slice %396 {offsets = [0, 0], sizes = [2, 32], strides = [1, 1]} : vector<2x128xf32> to vector<2x32xf32>
    %398 = arith.negf %397 : vector<2x32xf32>
    %399 = math.exp %398 : vector<2x32xf32>
    %cst_121 = arith.constant 1.000000e+00 : f32
    %400 = vector.broadcast %cst_121 : f32 to vector<2x32xf32>
    %401 = arith.addf %400, %399 : vector<2x32xf32>
    %402 = arith.divf %400, %401 : vector<2x32xf32>
    %403 = vector.extract_strided_slice %396 {offsets = [0, 32], sizes = [2, 32], strides = [1, 1]} : vector<2x128xf32> to vector<2x32xf32>
    %404 = arith.negf %403 : vector<2x32xf32>
    %405 = math.exp %404 : vector<2x32xf32>
    %cst_122 = arith.constant 1.000000e+00 : f32
    %406 = vector.broadcast %cst_122 : f32 to vector<2x32xf32>
    %407 = arith.addf %406, %405 : vector<2x32xf32>
    %408 = arith.divf %406, %407 : vector<2x32xf32>
    %409 = vector.extract_strided_slice %396 {offsets = [0, 64], sizes = [2, 32], strides = [1, 1]} : vector<2x128xf32> to vector<2x32xf32>
    %410 = math.tanh %409 : vector<2x32xf32>
    %411 = vector.extract_strided_slice %396 {offsets = [0, 96], sizes = [2, 32], strides = [1, 1]} : vector<2x128xf32> to vector<2x32xf32>
    %412 = arith.negf %411 : vector<2x32xf32>
    %413 = math.exp %412 : vector<2x32xf32>
    %cst_123 = arith.constant 1.000000e+00 : f32
    %414 = vector.broadcast %cst_123 : f32 to vector<2x32xf32>
    %415 = arith.addf %414, %413 : vector<2x32xf32>
    %416 = arith.divf %414, %415 : vector<2x32xf32>
    %417 = arith.mulf %408, %390 : vector<2x32xf32>
    %418 = arith.mulf %402, %410 : vector<2x32xf32>
    %419 = arith.addf %417, %418 : vector<2x32xf32>
    %420 = math.tanh %419 : vector<2x32xf32>
    %421 = arith.mulf %416, %420 : vector<2x32xf32>
    %c10_124 = arith.constant 10 : index
    %c0_125 = arith.constant 0 : index
    %422 = vector.load %arg20[%c10_124, %c0_125] : memref<16x32xf32, #tpu.memory_space<vmem>>, vector<2x32xf32>
    tpu.vector_store %arg20[%c10_124, %c0_125], %421 {strides = array<i32>} : memref<16x32xf32, #tpu.memory_space<vmem>>, vector<2x32xf32>,
    %c12_126 = arith.constant 12 : index
    %c0_127 = arith.constant 0 : index
    %423 = vector.load %arg18[%c12_126, %c0_127] : memref<16x128xf32, #tpu.memory_space<vmem>>, vector<2x128xf32>
    %cst_128 = arith.constant dense<0.000000e+00> : vector<2x128xf32>
    %424 = tpu.matmul %421, %248, %cst_128 {dimension_numbers = #tpu.dot_dimension_numbers<[1], [0], [0], [1], [0, 0, 1, 1], [], []>} : vector<2x32xf32>, vector<32x128xf32>, vector<2x128xf32> -> vector<2x128xf32>
    %425 = arith.addf %423, %424 : vector<2x128xf32>
    %426 = vector.extract_strided_slice %425 {offsets = [0, 0], sizes = [2, 32], strides = [1, 1]} : vector<2x128xf32> to vector<2x32xf32>
    %427 = arith.negf %426 : vector<2x32xf32>
    %428 = math.exp %427 : vector<2x32xf32>
    %cst_129 = arith.constant 1.000000e+00 : f32
    %429 = vector.broadcast %cst_129 : f32 to vector<2x32xf32>
    %430 = arith.addf %429, %428 : vector<2x32xf32>
    %431 = arith.divf %429, %430 : vector<2x32xf32>
    %432 = vector.extract_strided_slice %425 {offsets = [0, 32], sizes = [2, 32], strides = [1, 1]} : vector<2x128xf32> to vector<2x32xf32>
    %433 = arith.negf %432 : vector<2x32xf32>
    %434 = math.exp %433 : vector<2x32xf32>
    %cst_130 = arith.constant 1.000000e+00 : f32
    %435 = vector.broadcast %cst_130 : f32 to vector<2x32xf32>
    %436 = arith.addf %435, %434 : vector<2x32xf32>
    %437 = arith.divf %435, %436 : vector<2x32xf32>
    %438 = vector.extract_strided_slice %425 {offsets = [0, 64], sizes = [2, 32], strides = [1, 1]} : vector<2x128xf32> to vector<2x32xf32>
    %439 = math.tanh %438 : vector<2x32xf32>
    %440 = vector.extract_strided_slice %425 {offsets = [0, 96], sizes = [2, 32], strides = [1, 1]} : vector<2x128xf32> to vector<2x32xf32>
    %441 = arith.negf %440 : vector<2x32xf32>
    %442 = math.exp %441 : vector<2x32xf32>
    %cst_131 = arith.constant 1.000000e+00 : f32
    %443 = vector.broadcast %cst_131 : f32 to vector<2x32xf32>
    %444 = arith.addf %443, %442 : vector<2x32xf32>
    %445 = arith.divf %443, %444 : vector<2x32xf32>
    %446 = arith.mulf %437, %419 : vector<2x32xf32>
    %447 = arith.mulf %431, %439 : vector<2x32xf32>
    %448 = arith.addf %446, %447 : vector<2x32xf32>
    %449 = math.tanh %448 : vector<2x32xf32>
    %450 = arith.mulf %445, %449 : vector<2x32xf32>
    %c12_132 = arith.constant 12 : index
    %c0_133 = arith.constant 0 : index
    %451 = vector.load %arg20[%c12_132, %c0_133] : memref<16x32xf32, #tpu.memory_space<vmem>>, vector<2x32xf32>
    tpu.vector_store %arg20[%c12_132, %c0_133], %450 {strides = array<i32>} : memref<16x32xf32, #tpu.memory_space<vmem>>, vector<2x32xf32>,
    %c14_134 = arith.constant 14 : index
    %c0_135 = arith.constant 0 : index
    %452 = vector.load %arg18[%c14_134, %c0_135] : memref<16x128xf32, #tpu.memory_space<vmem>>, vector<2x128xf32>
    %cst_136 = arith.constant dense<0.000000e+00> : vector<2x128xf32>
    %453 = tpu.matmul %450, %248, %cst_136 {dimension_numbers = #tpu.dot_dimension_numbers<[1], [0], [0], [1], [0, 0, 1, 1], [], []>} : vector<2x32xf32>, vector<32x128xf32>, vector<2x128xf32> -> vector<2x128xf32>
    %454 = arith.addf %452, %453 : vector<2x128xf32>
    %455 = vector.extract_strided_slice %454 {offsets = [0, 0], sizes = [2, 32], strides = [1, 1]} : vector<2x128xf32> to vector<2x32xf32>
    %456 = arith.negf %455 : vector<2x32xf32>
    %457 = math.exp %456 : vector<2x32xf32>
    %cst_137 = arith.constant 1.000000e+00 : f32
    %458 = vector.broadcast %cst_137 : f32 to vector<2x32xf32>
    %459 = arith.addf %458, %457 : vector<2x32xf32>
    %460 = arith.divf %458, %459 : vector<2x32xf32>
    %461 = vector.extract_strided_slice %454 {offsets = [0, 32], sizes = [2, 32], strides = [1, 1]} : vector<2x128xf32> to vector<2x32xf32>
    %462 = arith.negf %461 : vector<2x32xf32>
    %463 = math.exp %462 : vector<2x32xf32>
    %cst_138 = arith.constant 1.000000e+00 : f32
    %464 = vector.broadcast %cst_138 : f32 to vector<2x32xf32>
    %465 = arith.addf %464, %463 : vector<2x32xf32>
    %466 = arith.divf %464, %465 : vector<2x32xf32>
    %467 = vector.extract_strided_slice %454 {offsets = [0, 64], sizes = [2, 32], strides = [1, 1]} : vector<2x128xf32> to vector<2x32xf32>
    %468 = math.tanh %467 : vector<2x32xf32>
    %469 = vector.extract_strided_slice %454 {offsets = [0, 96], sizes = [2, 32], strides = [1, 1]} : vector<2x128xf32> to vector<2x32xf32>
    %470 = arith.negf %469 : vector<2x32xf32>
    %471 = math.exp %470 : vector<2x32xf32>
    %cst_139 = arith.constant 1.000000e+00 : f32
    %472 = vector.broadcast %cst_139 : f32 to vector<2x32xf32>
    %473 = arith.addf %472, %471 : vector<2x32xf32>
    %474 = arith.divf %472, %473 : vector<2x32xf32>
    %475 = arith.mulf %466, %448 : vector<2x32xf32>
    %476 = arith.mulf %460, %468 : vector<2x32xf32>
    %477 = arith.addf %475, %476 : vector<2x32xf32>
    %478 = math.tanh %477 : vector<2x32xf32>
    %479 = arith.mulf %474, %478 : vector<2x32xf32>
    %c14_140 = arith.constant 14 : index
    %c0_141 = arith.constant 0 : index
    %480 = vector.load %arg20[%c14_140, %c0_141] : memref<16x32xf32, #tpu.memory_space<vmem>>, vector<2x32xf32>
    tpu.vector_store %arg20[%c14_140, %c0_141], %479 {strides = array<i32>} : memref<16x32xf32, #tpu.memory_space<vmem>>, vector<2x32xf32>,
    %c0_142 = arith.constant 0 : index
    %c0_143 = arith.constant 0 : index
    %481 = vector.load %arg20[%c0_142, %c0_143] : memref<16x32xf32, #tpu.memory_space<vmem>>, vector<16x32xf32>
    %c0_144 = arith.constant 0 : index
    %c0_145 = arith.constant 0 : index
    %482 = vector.load %arg7[%c0_144, %c0_145] : memref<32x128xf32, #tpu.memory_space<vmem>>, vector<32x128xf32>
    %cst_146 = arith.constant dense<0.000000e+00> : vector<16x128xf32>
    %483 = tpu.matmul %481, %482, %cst_146 {dimension_numbers = #tpu.dot_dimension_numbers<[1], [0], [0], [1], [0, 0, 1, 1], [], []>} : vector<16x32xf32>, vector<32x128xf32>, vector<16x128xf32> -> vector<16x128xf32>
    %c0_147 = arith.constant 0 : index
    %c0_148 = arith.constant 0 : index
    %484 = vector.load %arg9[%c0_147, %c0_148] : memref<1x128xf32, #tpu.memory_space<vmem>>, vector<1x128xf32>
    %485 = vector.broadcast %484 : vector<1x128xf32> to vector<16x128xf32>
    %486 = arith.addf %483, %485 : vector<16x128xf32>
    %c0_149 = arith.constant 0 : index
    %c0_150 = arith.constant 0 : index
    %487 = vector.load %arg18[%c0_149, %c0_150] : memref<16x128xf32, #tpu.memory_space<vmem>>, vector<16x128xf32>
    tpu.vector_store %arg18[%c0_149, %c0_150], %486 {strides = array<i32>} : memref<16x128xf32, #tpu.memory_space<vmem>>, vector<16x128xf32>,
    %c0_151 = arith.constant 0 : index
    %c0_152 = arith.constant 0 : index
    %488 = vector.load %arg8[%c0_151, %c0_152] : memref<32x128xf32, #tpu.memory_space<vmem>>, vector<32x128xf32>
    %c0_153 = arith.constant 0 : index
    %c0_154 = arith.constant 0 : index
    %489 = vector.load %arg18[%c0_153, %c0_154] : memref<16x128xf32, #tpu.memory_space<vmem>>, vector<2x128xf32>
    %cst_155 = arith.constant dense<0.000000e+00> : vector<2x128xf32>
    %490 = tpu.matmul %239, %488, %cst_155 {dimension_numbers = #tpu.dot_dimension_numbers<[1], [0], [0], [1], [0, 0, 1, 1], [], []>} : vector<2x32xf32>, vector<32x128xf32>, vector<2x128xf32> -> vector<2x128xf32>
    %491 = arith.addf %489, %490 : vector<2x128xf32>
    %492 = vector.extract_strided_slice %491 {offsets = [0, 0], sizes = [2, 32], strides = [1, 1]} : vector<2x128xf32> to vector<2x32xf32>
    %493 = arith.negf %492 : vector<2x32xf32>
    %494 = math.exp %493 : vector<2x32xf32>
    %cst_156 = arith.constant 1.000000e+00 : f32
    %495 = vector.broadcast %cst_156 : f32 to vector<2x32xf32>
    %496 = arith.addf %495, %494 : vector<2x32xf32>
    %497 = arith.divf %495, %496 : vector<2x32xf32>
    %498 = vector.extract_strided_slice %491 {offsets = [0, 32], sizes = [2, 32], strides = [1, 1]} : vector<2x128xf32> to vector<2x32xf32>
    %499 = arith.negf %498 : vector<2x32xf32>
    %500 = math.exp %499 : vector<2x32xf32>
    %cst_157 = arith.constant 1.000000e+00 : f32
    %501 = vector.broadcast %cst_157 : f32 to vector<2x32xf32>
    %502 = arith.addf %501, %500 : vector<2x32xf32>
    %503 = arith.divf %501, %502 : vector<2x32xf32>
    %504 = vector.extract_strided_slice %491 {offsets = [0, 64], sizes = [2, 32], strides = [1, 1]} : vector<2x128xf32> to vector<2x32xf32>
    %505 = math.tanh %504 : vector<2x32xf32>
    %506 = vector.extract_strided_slice %491 {offsets = [0, 96], sizes = [2, 32], strides = [1, 1]} : vector<2x128xf32> to vector<2x32xf32>
    %507 = arith.negf %506 : vector<2x32xf32>
    %508 = math.exp %507 : vector<2x32xf32>
    %cst_158 = arith.constant 1.000000e+00 : f32
    %509 = vector.broadcast %cst_158 : f32 to vector<2x32xf32>
    %510 = arith.addf %509, %508 : vector<2x32xf32>
    %511 = arith.divf %509, %510 : vector<2x32xf32>
    %512 = arith.mulf %503, %237 : vector<2x32xf32>
    %513 = arith.mulf %497, %505 : vector<2x32xf32>
    %514 = arith.addf %512, %513 : vector<2x32xf32>
    %515 = math.tanh %514 : vector<2x32xf32>
    %516 = arith.mulf %511, %515 : vector<2x32xf32>
    %c0_159 = arith.constant 0 : index
    %c0_160 = arith.constant 0 : index
    %517 = vector.load %arg19[%c0_159, %c0_160] : memref<16x32xf32, #tpu.memory_space<vmem>>, vector<2x32xf32>
    tpu.vector_store %arg19[%c0_159, %c0_160], %516 {strides = array<i32>} : memref<16x32xf32, #tpu.memory_space<vmem>>, vector<2x32xf32>,
    %c2_161 = arith.constant 2 : index
    %c0_162 = arith.constant 0 : index
    %518 = vector.load %arg18[%c2_161, %c0_162] : memref<16x128xf32, #tpu.memory_space<vmem>>, vector<2x128xf32>
    %cst_163 = arith.constant dense<0.000000e+00> : vector<2x128xf32>
    %519 = tpu.matmul %516, %488, %cst_163 {dimension_numbers = #tpu.dot_dimension_numbers<[1], [0], [0], [1], [0, 0, 1, 1], [], []>} : vector<2x32xf32>, vector<32x128xf32>, vector<2x128xf32> -> vector<2x128xf32>
    %520 = arith.addf %518, %519 : vector<2x128xf32>
    %521 = vector.extract_strided_slice %520 {offsets = [0, 0], sizes = [2, 32], strides = [1, 1]} : vector<2x128xf32> to vector<2x32xf32>
    %522 = arith.negf %521 : vector<2x32xf32>
    %523 = math.exp %522 : vector<2x32xf32>
    %cst_164 = arith.constant 1.000000e+00 : f32
    %524 = vector.broadcast %cst_164 : f32 to vector<2x32xf32>
    %525 = arith.addf %524, %523 : vector<2x32xf32>
    %526 = arith.divf %524, %525 : vector<2x32xf32>
    %527 = vector.extract_strided_slice %520 {offsets = [0, 32], sizes = [2, 32], strides = [1, 1]} : vector<2x128xf32> to vector<2x32xf32>
    %528 = arith.negf %527 : vector<2x32xf32>
    %529 = math.exp %528 : vector<2x32xf32>
    %cst_165 = arith.constant 1.000000e+00 : f32
    %530 = vector.broadcast %cst_165 : f32 to vector<2x32xf32>
    %531 = arith.addf %530, %529 : vector<2x32xf32>
    %532 = arith.divf %530, %531 : vector<2x32xf32>
    %533 = vector.extract_strided_slice %520 {offsets = [0, 64], sizes = [2, 32], strides = [1, 1]} : vector<2x128xf32> to vector<2x32xf32>
    %534 = math.tanh %533 : vector<2x32xf32>
    %535 = vector.extract_strided_slice %520 {offsets = [0, 96], sizes = [2, 32], strides = [1, 1]} : vector<2x128xf32> to vector<2x32xf32>
    %536 = arith.negf %535 : vector<2x32xf32>
    %537 = math.exp %536 : vector<2x32xf32>
    %cst_166 = arith.constant 1.000000e+00 : f32
    %538 = vector.broadcast %cst_166 : f32 to vector<2x32xf32>
    %539 = arith.addf %538, %537 : vector<2x32xf32>
    %540 = arith.divf %538, %539 : vector<2x32xf32>
    %541 = arith.mulf %532, %514 : vector<2x32xf32>
    %542 = arith.mulf %526, %534 : vector<2x32xf32>
    %543 = arith.addf %541, %542 : vector<2x32xf32>
    %544 = math.tanh %543 : vector<2x32xf32>
    %545 = arith.mulf %540, %544 : vector<2x32xf32>
    %c2_167 = arith.constant 2 : index
    %c0_168 = arith.constant 0 : index
    %546 = vector.load %arg19[%c2_167, %c0_168] : memref<16x32xf32, #tpu.memory_space<vmem>>, vector<2x32xf32>
    tpu.vector_store %arg19[%c2_167, %c0_168], %545 {strides = array<i32>} : memref<16x32xf32, #tpu.memory_space<vmem>>, vector<2x32xf32>,
    %c4_169 = arith.constant 4 : index
    %c0_170 = arith.constant 0 : index
    %547 = vector.load %arg18[%c4_169, %c0_170] : memref<16x128xf32, #tpu.memory_space<vmem>>, vector<2x128xf32>
    %cst_171 = arith.constant dense<0.000000e+00> : vector<2x128xf32>
    %548 = tpu.matmul %545, %488, %cst_171 {dimension_numbers = #tpu.dot_dimension_numbers<[1], [0], [0], [1], [0, 0, 1, 1], [], []>} : vector<2x32xf32>, vector<32x128xf32>, vector<2x128xf32> -> vector<2x128xf32>
    %549 = arith.addf %547, %548 : vector<2x128xf32>
    %550 = vector.extract_strided_slice %549 {offsets = [0, 0], sizes = [2, 32], strides = [1, 1]} : vector<2x128xf32> to vector<2x32xf32>
    %551 = arith.negf %550 : vector<2x32xf32>
    %552 = math.exp %551 : vector<2x32xf32>
    %cst_172 = arith.constant 1.000000e+00 : f32
    %553 = vector.broadcast %cst_172 : f32 to vector<2x32xf32>
    %554 = arith.addf %553, %552 : vector<2x32xf32>
    %555 = arith.divf %553, %554 : vector<2x32xf32>
    %556 = vector.extract_strided_slice %549 {offsets = [0, 32], sizes = [2, 32], strides = [1, 1]} : vector<2x128xf32> to vector<2x32xf32>
    %557 = arith.negf %556 : vector<2x32xf32>
    %558 = math.exp %557 : vector<2x32xf32>
    %cst_173 = arith.constant 1.000000e+00 : f32
    %559 = vector.broadcast %cst_173 : f32 to vector<2x32xf32>
    %560 = arith.addf %559, %558 : vector<2x32xf32>
    %561 = arith.divf %559, %560 : vector<2x32xf32>
    %562 = vector.extract_strided_slice %549 {offsets = [0, 64], sizes = [2, 32], strides = [1, 1]} : vector<2x128xf32> to vector<2x32xf32>
    %563 = math.tanh %562 : vector<2x32xf32>
    %564 = vector.extract_strided_slice %549 {offsets = [0, 96], sizes = [2, 32], strides = [1, 1]} : vector<2x128xf32> to vector<2x32xf32>
    %565 = arith.negf %564 : vector<2x32xf32>
    %566 = math.exp %565 : vector<2x32xf32>
    %cst_174 = arith.constant 1.000000e+00 : f32
    %567 = vector.broadcast %cst_174 : f32 to vector<2x32xf32>
    %568 = arith.addf %567, %566 : vector<2x32xf32>
    %569 = arith.divf %567, %568 : vector<2x32xf32>
    %570 = arith.mulf %561, %543 : vector<2x32xf32>
    %571 = arith.mulf %555, %563 : vector<2x32xf32>
    %572 = arith.addf %570, %571 : vector<2x32xf32>
    %573 = math.tanh %572 : vector<2x32xf32>
    %574 = arith.mulf %569, %573 : vector<2x32xf32>
    %c4_175 = arith.constant 4 : index
    %c0_176 = arith.constant 0 : index
    %575 = vector.load %arg19[%c4_175, %c0_176] : memref<16x32xf32, #tpu.memory_space<vmem>>, vector<2x32xf32>
    tpu.vector_store %arg19[%c4_175, %c0_176], %574 {strides = array<i32>} : memref<16x32xf32, #tpu.memory_space<vmem>>, vector<2x32xf32>,
    %c6_177 = arith.constant 6 : index
    %c0_178 = arith.constant 0 : index
    %576 = vector.load %arg18[%c6_177, %c0_178] : memref<16x128xf32, #tpu.memory_space<vmem>>, vector<2x128xf32>
    %cst_179 = arith.constant dense<0.000000e+00> : vector<2x128xf32>
    %577 = tpu.matmul %574, %488, %cst_179 {dimension_numbers = #tpu.dot_dimension_numbers<[1], [0], [0], [1], [0, 0, 1, 1], [], []>} : vector<2x32xf32>, vector<32x128xf32>, vector<2x128xf32> -> vector<2x128xf32>
    %578 = arith.addf %576, %577 : vector<2x128xf32>
    %579 = vector.extract_strided_slice %578 {offsets = [0, 0], sizes = [2, 32], strides = [1, 1]} : vector<2x128xf32> to vector<2x32xf32>
    %580 = arith.negf %579 : vector<2x32xf32>
    %581 = math.exp %580 : vector<2x32xf32>
    %cst_180 = arith.constant 1.000000e+00 : f32
    %582 = vector.broadcast %cst_180 : f32 to vector<2x32xf32>
    %583 = arith.addf %582, %581 : vector<2x32xf32>
    %584 = arith.divf %582, %583 : vector<2x32xf32>
    %585 = vector.extract_strided_slice %578 {offsets = [0, 32], sizes = [2, 32], strides = [1, 1]} : vector<2x128xf32> to vector<2x32xf32>
    %586 = arith.negf %585 : vector<2x32xf32>
    %587 = math.exp %586 : vector<2x32xf32>
    %cst_181 = arith.constant 1.000000e+00 : f32
    %588 = vector.broadcast %cst_181 : f32 to vector<2x32xf32>
    %589 = arith.addf %588, %587 : vector<2x32xf32>
    %590 = arith.divf %588, %589 : vector<2x32xf32>
    %591 = vector.extract_strided_slice %578 {offsets = [0, 64], sizes = [2, 32], strides = [1, 1]} : vector<2x128xf32> to vector<2x32xf32>
    %592 = math.tanh %591 : vector<2x32xf32>
    %593 = vector.extract_strided_slice %578 {offsets = [0, 96], sizes = [2, 32], strides = [1, 1]} : vector<2x128xf32> to vector<2x32xf32>
    %594 = arith.negf %593 : vector<2x32xf32>
    %595 = math.exp %594 : vector<2x32xf32>
    %cst_182 = arith.constant 1.000000e+00 : f32
    %596 = vector.broadcast %cst_182 : f32 to vector<2x32xf32>
    %597 = arith.addf %596, %595 : vector<2x32xf32>
    %598 = arith.divf %596, %597 : vector<2x32xf32>
    %599 = arith.mulf %590, %572 : vector<2x32xf32>
    %600 = arith.mulf %584, %592 : vector<2x32xf32>
    %601 = arith.addf %599, %600 : vector<2x32xf32>
    %602 = math.tanh %601 : vector<2x32xf32>
    %603 = arith.mulf %598, %602 : vector<2x32xf32>
    %c6_183 = arith.constant 6 : index
    %c0_184 = arith.constant 0 : index
    %604 = vector.load %arg19[%c6_183, %c0_184] : memref<16x32xf32, #tpu.memory_space<vmem>>, vector<2x32xf32>
    tpu.vector_store %arg19[%c6_183, %c0_184], %603 {strides = array<i32>} : memref<16x32xf32, #tpu.memory_space<vmem>>, vector<2x32xf32>,
    %c8_185 = arith.constant 8 : index
    %c0_186 = arith.constant 0 : index
    %605 = vector.load %arg18[%c8_185, %c0_186] : memref<16x128xf32, #tpu.memory_space<vmem>>, vector<2x128xf32>
    %cst_187 = arith.constant dense<0.000000e+00> : vector<2x128xf32>
    %606 = tpu.matmul %603, %488, %cst_187 {dimension_numbers = #tpu.dot_dimension_numbers<[1], [0], [0], [1], [0, 0, 1, 1], [], []>} : vector<2x32xf32>, vector<32x128xf32>, vector<2x128xf32> -> vector<2x128xf32>
    %607 = arith.addf %605, %606 : vector<2x128xf32>
    %608 = vector.extract_strided_slice %607 {offsets = [0, 0], sizes = [2, 32], strides = [1, 1]} : vector<2x128xf32> to vector<2x32xf32>
    %609 = arith.negf %608 : vector<2x32xf32>
    %610 = math.exp %609 : vector<2x32xf32>
    %cst_188 = arith.constant 1.000000e+00 : f32
    %611 = vector.broadcast %cst_188 : f32 to vector<2x32xf32>
    %612 = arith.addf %611, %610 : vector<2x32xf32>
    %613 = arith.divf %611, %612 : vector<2x32xf32>
    %614 = vector.extract_strided_slice %607 {offsets = [0, 32], sizes = [2, 32], strides = [1, 1]} : vector<2x128xf32> to vector<2x32xf32>
    %615 = arith.negf %614 : vector<2x32xf32>
    %616 = math.exp %615 : vector<2x32xf32>
    %cst_189 = arith.constant 1.000000e+00 : f32
    %617 = vector.broadcast %cst_189 : f32 to vector<2x32xf32>
    %618 = arith.addf %617, %616 : vector<2x32xf32>
    %619 = arith.divf %617, %618 : vector<2x32xf32>
    %620 = vector.extract_strided_slice %607 {offsets = [0, 64], sizes = [2, 32], strides = [1, 1]} : vector<2x128xf32> to vector<2x32xf32>
    %621 = math.tanh %620 : vector<2x32xf32>
    %622 = vector.extract_strided_slice %607 {offsets = [0, 96], sizes = [2, 32], strides = [1, 1]} : vector<2x128xf32> to vector<2x32xf32>
    %623 = arith.negf %622 : vector<2x32xf32>
    %624 = math.exp %623 : vector<2x32xf32>
    %cst_190 = arith.constant 1.000000e+00 : f32
    %625 = vector.broadcast %cst_190 : f32 to vector<2x32xf32>
    %626 = arith.addf %625, %624 : vector<2x32xf32>
    %627 = arith.divf %625, %626 : vector<2x32xf32>
    %628 = arith.mulf %619, %601 : vector<2x32xf32>
    %629 = arith.mulf %613, %621 : vector<2x32xf32>
    %630 = arith.addf %628, %629 : vector<2x32xf32>
    %631 = math.tanh %630 : vector<2x32xf32>
    %632 = arith.mulf %627, %631 : vector<2x32xf32>
    %c8_191 = arith.constant 8 : index
    %c0_192 = arith.constant 0 : index
    %633 = vector.load %arg19[%c8_191, %c0_192] : memref<16x32xf32, #tpu.memory_space<vmem>>, vector<2x32xf32>
    tpu.vector_store %arg19[%c8_191, %c0_192], %632 {strides = array<i32>} : memref<16x32xf32, #tpu.memory_space<vmem>>, vector<2x32xf32>,
    %c10_193 = arith.constant 10 : index
    %c0_194 = arith.constant 0 : index
    %634 = vector.load %arg18[%c10_193, %c0_194] : memref<16x128xf32, #tpu.memory_space<vmem>>, vector<2x128xf32>
    %cst_195 = arith.constant dense<0.000000e+00> : vector<2x128xf32>
    %635 = tpu.matmul %632, %488, %cst_195 {dimension_numbers = #tpu.dot_dimension_numbers<[1], [0], [0], [1], [0, 0, 1, 1], [], []>} : vector<2x32xf32>, vector<32x128xf32>, vector<2x128xf32> -> vector<2x128xf32>
    %636 = arith.addf %634, %635 : vector<2x128xf32>
    %637 = vector.extract_strided_slice %636 {offsets = [0, 0], sizes = [2, 32], strides = [1, 1]} : vector<2x128xf32> to vector<2x32xf32>
    %638 = arith.negf %637 : vector<2x32xf32>
    %639 = math.exp %638 : vector<2x32xf32>
    %cst_196 = arith.constant 1.000000e+00 : f32
    %640 = vector.broadcast %cst_196 : f32 to vector<2x32xf32>
    %641 = arith.addf %640, %639 : vector<2x32xf32>
    %642 = arith.divf %640, %641 : vector<2x32xf32>
    %643 = vector.extract_strided_slice %636 {offsets = [0, 32], sizes = [2, 32], strides = [1, 1]} : vector<2x128xf32> to vector<2x32xf32>
    %644 = arith.negf %643 : vector<2x32xf32>
    %645 = math.exp %644 : vector<2x32xf32>
    %cst_197 = arith.constant 1.000000e+00 : f32
    %646 = vector.broadcast %cst_197 : f32 to vector<2x32xf32>
    %647 = arith.addf %646, %645 : vector<2x32xf32>
    %648 = arith.divf %646, %647 : vector<2x32xf32>
    %649 = vector.extract_strided_slice %636 {offsets = [0, 64], sizes = [2, 32], strides = [1, 1]} : vector<2x128xf32> to vector<2x32xf32>
    %650 = math.tanh %649 : vector<2x32xf32>
    %651 = vector.extract_strided_slice %636 {offsets = [0, 96], sizes = [2, 32], strides = [1, 1]} : vector<2x128xf32> to vector<2x32xf32>
    %652 = arith.negf %651 : vector<2x32xf32>
    %653 = math.exp %652 : vector<2x32xf32>
    %cst_198 = arith.constant 1.000000e+00 : f32
    %654 = vector.broadcast %cst_198 : f32 to vector<2x32xf32>
    %655 = arith.addf %654, %653 : vector<2x32xf32>
    %656 = arith.divf %654, %655 : vector<2x32xf32>
    %657 = arith.mulf %648, %630 : vector<2x32xf32>
    %658 = arith.mulf %642, %650 : vector<2x32xf32>
    %659 = arith.addf %657, %658 : vector<2x32xf32>
    %660 = math.tanh %659 : vector<2x32xf32>
    %661 = arith.mulf %656, %660 : vector<2x32xf32>
    %c10_199 = arith.constant 10 : index
    %c0_200 = arith.constant 0 : index
    %662 = vector.load %arg19[%c10_199, %c0_200] : memref<16x32xf32, #tpu.memory_space<vmem>>, vector<2x32xf32>
    tpu.vector_store %arg19[%c10_199, %c0_200], %661 {strides = array<i32>} : memref<16x32xf32, #tpu.memory_space<vmem>>, vector<2x32xf32>,
    %c12_201 = arith.constant 12 : index
    %c0_202 = arith.constant 0 : index
    %663 = vector.load %arg18[%c12_201, %c0_202] : memref<16x128xf32, #tpu.memory_space<vmem>>, vector<2x128xf32>
    %cst_203 = arith.constant dense<0.000000e+00> : vector<2x128xf32>
    %664 = tpu.matmul %661, %488, %cst_203 {dimension_numbers = #tpu.dot_dimension_numbers<[1], [0], [0], [1], [0, 0, 1, 1], [], []>} : vector<2x32xf32>, vector<32x128xf32>, vector<2x128xf32> -> vector<2x128xf32>
    %665 = arith.addf %663, %664 : vector<2x128xf32>
    %666 = vector.extract_strided_slice %665 {offsets = [0, 0], sizes = [2, 32], strides = [1, 1]} : vector<2x128xf32> to vector<2x32xf32>
    %667 = arith.negf %666 : vector<2x32xf32>
    %668 = math.exp %667 : vector<2x32xf32>
    %cst_204 = arith.constant 1.000000e+00 : f32
    %669 = vector.broadcast %cst_204 : f32 to vector<2x32xf32>
    %670 = arith.addf %669, %668 : vector<2x32xf32>
    %671 = arith.divf %669, %670 : vector<2x32xf32>
    %672 = vector.extract_strided_slice %665 {offsets = [0, 32], sizes = [2, 32], strides = [1, 1]} : vector<2x128xf32> to vector<2x32xf32>
    %673 = arith.negf %672 : vector<2x32xf32>
    %674 = math.exp %673 : vector<2x32xf32>
    %cst_205 = arith.constant 1.000000e+00 : f32
    %675 = vector.broadcast %cst_205 : f32 to vector<2x32xf32>
    %676 = arith.addf %675, %674 : vector<2x32xf32>
    %677 = arith.divf %675, %676 : vector<2x32xf32>
    %678 = vector.extract_strided_slice %665 {offsets = [0, 64], sizes = [2, 32], strides = [1, 1]} : vector<2x128xf32> to vector<2x32xf32>
    %679 = math.tanh %678 : vector<2x32xf32>
    %680 = vector.extract_strided_slice %665 {offsets = [0, 96], sizes = [2, 32], strides = [1, 1]} : vector<2x128xf32> to vector<2x32xf32>
    %681 = arith.negf %680 : vector<2x32xf32>
    %682 = math.exp %681 : vector<2x32xf32>
    %cst_206 = arith.constant 1.000000e+00 : f32
    %683 = vector.broadcast %cst_206 : f32 to vector<2x32xf32>
    %684 = arith.addf %683, %682 : vector<2x32xf32>
    %685 = arith.divf %683, %684 : vector<2x32xf32>
    %686 = arith.mulf %677, %659 : vector<2x32xf32>
    %687 = arith.mulf %671, %679 : vector<2x32xf32>
    %688 = arith.addf %686, %687 : vector<2x32xf32>
    %689 = math.tanh %688 : vector<2x32xf32>
    %690 = arith.mulf %685, %689 : vector<2x32xf32>
    %c12_207 = arith.constant 12 : index
    %c0_208 = arith.constant 0 : index
    %691 = vector.load %arg19[%c12_207, %c0_208] : memref<16x32xf32, #tpu.memory_space<vmem>>, vector<2x32xf32>
    tpu.vector_store %arg19[%c12_207, %c0_208], %690 {strides = array<i32>} : memref<16x32xf32, #tpu.memory_space<vmem>>, vector<2x32xf32>,
    %c14_209 = arith.constant 14 : index
    %c0_210 = arith.constant 0 : index
    %692 = vector.load %arg18[%c14_209, %c0_210] : memref<16x128xf32, #tpu.memory_space<vmem>>, vector<2x128xf32>
    %cst_211 = arith.constant dense<0.000000e+00> : vector<2x128xf32>
    %693 = tpu.matmul %690, %488, %cst_211 {dimension_numbers = #tpu.dot_dimension_numbers<[1], [0], [0], [1], [0, 0, 1, 1], [], []>} : vector<2x32xf32>, vector<32x128xf32>, vector<2x128xf32> -> vector<2x128xf32>
    %694 = arith.addf %692, %693 : vector<2x128xf32>
    %695 = vector.extract_strided_slice %694 {offsets = [0, 0], sizes = [2, 32], strides = [1, 1]} : vector<2x128xf32> to vector<2x32xf32>
    %696 = arith.negf %695 : vector<2x32xf32>
    %697 = math.exp %696 : vector<2x32xf32>
    %cst_212 = arith.constant 1.000000e+00 : f32
    %698 = vector.broadcast %cst_212 : f32 to vector<2x32xf32>
    %699 = arith.addf %698, %697 : vector<2x32xf32>
    %700 = arith.divf %698, %699 : vector<2x32xf32>
    %701 = vector.extract_strided_slice %694 {offsets = [0, 32], sizes = [2, 32], strides = [1, 1]} : vector<2x128xf32> to vector<2x32xf32>
    %702 = arith.negf %701 : vector<2x32xf32>
    %703 = math.exp %702 : vector<2x32xf32>
    %cst_213 = arith.constant 1.000000e+00 : f32
    %704 = vector.broadcast %cst_213 : f32 to vector<2x32xf32>
    %705 = arith.addf %704, %703 : vector<2x32xf32>
    %706 = arith.divf %704, %705 : vector<2x32xf32>
    %707 = vector.extract_strided_slice %694 {offsets = [0, 64], sizes = [2, 32], strides = [1, 1]} : vector<2x128xf32> to vector<2x32xf32>
    %708 = math.tanh %707 : vector<2x32xf32>
    %709 = vector.extract_strided_slice %694 {offsets = [0, 96], sizes = [2, 32], strides = [1, 1]} : vector<2x128xf32> to vector<2x32xf32>
    %710 = arith.negf %709 : vector<2x32xf32>
    %711 = math.exp %710 : vector<2x32xf32>
    %cst_214 = arith.constant 1.000000e+00 : f32
    %712 = vector.broadcast %cst_214 : f32 to vector<2x32xf32>
    %713 = arith.addf %712, %711 : vector<2x32xf32>
    %714 = arith.divf %712, %713 : vector<2x32xf32>
    %715 = arith.mulf %706, %688 : vector<2x32xf32>
    %716 = arith.mulf %700, %708 : vector<2x32xf32>
    %717 = arith.addf %715, %716 : vector<2x32xf32>
    %718 = math.tanh %717 : vector<2x32xf32>
    %719 = arith.mulf %714, %718 : vector<2x32xf32>
    %c14_215 = arith.constant 14 : index
    %c0_216 = arith.constant 0 : index
    %720 = vector.load %arg19[%c14_215, %c0_216] : memref<16x32xf32, #tpu.memory_space<vmem>>, vector<2x32xf32>
    tpu.vector_store %arg19[%c14_215, %c0_216], %719 {strides = array<i32>} : memref<16x32xf32, #tpu.memory_space<vmem>>, vector<2x32xf32>,
    %c0_217 = arith.constant 0 : index
    %c0_218 = arith.constant 0 : index
    %721 = vector.load %arg19[%c0_217, %c0_218] : memref<16x32xf32, #tpu.memory_space<vmem>>, vector<16x32xf32>
    %c0_219 = arith.constant 0 : index
    %c0_220 = arith.constant 0 : index
    %722 = vector.load %arg10[%c0_219, %c0_220] : memref<32x128xf32, #tpu.memory_space<vmem>>, vector<32x128xf32>
    %cst_221 = arith.constant dense<0.000000e+00> : vector<16x128xf32>
    %723 = tpu.matmul %721, %722, %cst_221 {dimension_numbers = #tpu.dot_dimension_numbers<[1], [0], [0], [1], [0, 0, 1, 1], [], []>} : vector<16x32xf32>, vector<32x128xf32>, vector<16x128xf32> -> vector<16x128xf32>
    %c0_222 = arith.constant 0 : index
    %c0_223 = arith.constant 0 : index
    %724 = vector.load %arg12[%c0_222, %c0_223] : memref<1x128xf32, #tpu.memory_space<vmem>>, vector<1x128xf32>
    %725 = vector.broadcast %724 : vector<1x128xf32> to vector<16x128xf32>
    %726 = arith.addf %723, %725 : vector<16x128xf32>
    %c0_224 = arith.constant 0 : index
    %c0_225 = arith.constant 0 : index
    %727 = vector.load %arg18[%c0_224, %c0_225] : memref<16x128xf32, #tpu.memory_space<vmem>>, vector<16x128xf32>
    tpu.vector_store %arg18[%c0_224, %c0_225], %726 {strides = array<i32>} : memref<16x128xf32, #tpu.memory_space<vmem>>, vector<16x128xf32>,
    %c0_226 = arith.constant 0 : index
    %c0_227 = arith.constant 0 : index
    %728 = vector.load %arg11[%c0_226, %c0_227] : memref<32x128xf32, #tpu.memory_space<vmem>>, vector<32x128xf32>
    %c0_228 = arith.constant 0 : index
    %c0_229 = arith.constant 0 : index
    %729 = vector.load %arg18[%c0_228, %c0_229] : memref<16x128xf32, #tpu.memory_space<vmem>>, vector<2x128xf32>
    %cst_230 = arith.constant dense<0.000000e+00> : vector<2x128xf32>
    %730 = tpu.matmul %479, %728, %cst_230 {dimension_numbers = #tpu.dot_dimension_numbers<[1], [0], [0], [1], [0, 0, 1, 1], [], []>} : vector<2x32xf32>, vector<32x128xf32>, vector<2x128xf32> -> vector<2x128xf32>
    %731 = arith.addf %729, %730 : vector<2x128xf32>
    %732 = vector.extract_strided_slice %731 {offsets = [0, 0], sizes = [2, 32], strides = [1, 1]} : vector<2x128xf32> to vector<2x32xf32>
    %733 = arith.negf %732 : vector<2x32xf32>
    %734 = math.exp %733 : vector<2x32xf32>
    %cst_231 = arith.constant 1.000000e+00 : f32
    %735 = vector.broadcast %cst_231 : f32 to vector<2x32xf32>
    %736 = arith.addf %735, %734 : vector<2x32xf32>
    %737 = arith.divf %735, %736 : vector<2x32xf32>
    %738 = vector.extract_strided_slice %731 {offsets = [0, 32], sizes = [2, 32], strides = [1, 1]} : vector<2x128xf32> to vector<2x32xf32>
    %739 = arith.negf %738 : vector<2x32xf32>
    %740 = math.exp %739 : vector<2x32xf32>
    %cst_232 = arith.constant 1.000000e+00 : f32
    %741 = vector.broadcast %cst_232 : f32 to vector<2x32xf32>
    %742 = arith.addf %741, %740 : vector<2x32xf32>
    %743 = arith.divf %741, %742 : vector<2x32xf32>
    %744 = vector.extract_strided_slice %731 {offsets = [0, 64], sizes = [2, 32], strides = [1, 1]} : vector<2x128xf32> to vector<2x32xf32>
    %745 = math.tanh %744 : vector<2x32xf32>
    %746 = vector.extract_strided_slice %731 {offsets = [0, 96], sizes = [2, 32], strides = [1, 1]} : vector<2x128xf32> to vector<2x32xf32>
    %747 = arith.negf %746 : vector<2x32xf32>
    %748 = math.exp %747 : vector<2x32xf32>
    %cst_233 = arith.constant 1.000000e+00 : f32
    %749 = vector.broadcast %cst_233 : f32 to vector<2x32xf32>
    %750 = arith.addf %749, %748 : vector<2x32xf32>
    %751 = arith.divf %749, %750 : vector<2x32xf32>
    %752 = arith.mulf %743, %477 : vector<2x32xf32>
    %753 = arith.mulf %737, %745 : vector<2x32xf32>
    %754 = arith.addf %752, %753 : vector<2x32xf32>
    %755 = math.tanh %754 : vector<2x32xf32>
    %756 = arith.mulf %751, %755 : vector<2x32xf32>
    %c2_234 = arith.constant 2 : index
    %c0_235 = arith.constant 0 : index
    %757 = vector.load %arg18[%c2_234, %c0_235] : memref<16x128xf32, #tpu.memory_space<vmem>>, vector<2x128xf32>
    %cst_236 = arith.constant dense<0.000000e+00> : vector<2x128xf32>
    %758 = tpu.matmul %756, %728, %cst_236 {dimension_numbers = #tpu.dot_dimension_numbers<[1], [0], [0], [1], [0, 0, 1, 1], [], []>} : vector<2x32xf32>, vector<32x128xf32>, vector<2x128xf32> -> vector<2x128xf32>
    %759 = arith.addf %757, %758 : vector<2x128xf32>
    %760 = vector.extract_strided_slice %759 {offsets = [0, 0], sizes = [2, 32], strides = [1, 1]} : vector<2x128xf32> to vector<2x32xf32>
    %761 = arith.negf %760 : vector<2x32xf32>
    %762 = math.exp %761 : vector<2x32xf32>
    %cst_237 = arith.constant 1.000000e+00 : f32
    %763 = vector.broadcast %cst_237 : f32 to vector<2x32xf32>
    %764 = arith.addf %763, %762 : vector<2x32xf32>
    %765 = arith.divf %763, %764 : vector<2x32xf32>
    %766 = vector.extract_strided_slice %759 {offsets = [0, 32], sizes = [2, 32], strides = [1, 1]} : vector<2x128xf32> to vector<2x32xf32>
    %767 = arith.negf %766 : vector<2x32xf32>
    %768 = math.exp %767 : vector<2x32xf32>
    %cst_238 = arith.constant 1.000000e+00 : f32
    %769 = vector.broadcast %cst_238 : f32 to vector<2x32xf32>
    %770 = arith.addf %769, %768 : vector<2x32xf32>
    %771 = arith.divf %769, %770 : vector<2x32xf32>
    %772 = vector.extract_strided_slice %759 {offsets = [0, 64], sizes = [2, 32], strides = [1, 1]} : vector<2x128xf32> to vector<2x32xf32>
    %773 = math.tanh %772 : vector<2x32xf32>
    %774 = vector.extract_strided_slice %759 {offsets = [0, 96], sizes = [2, 32], strides = [1, 1]} : vector<2x128xf32> to vector<2x32xf32>
    %775 = arith.negf %774 : vector<2x32xf32>
    %776 = math.exp %775 : vector<2x32xf32>
    %cst_239 = arith.constant 1.000000e+00 : f32
    %777 = vector.broadcast %cst_239 : f32 to vector<2x32xf32>
    %778 = arith.addf %777, %776 : vector<2x32xf32>
    %779 = arith.divf %777, %778 : vector<2x32xf32>
    %780 = arith.mulf %771, %754 : vector<2x32xf32>
    %781 = arith.mulf %765, %773 : vector<2x32xf32>
    %782 = arith.addf %780, %781 : vector<2x32xf32>
    %783 = math.tanh %782 : vector<2x32xf32>
    %784 = arith.mulf %779, %783 : vector<2x32xf32>
    %c4_240 = arith.constant 4 : index
    %c0_241 = arith.constant 0 : index
    %785 = vector.load %arg18[%c4_240, %c0_241] : memref<16x128xf32, #tpu.memory_space<vmem>>, vector<2x128xf32>
    %cst_242 = arith.constant dense<0.000000e+00> : vector<2x128xf32>
    %786 = tpu.matmul %784, %728, %cst_242 {dimension_numbers = #tpu.dot_dimension_numbers<[1], [0], [0], [1], [0, 0, 1, 1], [], []>} : vector<2x32xf32>, vector<32x128xf32>, vector<2x128xf32> -> vector<2x128xf32>
    %787 = arith.addf %785, %786 : vector<2x128xf32>
    %788 = vector.extract_strided_slice %787 {offsets = [0, 0], sizes = [2, 32], strides = [1, 1]} : vector<2x128xf32> to vector<2x32xf32>
    %789 = arith.negf %788 : vector<2x32xf32>
    %790 = math.exp %789 : vector<2x32xf32>
    %cst_243 = arith.constant 1.000000e+00 : f32
    %791 = vector.broadcast %cst_243 : f32 to vector<2x32xf32>
    %792 = arith.addf %791, %790 : vector<2x32xf32>
    %793 = arith.divf %791, %792 : vector<2x32xf32>
    %794 = vector.extract_strided_slice %787 {offsets = [0, 32], sizes = [2, 32], strides = [1, 1]} : vector<2x128xf32> to vector<2x32xf32>
    %795 = arith.negf %794 : vector<2x32xf32>
    %796 = math.exp %795 : vector<2x32xf32>
    %cst_244 = arith.constant 1.000000e+00 : f32
    %797 = vector.broadcast %cst_244 : f32 to vector<2x32xf32>
    %798 = arith.addf %797, %796 : vector<2x32xf32>
    %799 = arith.divf %797, %798 : vector<2x32xf32>
    %800 = vector.extract_strided_slice %787 {offsets = [0, 64], sizes = [2, 32], strides = [1, 1]} : vector<2x128xf32> to vector<2x32xf32>
    %801 = math.tanh %800 : vector<2x32xf32>
    %802 = vector.extract_strided_slice %787 {offsets = [0, 96], sizes = [2, 32], strides = [1, 1]} : vector<2x128xf32> to vector<2x32xf32>
    %803 = arith.negf %802 : vector<2x32xf32>
    %804 = math.exp %803 : vector<2x32xf32>
    %cst_245 = arith.constant 1.000000e+00 : f32
    %805 = vector.broadcast %cst_245 : f32 to vector<2x32xf32>
    %806 = arith.addf %805, %804 : vector<2x32xf32>
    %807 = arith.divf %805, %806 : vector<2x32xf32>
    %808 = arith.mulf %799, %782 : vector<2x32xf32>
    %809 = arith.mulf %793, %801 : vector<2x32xf32>
    %810 = arith.addf %808, %809 : vector<2x32xf32>
    %811 = math.tanh %810 : vector<2x32xf32>
    %812 = arith.mulf %807, %811 : vector<2x32xf32>
    %c6_246 = arith.constant 6 : index
    %c0_247 = arith.constant 0 : index
    %813 = vector.load %arg18[%c6_246, %c0_247] : memref<16x128xf32, #tpu.memory_space<vmem>>, vector<2x128xf32>
    %cst_248 = arith.constant dense<0.000000e+00> : vector<2x128xf32>
    %814 = tpu.matmul %812, %728, %cst_248 {dimension_numbers = #tpu.dot_dimension_numbers<[1], [0], [0], [1], [0, 0, 1, 1], [], []>} : vector<2x32xf32>, vector<32x128xf32>, vector<2x128xf32> -> vector<2x128xf32>
    %815 = arith.addf %813, %814 : vector<2x128xf32>
    %816 = vector.extract_strided_slice %815 {offsets = [0, 0], sizes = [2, 32], strides = [1, 1]} : vector<2x128xf32> to vector<2x32xf32>
    %817 = arith.negf %816 : vector<2x32xf32>
    %818 = math.exp %817 : vector<2x32xf32>
    %cst_249 = arith.constant 1.000000e+00 : f32
    %819 = vector.broadcast %cst_249 : f32 to vector<2x32xf32>
    %820 = arith.addf %819, %818 : vector<2x32xf32>
    %821 = arith.divf %819, %820 : vector<2x32xf32>
    %822 = vector.extract_strided_slice %815 {offsets = [0, 32], sizes = [2, 32], strides = [1, 1]} : vector<2x128xf32> to vector<2x32xf32>
    %823 = arith.negf %822 : vector<2x32xf32>
    %824 = math.exp %823 : vector<2x32xf32>
    %cst_250 = arith.constant 1.000000e+00 : f32
    %825 = vector.broadcast %cst_250 : f32 to vector<2x32xf32>
    %826 = arith.addf %825, %824 : vector<2x32xf32>
    %827 = arith.divf %825, %826 : vector<2x32xf32>
    %828 = vector.extract_strided_slice %815 {offsets = [0, 64], sizes = [2, 32], strides = [1, 1]} : vector<2x128xf32> to vector<2x32xf32>
    %829 = math.tanh %828 : vector<2x32xf32>
    %830 = vector.extract_strided_slice %815 {offsets = [0, 96], sizes = [2, 32], strides = [1, 1]} : vector<2x128xf32> to vector<2x32xf32>
    %831 = arith.negf %830 : vector<2x32xf32>
    %832 = math.exp %831 : vector<2x32xf32>
    %cst_251 = arith.constant 1.000000e+00 : f32
    %833 = vector.broadcast %cst_251 : f32 to vector<2x32xf32>
    %834 = arith.addf %833, %832 : vector<2x32xf32>
    %835 = arith.divf %833, %834 : vector<2x32xf32>
    %836 = arith.mulf %827, %810 : vector<2x32xf32>
    %837 = arith.mulf %821, %829 : vector<2x32xf32>
    %838 = arith.addf %836, %837 : vector<2x32xf32>
    %839 = math.tanh %838 : vector<2x32xf32>
    %840 = arith.mulf %835, %839 : vector<2x32xf32>
    %c8_252 = arith.constant 8 : index
    %c0_253 = arith.constant 0 : index
    %841 = vector.load %arg18[%c8_252, %c0_253] : memref<16x128xf32, #tpu.memory_space<vmem>>, vector<2x128xf32>
    %cst_254 = arith.constant dense<0.000000e+00> : vector<2x128xf32>
    %842 = tpu.matmul %840, %728, %cst_254 {dimension_numbers = #tpu.dot_dimension_numbers<[1], [0], [0], [1], [0, 0, 1, 1], [], []>} : vector<2x32xf32>, vector<32x128xf32>, vector<2x128xf32> -> vector<2x128xf32>
    %843 = arith.addf %841, %842 : vector<2x128xf32>
    %844 = vector.extract_strided_slice %843 {offsets = [0, 0], sizes = [2, 32], strides = [1, 1]} : vector<2x128xf32> to vector<2x32xf32>
    %845 = arith.negf %844 : vector<2x32xf32>
    %846 = math.exp %845 : vector<2x32xf32>
    %cst_255 = arith.constant 1.000000e+00 : f32
    %847 = vector.broadcast %cst_255 : f32 to vector<2x32xf32>
    %848 = arith.addf %847, %846 : vector<2x32xf32>
    %849 = arith.divf %847, %848 : vector<2x32xf32>
    %850 = vector.extract_strided_slice %843 {offsets = [0, 32], sizes = [2, 32], strides = [1, 1]} : vector<2x128xf32> to vector<2x32xf32>
    %851 = arith.negf %850 : vector<2x32xf32>
    %852 = math.exp %851 : vector<2x32xf32>
    %cst_256 = arith.constant 1.000000e+00 : f32
    %853 = vector.broadcast %cst_256 : f32 to vector<2x32xf32>
    %854 = arith.addf %853, %852 : vector<2x32xf32>
    %855 = arith.divf %853, %854 : vector<2x32xf32>
    %856 = vector.extract_strided_slice %843 {offsets = [0, 64], sizes = [2, 32], strides = [1, 1]} : vector<2x128xf32> to vector<2x32xf32>
    %857 = math.tanh %856 : vector<2x32xf32>
    %858 = vector.extract_strided_slice %843 {offsets = [0, 96], sizes = [2, 32], strides = [1, 1]} : vector<2x128xf32> to vector<2x32xf32>
    %859 = arith.negf %858 : vector<2x32xf32>
    %860 = math.exp %859 : vector<2x32xf32>
    %cst_257 = arith.constant 1.000000e+00 : f32
    %861 = vector.broadcast %cst_257 : f32 to vector<2x32xf32>
    %862 = arith.addf %861, %860 : vector<2x32xf32>
    %863 = arith.divf %861, %862 : vector<2x32xf32>
    %864 = arith.mulf %855, %838 : vector<2x32xf32>
    %865 = arith.mulf %849, %857 : vector<2x32xf32>
    %866 = arith.addf %864, %865 : vector<2x32xf32>
    %867 = math.tanh %866 : vector<2x32xf32>
    %868 = arith.mulf %863, %867 : vector<2x32xf32>
    %c10_258 = arith.constant 10 : index
    %c0_259 = arith.constant 0 : index
    %869 = vector.load %arg18[%c10_258, %c0_259] : memref<16x128xf32, #tpu.memory_space<vmem>>, vector<2x128xf32>
    %cst_260 = arith.constant dense<0.000000e+00> : vector<2x128xf32>
    %870 = tpu.matmul %868, %728, %cst_260 {dimension_numbers = #tpu.dot_dimension_numbers<[1], [0], [0], [1], [0, 0, 1, 1], [], []>} : vector<2x32xf32>, vector<32x128xf32>, vector<2x128xf32> -> vector<2x128xf32>
    %871 = arith.addf %869, %870 : vector<2x128xf32>
    %872 = vector.extract_strided_slice %871 {offsets = [0, 0], sizes = [2, 32], strides = [1, 1]} : vector<2x128xf32> to vector<2x32xf32>
    %873 = arith.negf %872 : vector<2x32xf32>
    %874 = math.exp %873 : vector<2x32xf32>
    %cst_261 = arith.constant 1.000000e+00 : f32
    %875 = vector.broadcast %cst_261 : f32 to vector<2x32xf32>
    %876 = arith.addf %875, %874 : vector<2x32xf32>
    %877 = arith.divf %875, %876 : vector<2x32xf32>
    %878 = vector.extract_strided_slice %871 {offsets = [0, 32], sizes = [2, 32], strides = [1, 1]} : vector<2x128xf32> to vector<2x32xf32>
    %879 = arith.negf %878 : vector<2x32xf32>
    %880 = math.exp %879 : vector<2x32xf32>
    %cst_262 = arith.constant 1.000000e+00 : f32
    %881 = vector.broadcast %cst_262 : f32 to vector<2x32xf32>
    %882 = arith.addf %881, %880 : vector<2x32xf32>
    %883 = arith.divf %881, %882 : vector<2x32xf32>
    %884 = vector.extract_strided_slice %871 {offsets = [0, 64], sizes = [2, 32], strides = [1, 1]} : vector<2x128xf32> to vector<2x32xf32>
    %885 = math.tanh %884 : vector<2x32xf32>
    %886 = vector.extract_strided_slice %871 {offsets = [0, 96], sizes = [2, 32], strides = [1, 1]} : vector<2x128xf32> to vector<2x32xf32>
    %887 = arith.negf %886 : vector<2x32xf32>
    %888 = math.exp %887 : vector<2x32xf32>
    %cst_263 = arith.constant 1.000000e+00 : f32
    %889 = vector.broadcast %cst_263 : f32 to vector<2x32xf32>
    %890 = arith.addf %889, %888 : vector<2x32xf32>
    %891 = arith.divf %889, %890 : vector<2x32xf32>
    %892 = arith.mulf %883, %866 : vector<2x32xf32>
    %893 = arith.mulf %877, %885 : vector<2x32xf32>
    %894 = arith.addf %892, %893 : vector<2x32xf32>
    %895 = math.tanh %894 : vector<2x32xf32>
    %896 = arith.mulf %891, %895 : vector<2x32xf32>
    %c12_264 = arith.constant 12 : index
    %c0_265 = arith.constant 0 : index
    %897 = vector.load %arg18[%c12_264, %c0_265] : memref<16x128xf32, #tpu.memory_space<vmem>>, vector<2x128xf32>
    %cst_266 = arith.constant dense<0.000000e+00> : vector<2x128xf32>
    %898 = tpu.matmul %896, %728, %cst_266 {dimension_numbers = #tpu.dot_dimension_numbers<[1], [0], [0], [1], [0, 0, 1, 1], [], []>} : vector<2x32xf32>, vector<32x128xf32>, vector<2x128xf32> -> vector<2x128xf32>
    %899 = arith.addf %897, %898 : vector<2x128xf32>
    %900 = vector.extract_strided_slice %899 {offsets = [0, 0], sizes = [2, 32], strides = [1, 1]} : vector<2x128xf32> to vector<2x32xf32>
    %901 = arith.negf %900 : vector<2x32xf32>
    %902 = math.exp %901 : vector<2x32xf32>
    %cst_267 = arith.constant 1.000000e+00 : f32
    %903 = vector.broadcast %cst_267 : f32 to vector<2x32xf32>
    %904 = arith.addf %903, %902 : vector<2x32xf32>
    %905 = arith.divf %903, %904 : vector<2x32xf32>
    %906 = vector.extract_strided_slice %899 {offsets = [0, 32], sizes = [2, 32], strides = [1, 1]} : vector<2x128xf32> to vector<2x32xf32>
    %907 = arith.negf %906 : vector<2x32xf32>
    %908 = math.exp %907 : vector<2x32xf32>
    %cst_268 = arith.constant 1.000000e+00 : f32
    %909 = vector.broadcast %cst_268 : f32 to vector<2x32xf32>
    %910 = arith.addf %909, %908 : vector<2x32xf32>
    %911 = arith.divf %909, %910 : vector<2x32xf32>
    %912 = vector.extract_strided_slice %899 {offsets = [0, 64], sizes = [2, 32], strides = [1, 1]} : vector<2x128xf32> to vector<2x32xf32>
    %913 = math.tanh %912 : vector<2x32xf32>
    %914 = vector.extract_strided_slice %899 {offsets = [0, 96], sizes = [2, 32], strides = [1, 1]} : vector<2x128xf32> to vector<2x32xf32>
    %915 = arith.negf %914 : vector<2x32xf32>
    %916 = math.exp %915 : vector<2x32xf32>
    %cst_269 = arith.constant 1.000000e+00 : f32
    %917 = vector.broadcast %cst_269 : f32 to vector<2x32xf32>
    %918 = arith.addf %917, %916 : vector<2x32xf32>
    %919 = arith.divf %917, %918 : vector<2x32xf32>
    %920 = arith.mulf %911, %894 : vector<2x32xf32>
    %921 = arith.mulf %905, %913 : vector<2x32xf32>
    %922 = arith.addf %920, %921 : vector<2x32xf32>
    %923 = math.tanh %922 : vector<2x32xf32>
    %924 = arith.mulf %919, %923 : vector<2x32xf32>
    %c14_270 = arith.constant 14 : index
    %c0_271 = arith.constant 0 : index
    %925 = vector.load %arg18[%c14_270, %c0_271] : memref<16x128xf32, #tpu.memory_space<vmem>>, vector<2x128xf32>
    %cst_272 = arith.constant dense<0.000000e+00> : vector<2x128xf32>
    %926 = tpu.matmul %924, %728, %cst_272 {dimension_numbers = #tpu.dot_dimension_numbers<[1], [0], [0], [1], [0, 0, 1, 1], [], []>} : vector<2x32xf32>, vector<32x128xf32>, vector<2x128xf32> -> vector<2x128xf32>
    %927 = arith.addf %925, %926 : vector<2x128xf32>
    %928 = vector.extract_strided_slice %927 {offsets = [0, 0], sizes = [2, 32], strides = [1, 1]} : vector<2x128xf32> to vector<2x32xf32>
    %929 = arith.negf %928 : vector<2x32xf32>
    %930 = math.exp %929 : vector<2x32xf32>
    %cst_273 = arith.constant 1.000000e+00 : f32
    %931 = vector.broadcast %cst_273 : f32 to vector<2x32xf32>
    %932 = arith.addf %931, %930 : vector<2x32xf32>
    %933 = arith.divf %931, %932 : vector<2x32xf32>
    %934 = vector.extract_strided_slice %927 {offsets = [0, 32], sizes = [2, 32], strides = [1, 1]} : vector<2x128xf32> to vector<2x32xf32>
    %935 = arith.negf %934 : vector<2x32xf32>
    %936 = math.exp %935 : vector<2x32xf32>
    %cst_274 = arith.constant 1.000000e+00 : f32
    %937 = vector.broadcast %cst_274 : f32 to vector<2x32xf32>
    %938 = arith.addf %937, %936 : vector<2x32xf32>
    %939 = arith.divf %937, %938 : vector<2x32xf32>
    %940 = vector.extract_strided_slice %927 {offsets = [0, 64], sizes = [2, 32], strides = [1, 1]} : vector<2x128xf32> to vector<2x32xf32>
    %941 = math.tanh %940 : vector<2x32xf32>
    %942 = vector.extract_strided_slice %927 {offsets = [0, 96], sizes = [2, 32], strides = [1, 1]} : vector<2x128xf32> to vector<2x32xf32>
    %943 = arith.negf %942 : vector<2x32xf32>
    %944 = math.exp %943 : vector<2x32xf32>
    %cst_275 = arith.constant 1.000000e+00 : f32
    %945 = vector.broadcast %cst_275 : f32 to vector<2x32xf32>
    %946 = arith.addf %945, %944 : vector<2x32xf32>
    %947 = arith.divf %945, %946 : vector<2x32xf32>
    %948 = arith.mulf %939, %922 : vector<2x32xf32>
    %949 = arith.mulf %933, %941 : vector<2x32xf32>
    %950 = arith.addf %948, %949 : vector<2x32xf32>
    %951 = math.tanh %950 : vector<2x32xf32>
    %952 = arith.mulf %947, %951 : vector<2x32xf32>
    %c0_276 = arith.constant 0 : index
    %c0_277 = arith.constant 0 : index
    %953 = vector.load %arg13[%c0_276, %c0_277] : memref<32x32xf32, #tpu.memory_space<vmem>>, vector<32x32xf32>
    %cst_278 = arith.constant dense<0.000000e+00> : vector<2x32xf32>
    %954 = tpu.matmul %952, %953, %cst_278 {dimension_numbers = #tpu.dot_dimension_numbers<[1], [0], [0], [1], [0, 0, 1, 1], [], []>} : vector<2x32xf32>, vector<32x32xf32>, vector<2x32xf32> -> vector<2x32xf32>
    %c0_279 = arith.constant 0 : index
    %c0_280 = arith.constant 0 : index
    %955 = vector.load %arg14[%c0_279, %c0_280] : memref<1x32xf32, #tpu.memory_space<vmem>>, vector<1x32xf32>
    %956 = vector.broadcast %955 : vector<1x32xf32> to vector<2x32xf32>
    %957 = arith.addf %954, %956 : vector<2x32xf32>
    %cst_281 = arith.constant 0.000000e+00 : f32
    %958 = vector.broadcast %cst_281 : f32 to vector<2x32xf32>
    %959 = arith.maximumf %957, %958 : vector<2x32xf32>
    %c0_282 = arith.constant 0 : index
    %c0_283 = arith.constant 0 : index
    %960 = vector.load %arg15[%c0_282, %c0_283] : memref<32x16xf32, #tpu.memory_space<vmem>>, vector<32x16xf32>
    %cst_284 = arith.constant dense<0.000000e+00> : vector<2x16xf32>
    %961 = tpu.matmul %959, %960, %cst_284 {dimension_numbers = #tpu.dot_dimension_numbers<[1], [0], [0], [1], [0, 0, 1, 1], [], []>} : vector<2x32xf32>, vector<32x16xf32>, vector<2x16xf32> -> vector<2x16xf32>
    %c0_285 = arith.constant 0 : index
    %c0_286 = arith.constant 0 : index
    %962 = vector.load %arg16[%c0_285, %c0_286] : memref<1x16xf32, #tpu.memory_space<vmem>>, vector<1x16xf32>
    %963 = vector.broadcast %962 : vector<1x16xf32> to vector<2x16xf32>
    %964 = arith.addf %961, %963 : vector<2x16xf32>
    %c0_287 = arith.constant 0 : index
    %c0_288 = arith.constant 0 : index
    %965 = vector.load %arg17[%c0_287, %c0_288] : memref<2x16xf32, #tpu.memory_space<vmem>>, vector<2x16xf32>
    tpu.vector_store %arg17[%c0_287, %c0_288], %964 {strides = array<i32>} : memref<2x16xf32, #tpu.memory_space<vmem>>, vector<2x16xf32>,
    return
  }
}

</mosaic_0001>

<llo_original>
// kernel: lstm_model_forward.1
$region0: #{lstm_model_forward.1}
  #allocation0 [shape = 'u32[]', space=smem, size = 0x4, offset = 0x4, fixed_abs, tag = 'smem constant byte address 0x4 - core index']
  #allocation1 [shape = 'u32[72,128]{1,0:T(1,128)}', space=vmem, size = 0x9000, scoped, tag = 'internal scratch']
  #allocation2 [shape = 'f32[16,128]{1,0:T(8,128)}', space=vmem, size = 0x2000, scoped, tag = 'scratch operand']
  #allocation3 [shape = 'f32[16,32]{1,0:T(8,128)}', space=vmem, size = 0x2000, scoped, tag = 'scratch operand']
  #allocation4 [shape = 'f32[16,32]{1,0:T(8,128)}', space=vmem, size = 0x2000, scoped, tag = 'scratch operand']
  %s0 = inlined_call_operand.vmem [shape: f32[16,16], index: 0, kind: input, shape index: {}]
  %s1 = inlined_call_operand.hbm [shape: f32[16,128], index: 1, kind: input, shape index: {}]
  %s2 = inlined_call_operand.vmem [shape: f32[32,128], index: 2, kind: input, shape index: {}]
  %s3 = inlined_call_operand.hbm [shape: f32[1,128], index: 3, kind: input, shape index: {}]
  %s4 = inlined_call_operand.vmem [shape: f32[32,128], index: 4, kind: input, shape index: {}]
  %s5 = inlined_call_operand.hbm [shape: f32[32,128], index: 5, kind: input, shape index: {}]
  %s6 = inlined_call_operand.hbm [shape: f32[1,128], index: 6, kind: input, shape index: {}]
  %s7 = inlined_call_operand.hbm [shape: f32[32,128], index: 7, kind: input, shape index: {}]
  %s8 = inlined_call_operand.hbm [shape: f32[32,128], index: 8, kind: input, shape index: {}]
  %s9 = inlined_call_operand.hbm [shape: f32[1,128], index: 9, kind: input, shape index: {}]
  %s10 = inlined_call_operand.hbm [shape: f32[32,128], index: 10, kind: input, shape index: {}]
  %s11 = inlined_call_operand.vmem [shape: f32[32,128], index: 11, kind: input, shape index: {}]
  %s12 = inlined_call_operand.hbm [shape: f32[1,128], index: 12, kind: input, shape index: {}]
  %s13 = inlined_call_operand.hbm [shape: f32[32,32], index: 13, kind: input, shape index: {}]
  %s14 = inlined_call_operand.hbm [shape: f32[1,32], index: 14, kind: input, shape index: {}]
  %s15 = inlined_call_operand.vmem [shape: f32[32,16], index: 15, kind: input, shape index: {}]
  %s16 = inlined_call_operand.hbm [shape: f32[1,16], index: 16, kind: input, shape index: {}]
  %s17 = inlined_call_operand.hbm [shape: f32[2,16], index: 17, kind: output, shape index: {}]
  %s18 = sld [smem:[#allocation0]]
  $region126: #{lstm_model_forward.1} parent=0
    _
  %s20 = ssub.s32 1, %s18
  %s21 = scalar_select 0, %s20, %s18
  $region1: #{lstm_model_forward.1} parent=0
    #allocation5 [shape = 'u8[8192]{0}', space=vmem, size = 0x2000, scoped, tag = 'input window, operand 1, single buffered']
    #allocation6 [shape = 's32[1]{0}', space=sflag, size = 0x4, scoped, tag = 'scoped memory for lstm_model_forward.1']
    #allocation7 [shape = 's32[1]{0}', space=sflag, size = 0x4, scoped, tag = 'scoped memory for lstm_model_forward.1']
    #allocation8 [shape = 'u8[512]{0}', space=vmem, size = 0x400, scoped, tag = 'input window, operand 3, single buffered']
    #allocation9 [shape = 's32[1]{0}', space=sflag, size = 0x4, scoped, tag = 'scoped memory for lstm_model_forward.1']
    #allocation10 [shape = 'u8[16384]{0}', space=vmem, size = 0x4000, scoped, tag = 'input window, operand 5, single buffered']
    #allocation11 [shape = 'u8[512]{0}', space=vmem, size = 0x400, scoped, tag = 'input window, operand 6, single buffered']
    #allocation12 [shape = 's32[1]{0}', space=sflag, size = 0x4, scoped, tag = 'scoped memory for lstm_model_forward.1']
    #allocation13 [shape = 'u8[16384]{0}', space=vmem, size = 0x4000, scoped, tag = 'input window, operand 7, single buffered']
    #allocation14 [shape = 'u8[16384]{0}', space=vmem, size = 0x4000, scoped, tag = 'input window, operand 8, single buffered']
    #allocation15 [shape = 's32[1]{0}', space=sflag, size = 0x4, scoped, tag = 'scoped memory for lstm_model_forward.1']
    #allocation16 [shape = 'u8[512]{0}', space=vmem, size = 0x400, scoped, tag = 'input window, operand 9, single buffered']
    #allocation17 [shape = 'u8[16384]{0}', space=vmem, size = 0x4000, scoped, tag = 'input window, operand 10, single buffered']
    #allocation18 [shape = 's32[1]{0}', space=sflag, size = 0x4, scoped, tag = 'scoped memory for lstm_model_forward.1']
    #allocation19 [shape = 'u8[512]{0}', space=vmem, size = 0x400, scoped, tag = 'input window, operand 12, single buffered']
    #allocation20 [shape = 'u8[16384]{0}', space=vmem, size = 0x4000, scoped, tag = 'input window, operand 13, single buffered']
    #allocation21 [shape = 's32[1]{0}', space=sflag, size = 0x4, scoped, tag = 'scoped memory for lstm_model_forward.1']
    #allocation22 [shape = 'u8[512]{0}', space=vmem, size = 0x400, scoped, tag = 'input window, operand 14, single buffered']
    #allocation23 [shape = 'u8[512]{0}', space=vmem, size = 0x400, scoped, tag = 'input window, operand 16, single buffered']
    #allocation24 [shape = 's32[1]{0}', space=sflag, size = 0x4, scoped, tag = 'scoped memory for lstm_model_forward.1']
    #allocation25 [shape = 'u8[1024]{0}', space=vmem, size = 0x400, scoped, tag = 'output window, operand 0, single buffered']
    %22 = vsyncpa [#allocation6], 0
    %23 = vsyncpa [#allocation9], 0
    %24 = vsyncpa [#allocation12], 0
    %25 = vsyncpa [#allocation15], 0
    %26 = vsyncpa [#allocation18], 0
    %27 = vsyncpa [#allocation21], 0
    %28 = vsyncpa [#allocation24], 0
    %29 = vsyncpa [#allocation7], 0
    // Predicated region
    $region2: #{lstm_model_forward.1} parent=1 // pred_check
      _
    $region3: #{lstm_model_forward.1} parent=1 // pred_check_branch
      %31 = sbr.rel (0) target = $region5
    $region4: #{lstm_model_forward.1} parent=1 // pred_region
      _
    $region5: #{lstm_model_forward.1} parent=1 // pred_fallthru
      _
    // Predicated region
    $region6: #{lstm_model_forward.1} parent=1 // pred_check
      _
    $region7: #{lstm_model_forward.1} parent=1 // pred_check_branch
      %33 = sbr.rel (0) target = $region9
    $region8: #{lstm_model_forward.1} parent=1 // pred_region
      %35 = vsyncadd [#allocation6], 0
      %s36 = sshll.u32 %s1, 4
      %s37 = int_to_ptr.hbm [resolvable:$true] %s36
      %s38 = sshll.u32 [#allocation5], 4
      %s39 = int_to_ptr.vmem [resolvable:$true] %s38
      %44 = dma.hbm_to_vmem [thread:$0]  %s37, 256, %s39, [#allocation6], 128, 128, 8
    $region9: #{lstm_model_forward.1} parent=1 // pred_fallthru
      _
    // Predicated region
    $region10: #{lstm_model_forward.1} parent=1 // pred_check
      _
    $region11: #{lstm_model_forward.1} parent=1 // pred_check_branch
      %46 = sbr.rel (0) target = $region13
    $region12: #{lstm_model_forward.1} parent=1 // pred_region
      _
    $region13: #{lstm_model_forward.1} parent=1 // pred_fallthru
      _
    // Predicated region
    $region14: #{lstm_model_forward.1} parent=1 // pred_check
      _
    $region15: #{lstm_model_forward.1} parent=1 // pred_check_branch
      %48 = sbr.rel (0) target = $region17
    $region16: #{lstm_model_forward.1} parent=1 // pred_region
      %50 = vsyncadd [#allocation9], 0
      %s52 = sshll.u32 %s3, 4
      %s53 = int_to_ptr.hbm [resolvable:$true] %s52
      %s54 = sshll.u32 [#allocation8], 4
      %s55 = int_to_ptr.vmem [resolvable:$true] %s54
      %57 = dma.hbm_to_vmem [thread:$0]  %s53, 16, %s55, [#allocation9]
    $region17: #{lstm_model_forward.1} parent=1 // pred_fallthru
      _
    // Predicated region
    $region18: #{lstm_model_forward.1} parent=1 // pred_check
      _
    $region19: #{lstm_model_forward.1} parent=1 // pred_check_branch
      %59 = sbr.rel (0) target = $region21
    $region20: #{lstm_model_forward.1} parent=1 // pred_region
      _
    $region21: #{lstm_model_forward.1} parent=1 // pred_fallthru
      _
    // Predicated region
    $region22: #{lstm_model_forward.1} parent=1 // pred_check
      _
    $region23: #{lstm_model_forward.1} parent=1 // pred_check_branch
      %61 = sbr.rel (0) target = $region25
    $region24: #{lstm_model_forward.1} parent=1 // pred_region
      %63 = vsyncadd [#allocation9], 0
      %s64 = sshll.u32 %s5, 4
      %s65 = int_to_ptr.hbm [resolvable:$true] %s64
      %s66 = sshll.u32 [#allocation10], 4
      %s67 = int_to_ptr.vmem [resolvable:$true] %s66
      %72 = dma.hbm_to_vmem [thread:$0]  %s65, 512, %s67, [#allocation9], 128, 128, 8
    $region25: #{lstm_model_forward.1} parent=1 // pred_fallthru
      _
    // Predicated region
    $region26: #{lstm_model_forward.1} parent=1 // pred_check
      _
    $region27: #{lstm_model_forward.1} parent=1 // pred_check_branch
      %74 = sbr.rel (0) target = $region29
    $region28: #{lstm_model_forward.1} parent=1 // pred_region
      %76 = vsyncadd [#allocation12], 0
      %s78 = sshll.u32 %s6, 4
      %s79 = int_to_ptr.hbm [resolvable:$true] %s78
      %s80 = sshll.u32 [#allocation11], 4
      %s81 = int_to_ptr.vmem [resolvable:$true] %s80
      %83 = dma.hbm_to_vmem [thread:$0]  %s79, 16, %s81, [#allocation12]
    $region29: #{lstm_model_forward.1} parent=1 // pred_fallthru
      _
    // Predicated region
    $region30: #{lstm_model_forward.1} parent=1 // pred_check
      _
    $region31: #{lstm_model_forward.1} parent=1 // pred_check_branch
      %85 = sbr.rel (0) target = $region33
    $region32: #{lstm_model_forward.1} parent=1 // pred_region
      %87 = vsyncadd [#allocation12], 0
      %s88 = sshll.u32 %s7, 4
      %s89 = int_to_ptr.hbm [resolvable:$true] %s88
      %s90 = sshll.u32 [#allocation13], 4
      %s91 = int_to_ptr.vmem [resolvable:$true] %s90
      %96 = dma.hbm_to_vmem [thread:$0]  %s89, 512, %s91, [#allocation12], 128, 128, 8
    $region33: #{lstm_model_forward.1} parent=1 // pred_fallthru
      _
    // Predicated region
    $region34: #{lstm_model_forward.1} parent=1 // pred_check
      _
    $region35: #{lstm_model_forward.1} parent=1 // pred_check_branch
      %98 = sbr.rel (0) target = $region37
    $region36: #{lstm_model_forward.1} parent=1 // pred_region
      %100 = vsyncadd [#allocation15], 0
      %s101 = sshll.u32 %s8, 4
      %s102 = int_to_ptr.hbm [resolvable:$true] %s101
      %s103 = sshll.u32 [#allocation14], 4
      %s104 = int_to_ptr.vmem [resolvable:$true] %s103
      %109 = dma.hbm_to_vmem [thread:$0]  %s102, 512, %s104, [#allocation15], 128, 128, 8
    $region37: #{lstm_model_forward.1} parent=1 // pred_fallthru
      _
    // Predicated region
    $region38: #{lstm_model_forward.1} parent=1 // pred_check
      _
    $region39: #{lstm_model_forward.1} parent=1 // pred_check_branch
      %111 = sbr.rel (0) target = $region41
    $region40: #{lstm_model_forward.1} parent=1 // pred_region
      %113 = vsyncadd [#allocation15], 0
      %s115 = sshll.u32 %s9, 4
      %s116 = int_to_ptr.hbm [resolvable:$true] %s115
      %s117 = sshll.u32 [#allocation16], 4
      %s118 = int_to_ptr.vmem [resolvable:$true] %s117
      %120 = dma.hbm_to_vmem [thread:$0]  %s116, 16, %s118, [#allocation15]
    $region41: #{lstm_model_forward.1} parent=1 // pred_fallthru
      _
    // Predicated region
    $region42: #{lstm_model_forward.1} parent=1 // pred_check
      _
    $region43: #{lstm_model_forward.1} parent=1 // pred_check_branch
      %122 = sbr.rel (0) target = $region45
    $region44: #{lstm_model_forward.1} parent=1 // pred_region
      %124 = vsyncadd [#allocation18], 0
      %s125 = sshll.u32 %s10, 4
      %s126 = int_to_ptr.hbm [resolvable:$true] %s125
      %s127 = sshll.u32 [#allocation17], 4
      %s128 = int_to_ptr.vmem [resolvable:$true] %s127
      %133 = dma.hbm_to_vmem [thread:$0]  %s126, 512, %s128, [#allocation18], 128, 128, 8
    $region45: #{lstm_model_forward.1} parent=1 // pred_fallthru
      _
    // Predicated region
    $region46: #{lstm_model_forward.1} parent=1 // pred_check
      _
    $region47: #{lstm_model_forward.1} parent=1 // pred_check_branch
      %135 = sbr.rel (0) target = $region49
    $region48: #{lstm_model_forward.1} parent=1 // pred_region
      _
    $region49: #{lstm_model_forward.1} parent=1 // pred_fallthru
      _
    // Predicated region
    $region50: #{lstm_model_forward.1} parent=1 // pred_check
      _
    $region51: #{lstm_model_forward.1} parent=1 // pred_check_branch
      %137 = sbr.rel (0) target = $region53
    $region52: #{lstm_model_forward.1} parent=1 // pred_region
      %139 = vsyncadd [#allocation18], 0
      %s141 = sshll.u32 %s12, 4
      %s142 = int_to_ptr.hbm [resolvable:$true] %s141
      %s143 = sshll.u32 [#allocation19], 4
      %s144 = int_to_ptr.vmem [resolvable:$true] %s143
      %146 = dma.hbm_to_vmem [thread:$0]  %s142, 16, %s144, [#allocation18]
    $region53: #{lstm_model_forward.1} parent=1 // pred_fallthru
      _
    // Predicated region
    $region54: #{lstm_model_forward.1} parent=1 // pred_check
      _
    $region55: #{lstm_model_forward.1} parent=1 // pred_check_branch
      %148 = sbr.rel (0) target = $region57
    $region56: #{lstm_model_forward.1} parent=1 // pred_region
      %150 = vsyncadd [#allocation21], 0
      %s151 = sshll.u32 %s13, 4
      %s152 = int_to_ptr.hbm [resolvable:$true] %s151
      %s153 = sshll.u32 [#allocation20], 4
      %s154 = int_to_ptr.vmem [resolvable:$true] %s153
      %159 = dma.hbm_to_vmem [thread:$0]  %s152, 512, %s154, [#allocation21], 128, 128, 8
    $region57: #{lstm_model_forward.1} parent=1 // pred_fallthru
      _
    // Predicated region
    $region58: #{lstm_model_forward.1} parent=1 // pred_check
      _
    $region59: #{lstm_model_forward.1} parent=1 // pred_check_branch
      %161 = sbr.rel (0) target = $region61
    $region60: #{lstm_model_forward.1} parent=1 // pred_region
      %163 = vsyncadd [#allocation21], 0
      %s165 = sshll.u32 %s14, 4
      %s166 = int_to_ptr.hbm [resolvable:$true] %s165
      %s167 = sshll.u32 [#allocation22], 4
      %s168 = int_to_ptr.vmem [resolvable:$true] %s167
      %170 = dma.hbm_to_vmem [thread:$0]  %s166, 16, %s168, [#allocation21]
    $region61: #{lstm_model_forward.1} parent=1 // pred_fallthru
      _
    // Predicated region
    $region62: #{lstm_model_forward.1} parent=1 // pred_check
      _
    $region63: #{lstm_model_forward.1} parent=1 // pred_check_branch
      %172 = sbr.rel (0) target = $region65
    $region64: #{lstm_model_forward.1} parent=1 // pred_region
      _
    $region65: #{lstm_model_forward.1} parent=1 // pred_fallthru
      _
    // Predicated region
    $region66: #{lstm_model_forward.1} parent=1 // pred_check
      _
    $region67: #{lstm_model_forward.1} parent=1 // pred_check_branch
      %174 = sbr.rel (0) target = $region69
    $region68: #{lstm_model_forward.1} parent=1 // pred_region
      %176 = vsyncadd [#allocation24], 0
      %s178 = sshll.u32 %s16, 4
      %s179 = int_to_ptr.hbm [resolvable:$true] %s178
      %s180 = sshll.u32 [#allocation23], 4
      %s181 = int_to_ptr.vmem [resolvable:$true] %s180
      %183 = dma.hbm_to_vmem [thread:$0]  %s179, 16, %s181, [#allocation24]
    $region69: #{lstm_model_forward.1} parent=1 // pred_fallthru
      _
    // Predicated region
    $region70: #{lstm_model_forward.1} parent=1 // pred_check
      _
    $region71: #{lstm_model_forward.1} parent=1 // pred_check_branch
      %185 = sbr.rel (0) target = $region73
    $region72: #{lstm_model_forward.1} parent=1 // pred_region
      %187 = dma.done [#allocation6], 256
    $region73: #{lstm_model_forward.1} parent=1 // pred_fallthru
      _
    // Predicated region
    $region74: #{lstm_model_forward.1} parent=1 // pred_check
      _
    $region75: #{lstm_model_forward.1} parent=1 // pred_check_branch
      %189 = sbr.rel (0) target = $region77
    $region76: #{lstm_model_forward.1} parent=1 // pred_region
      %191 = dma.done [#allocation9], 16
    $region77: #{lstm_model_forward.1} parent=1 // pred_fallthru
      _
    // Predicated region
    $region78: #{lstm_model_forward.1} parent=1 // pred_check
      _
    $region79: #{lstm_model_forward.1} parent=1 // pred_check_branch
      %193 = sbr.rel (0) target = $region81
    $region80: #{lstm_model_forward.1} parent=1 // pred_region
      %195 = dma.done [#allocation9], 512
    $region81: #{lstm_model_forward.1} parent=1 // pred_fallthru
      _
    // Predicated region
    $region82: #{lstm_model_forward.1} parent=1 // pred_check
      _
    $region83: #{lstm_model_forward.1} parent=1 // pred_check_branch
      %197 = sbr.rel (0) target = $region85
    $region84: #{lstm_model_forward.1} parent=1 // pred_region
      %199 = dma.done [#allocation12], 16
    $region85: #{lstm_model_forward.1} parent=1 // pred_fallthru
      _
    // Predicated region
    $region86: #{lstm_model_forward.1} parent=1 // pred_check
      _
    $region87: #{lstm_model_forward.1} parent=1 // pred_check_branch
      %201 = sbr.rel (0) target = $region89
    $region88: #{lstm_model_forward.1} parent=1 // pred_region
      %203 = dma.done [#allocation12], 512
    $region89: #{lstm_model_forward.1} parent=1 // pred_fallthru
      _
    // Predicated region
    $region90: #{lstm_model_forward.1} parent=1 // pred_check
      _
    $region91: #{lstm_model_forward.1} parent=1 // pred_check_branch
      %205 = sbr.rel (0) target = $region93
    $region92: #{lstm_model_forward.1} parent=1 // pred_region
      %207 = dma.done [#allocation15], 512
    $region93: #{lstm_model_forward.1} parent=1 // pred_fallthru
      _
    // Predicated region
    $region94: #{lstm_model_forward.1} parent=1 // pred_check
      _
    $region95: #{lstm_model_forward.1} parent=1 // pred_check_branch
      %209 = sbr.rel (0) target = $region97
    $region96: #{lstm_model_forward.1} parent=1 // pred_region
      %211 = dma.done [#allocation15], 16
    $region97: #{lstm_model_forward.1} parent=1 // pred_fallthru
      _
    // Predicated region
    $region98: #{lstm_model_forward.1} parent=1 // pred_check
      _
    $region99: #{lstm_model_forward.1} parent=1 // pred_check_branch
      %213 = sbr.rel (0) target = $region101
    $region100: #{lstm_model_forward.1} parent=1 // pred_region
      %215 = dma.done [#allocation18], 512
    $region101: #{lstm_model_forward.1} parent=1 // pred_fallthru
      _
    // Predicated region
    $region102: #{lstm_model_forward.1} parent=1 // pred_check
      _
    $region103: #{lstm_model_forward.1} parent=1 // pred_check_branch
      %217 = sbr.rel (0) target = $region105
    $region104: #{lstm_model_forward.1} parent=1 // pred_region
      %219 = dma.done [#allocation18], 16
    $region105: #{lstm_model_forward.1} parent=1 // pred_fallthru
      _
    // Predicated region
    $region106: #{lstm_model_forward.1} parent=1 // pred_check
      _
    $region107: #{lstm_model_forward.1} parent=1 // pred_check_branch
      %221 = sbr.rel (0) target = $region109
    $region108: #{lstm_model_forward.1} parent=1 // pred_region
      %223 = dma.done [#allocation21], 512
    $region109: #{lstm_model_forward.1} parent=1 // pred_fallthru
      _
    // Predicated region
    $region110: #{lstm_model_forward.1} parent=1 // pred_check
      _
    $region111: #{lstm_model_forward.1} parent=1 // pred_check_branch
      %225 = sbr.rel (0) target = $region113
    $region112: #{lstm_model_forward.1} parent=1 // pred_region
      %227 = dma.done [#allocation21], 16
    $region113: #{lstm_model_forward.1} parent=1 // pred_fallthru
      _
    // Predicated region
    $region114: #{lstm_model_forward.1} parent=1 // pred_check
      _
    $region115: #{lstm_model_forward.1} parent=1 // pred_check_branch
      %229 = sbr.rel (0) target = $region117
    $region116: #{lstm_model_forward.1} parent=1 // pred_region
      %231 = dma.done [#allocation24], 16
    $region117: #{lstm_model_forward.1} parent=1 // pred_fallthru
      _
    %v232 = vld [vmem:[%s0] sm:$0xff]
    %v233 = vld [vmem:[%s0 + $0x8] sm:$0xff]
    %v234 = vld [vmem:[#allocation5] sm:$0xff]
    %v235 = vld [vmem:[#allocation5 + $0x8] sm:$0xff]
    %v236 = vld [vmem:[#allocation8] sm:$0x1]
    %v238 = vperm.slane %v236, 0
    %vm240 = vcmask 130048
    %v242 = vsel %vm240, %v232, 0
    %v245 = vsel %vm240, %v233, 0
    %247 = vmatpush.msra.mxu0 0.0
    %248 = vmatpush.msra.mxu0 0.0
    %249 = vmatpush.msra.mxu0 0.0
    %250 = vmatpush.msra.mxu0 0.0
    %251 = vmatpush.msra.mxu0 0.0
    %252 = vmatpush.msra.mxu0 0.0
    %253 = vmatpush.msra.mxu0 0.0
    %254 = vmatpush.msra.mxu0 0.0
    %255 = vmatpush.msra.mxu0 0.0
    %256 = vmatpush.msra.mxu0 0.0
    %257 = vmatpush.msra.mxu0 0.0
    %258 = vmatpush.msra.mxu0 0.0
    %259 = vmatpush.msra.mxu0 0.0
    %260 = vmatpush.msra.mxu0 0.0
    %261 = vmatpush.msra.mxu0 %v235
    %262 = vmatpush.msra.mxu0 %v234
    %263 = vmatmul.f32.gmra.mxu0 %v242
    %v264 = vpop.f32.mrf.mxu0
    %v265 = vadd.f32 %v238, %v264
    %266 = vmatmul.f32.gmra.mxu0 %v245
    %v267 = vpop.f32.mrf.mxu0
    %v268 = vadd.f32 %v238, %v267
    %269 = vdwg.mxu0
    %270 = vst [vmem:[#allocation2] sm:$0xff] %v265
    %271 = vst [vmem:[#allocation2 + $0x8] sm:$0xff] %v268
    %v272 = vld [vmem:[%s2] sm:$0xff]
    %v273 = vld [vmem:[%s2 + $0x8] sm:$0xff]
    %v274 = vld [vmem:[%s2 + $0x10] sm:$0xff]
    %v275 = vld [vmem:[%s2 + $0x18] sm:$0xff]
    %v276 = vld [vmem:[#allocation2] sm:$0x3]
    %vm277 = vcmask 261120
    %v279 = vsel %vm277, 0.0, 0
    %281 = vmatpush.msra.mxu0 0.0
    %282 = vmatpush.msra.mxu0 0.0
    %283 = vmatpush.msra.mxu0 0.0
    %284 = vmatpush.msra.mxu0 0.0
    %285 = vmatpush.msra.mxu0 0.0
    %286 = vmatpush.msra.mxu0 0.0
    %287 = vmatpush.msra.mxu0 0.0
    %288 = vmatpush.msra.mxu0 0.0
    %289 = vmatpush.msra.mxu0 0.0
    %290 = vmatpush.msra.mxu0 0.0
    %291 = vmatpush.msra.mxu0 0.0
    %292 = vmatpush.msra.mxu0 0.0
    %293 = vmatpush.msra.mxu0 %v275
    %294 = vmatpush.msra.mxu0 %v274
    %295 = vmatpush.msra.mxu0 %v273
    %296 = vmatpush.msra.mxu0 %v272
    %297 = vmatmul.f32.gmra.mxu0 %v279
    %v298 = vpop.f32.mrf.mxu0
    %v299 = vadd.f32 0.0, %v298
    %300 = vdwg.mxu0
    %v301 = vadd.f32 %v276, %v299
    %v302 = vxor.u32 %v301, 2147483648
    %v303 = vmul.f32 %v302, 1.442695
    %v304 = vpow.pop %v303
    %v305 = vadd.f32 %v304, 1.0
    %v306 = vrcp.pop %v305
    %v307 = vmul.f32 %v305, %v306
    %v308 = vsub.f32 1.0, %v307
    %v309 = vmul.f32 %v306, %v308
    %v310 = vadd.f32 %v306, %v309
    %vm311 = vweird.f32 %v305
    %vm312 = vweird.f32 %v306
    %vm313 = vmor %vm311, %vm312
    %v314 = vsel %vm313, %v306, %v310
    %v315 = vand.u32 2147483647, %v305
    %vm316 = vcmp.eq.f32.partialorder %v315, 8.507059e+37
    %v317 = vand.u32 %v305, 2147483648
    %v318 = vor.u32 1.1754944e-38, %v317
    %v319 = vsel %vm316, %v318, %v314
    %v320 = vmul.f32 1.0, %v319
    %v321 = vtanh.pop %v301
    %v322 = vmul.f32 %v320, 0.0
    %324 = vrot.lane.b32.xlu0 %v321, 64
    %v325 = vpop.permute.xlu0 %324
    %v327 = vmul.f32 %v320, %v325
    %329 = vrot.lane.b32.xlu0 %v327, 32
    %v330 = vpop.permute.xlu0 %329
    %v332 = vadd.f32 %v322, %v330
    %v333 = vtanh.pop %v332
    %335 = vrot.lane.b32.xlu0 %v333, 64
    %v336 = vpop.permute.xlu0 %335
    %v338 = vmul.f32 %v320, %v336
    %340 = vrot.lane.b32.xlu0 %v338, 32
    %v341 = vpop.permute.xlu0 %340
    %vm343 = vcmask 254976
    %344 = vst.msk [vmem:[#allocation3] sm:$0x3] %vm343, %v341
    %v345 = vld [vmem:[#allocation2 + $0x2] sm:$0x3]
    %v346 = vsel %vm277, %v341, 0
    %348 = vmatpush.msra.mxu0 0.0
    %349 = vmatpush.msra.mxu0 0.0
    %350 = vmatpush.msra.mxu0 0.0
    %351 = vmatpush.msra.mxu0 0.0
    %352 = vmatpush.msra.mxu0 0.0
    %353 = vmatpush.msra.mxu0 0.0
    %354 = vmatpush.msra.mxu0 0.0
    %355 = vmatpush.msra.mxu0 0.0
    %356 = vmatpush.msra.mxu0 0.0
    %357 = vmatpush.msra.mxu0 0.0
    %358 = vmatpush.msra.mxu0 0.0
    %359 = vmatpush.msra.mxu0 0.0
    %360 = vmatpush.msra.mxu0 %v275
    %361 = vmatpush.msra.mxu0 %v274
    %362 = vmatpush.msra.mxu0 %v273
    %363 = vmatpush.msra.mxu0 %v272
    %364 = vmatmul.f32.gmra.mxu0 %v346
    %v365 = vpop.f32.mrf.mxu0
    %v366 = vadd.f32 0.0, %v365
    %367 = vdwg.mxu0
    %v368 = vadd.f32 %v345, %v366
    %v369 = vxor.u32 %v368, 2147483648
    %v370 = vmul.f32 %v369, 1.442695
    %v371 = vpow.pop %v370
    %v372 = vadd.f32 %v371, 1.0
    %v373 = vrcp.pop %v372
    %v374 = vmul.f32 %v372, %v373
    %v375 = vsub.f32 1.0, %v374
    %v376 = vmul.f32 %v373, %v375
    %v377 = vadd.f32 %v373, %v376
    %vm378 = vweird.f32 %v372
    %vm379 = vweird.f32 %v373
    %vm380 = vmor %vm378, %vm379
    %v381 = vsel %vm380, %v373, %v377
    %v382 = vand.u32 2147483647, %v372
    %vm383 = vcmp.eq.f32.partialorder %v382, 8.507059e+37
    %v384 = vand.u32 %v372, 2147483648
    %v385 = vor.u32 1.1754944e-38, %v384
    %v386 = vsel %vm383, %v385, %v381
    %v387 = vmul.f32 1.0, %v386
    %v388 = vtanh.pop %v368
    %v389 = vmul.f32 %v387, %v332
    %391 = vrot.lane.b32.xlu0 %v388, 64
    %v392 = vpop.permute.xlu0 %391
    %v394 = vmul.f32 %v387, %v392
    %396 = vrot.lane.b32.xlu0 %v394, 32
    %v397 = vpop.permute.xlu0 %396
    %v399 = vadd.f32 %v389, %v397
    %v400 = vtanh.pop %v399
    %402 = vrot.lane.b32.xlu0 %v400, 64
    %v403 = vpop.permute.xlu0 %402
    %v405 = vmul.f32 %v387, %v403
    %407 = vrot.lane.b32.xlu0 %v405, 32
    %v408 = vpop.permute.xlu0 %407
    %410 = vst.msk [vmem:[#allocation3 + $0x2] sm:$0x3] %vm343, %v408
    %v411 = vld [vmem:[#allocation2 + $0x4] sm:$0x3]
    %v412 = vsel %vm277, %v408, 0
    %414 = vmatpush.msra.mxu0 0.0
    %415 = vmatpush.msra.mxu0 0.0
    %416 = vmatpush.msra.mxu0 0.0
    %417 = vmatpush.msra.mxu0 0.0
    %418 = vmatpush.msra.mxu0 0.0
    %419 = vmatpush.msra.mxu0 0.0
    %420 = vmatpush.msra.mxu0 0.0
    %421 = vmatpush.msra.mxu0 0.0
    %422 = vmatpush.msra.mxu0 0.0
    %423 = vmatpush.msra.mxu0 0.0
    %424 = vmatpush.msra.mxu0 0.0
    %425 = vmatpush.msra.mxu0 0.0
    %426 = vmatpush.msra.mxu0 %v275
    %427 = vmatpush.msra.mxu0 %v274
    %428 = vmatpush.msra.mxu0 %v273
    %429 = vmatpush.msra.mxu0 %v272
    %430 = vmatmul.f32.gmra.mxu0 %v412
    %v431 = vpop.f32.mrf.mxu0
    %v432 = vadd.f32 0.0, %v431
    %433 = vdwg.mxu0
    %v434 = vadd.f32 %v411, %v432
    %v435 = vxor.u32 %v434, 2147483648
    %v436 = vmul.f32 %v435, 1.442695
    %v437 = vpow.pop %v436
    %v438 = vadd.f32 %v437, 1.0
    %v439 = vrcp.pop %v438
    %v440 = vmul.f32 %v438, %v439
    %v441 = vsub.f32 1.0, %v440
    %v442 = vmul.f32 %v439, %v441
    %v443 = vadd.f32 %v439, %v442
    %vm444 = vweird.f32 %v438
    %vm445 = vweird.f32 %v439
    %vm446 = vmor %vm444, %vm445
    %v447 = vsel %vm446, %v439, %v443
    %v448 = vand.u32 2147483647, %v438
    %vm449 = vcmp.eq.f32.partialorder %v448, 8.507059e+37
    %v450 = vand.u32 %v438, 2147483648
    %v451 = vor.u32 1.1754944e-38, %v450
    %v452 = vsel %vm449, %v451, %v447
    %v453 = vmul.f32 1.0, %v452
    %v454 = vtanh.pop %v434
    %v455 = vmul.f32 %v453, %v399
    %457 = vrot.lane.b32.xlu0 %v454, 64
    %v458 = vpop.permute.xlu0 %457
    %v460 = vmul.f32 %v453, %v458
    %462 = vrot.lane.b32.xlu0 %v460, 32
    %v463 = vpop.permute.xlu0 %462
    %v465 = vadd.f32 %v455, %v463
    %v466 = vtanh.pop %v465
    %468 = vrot.lane.b32.xlu0 %v466, 64
    %v469 = vpop.permute.xlu0 %468
    %v471 = vmul.f32 %v453, %v469
    %473 = vrot.lane.b32.xlu0 %v471, 32
    %v474 = vpop.permute.xlu0 %473
    %476 = vst.msk [vmem:[#allocation3 + $0x4] sm:$0x3] %vm343, %v474
    %v477 = vld [vmem:[#allocation2 + $0x6] sm:$0x3]
    %v478 = vsel %vm277, %v474, 0
    %480 = vmatpush.msra.mxu0 0.0
    %481 = vmatpush.msra.mxu0 0.0
    %482 = vmatpush.msra.mxu0 0.0
    %483 = vmatpush.msra.mxu0 0.0
    %484 = vmatpush.msra.mxu0 0.0
    %485 = vmatpush.msra.mxu0 0.0
    %486 = vmatpush.msra.mxu0 0.0
    %487 = vmatpush.msra.mxu0 0.0
    %488 = vmatpush.msra.mxu0 0.0
    %489 = vmatpush.msra.mxu0 0.0
    %490 = vmatpush.msra.mxu0 0.0
    %491 = vmatpush.msra.mxu0 0.0
    %492 = vmatpush.msra.mxu0 %v275
    %493 = vmatpush.msra.mxu0 %v274
    %494 = vmatpush.msra.mxu0 %v273
    %495 = vmatpush.msra.mxu0 %v272
    %496 = vmatmul.f32.gmra.mxu0 %v478
    %v497 = vpop.f32.mrf.mxu0
    %v498 = vadd.f32 0.0, %v497
    %499 = vdwg.mxu0
    %v500 = vadd.f32 %v477, %v498
    %v501 = vxor.u32 %v500, 2147483648
    %v502 = vmul.f32 %v501, 1.442695
    %v503 = vpow.pop %v502
    %v504 = vadd.f32 %v503, 1.0
    %v505 = vrcp.pop %v504
    %v506 = vmul.f32 %v504, %v505
    %v507 = vsub.f32 1.0, %v506
    %v508 = vmul.f32 %v505, %v507
    %v509 = vadd.f32 %v505, %v508
    %vm510 = vweird.f32 %v504
    %vm511 = vweird.f32 %v505
    %vm512 = vmor %vm510, %vm511
    %v513 = vsel %vm512, %v505, %v509
    %v514 = vand.u32 2147483647, %v504
    %vm515 = vcmp.eq.f32.partialorder %v514, 8.507059e+37
    %v516 = vand.u32 %v504, 2147483648
    %v517 = vor.u32 1.1754944e-38, %v516
    %v518 = vsel %vm515, %v517, %v513
    %v519 = vmul.f32 1.0, %v518
    %v520 = vtanh.pop %v500
    %v521 = vmul.f32 %v519, %v465
    %523 = vrot.lane.b32.xlu0 %v520, 64
    %v524 = vpop.permute.xlu0 %523
    %v526 = vmul.f32 %v519, %v524
    %528 = vrot.lane.b32.xlu0 %v526, 32
    %v529 = vpop.permute.xlu0 %528
    %v531 = vadd.f32 %v521, %v529
    %v532 = vtanh.pop %v531
    %534 = vrot.lane.b32.xlu0 %v532, 64
    %v535 = vpop.permute.xlu0 %534
    %v537 = vmul.f32 %v519, %v535
    %539 = vrot.lane.b32.xlu0 %v537, 32
    %v540 = vpop.permute.xlu0 %539
    %542 = vst.msk [vmem:[#allocation3 + $0x6] sm:$0x3] %vm343, %v540
    %v543 = vld [vmem:[#allocation2 + $0x8] sm:$0x3]
    %v544 = vsel %vm277, %v540, 0
    %546 = vmatpush.msra.mxu0 0.0
    %547 = vmatpush.msra.mxu0 0.0
    %548 = vmatpush.msra.mxu0 0.0
    %549 = vmatpush.msra.mxu0 0.0
    %550 = vmatpush.msra.mxu0 0.0
    %551 = vmatpush.msra.mxu0 0.0
    %552 = vmatpush.msra.mxu0 0.0
    %553 = vmatpush.msra.mxu0 0.0
    %554 = vmatpush.msra.mxu0 0.0
    %555 = vmatpush.msra.mxu0 0.0
    %556 = vmatpush.msra.mxu0 0.0
    %557 = vmatpush.msra.mxu0 0.0
    %558 = vmatpush.msra.mxu0 %v275
    %559 = vmatpush.msra.mxu0 %v274
    %560 = vmatpush.msra.mxu0 %v273
    %561 = vmatpush.msra.mxu0 %v272
    %562 = vmatmul.f32.gmra.mxu0 %v544
    %v563 = vpop.f32.mrf.mxu0
    %v564 = vadd.f32 0.0, %v563
    %565 = vdwg.mxu0
    %v566 = vadd.f32 %v543, %v564
    %v567 = vxor.u32 %v566, 2147483648
    %v568 = vmul.f32 %v567, 1.442695
    %v569 = vpow.pop %v568
    %v570 = vadd.f32 %v569, 1.0
    %v571 = vrcp.pop %v570
    %v572 = vmul.f32 %v570, %v571
    %v573 = vsub.f32 1.0, %v572
    %v574 = vmul.f32 %v571, %v573
    %v575 = vadd.f32 %v571, %v574
    %vm576 = vweird.f32 %v570
    %vm577 = vweird.f32 %v571
    %vm578 = vmor %vm576, %vm577
    %v579 = vsel %vm578, %v571, %v575
    %v580 = vand.u32 2147483647, %v570
    %vm581 = vcmp.eq.f32.partialorder %v580, 8.507059e+37
    %v582 = vand.u32 %v570, 2147483648
    %v583 = vor.u32 1.1754944e-38, %v582
    %v584 = vsel %vm581, %v583, %v579
    %v585 = vmul.f32 1.0, %v584
    %v586 = vtanh.pop %v566
    %v587 = vmul.f32 %v585, %v531
    %589 = vrot.lane.b32.xlu0 %v586, 64
    %v590 = vpop.permute.xlu0 %589
    %v592 = vmul.f32 %v585, %v590
    %594 = vrot.lane.b32.xlu0 %v592, 32
    %v595 = vpop.permute.xlu0 %594
    %v597 = vadd.f32 %v587, %v595
    %v598 = vtanh.pop %v597
    %600 = vrot.lane.b32.xlu0 %v598, 64
    %v601 = vpop.permute.xlu0 %600
    %v603 = vmul.f32 %v585, %v601
    %605 = vrot.lane.b32.xlu0 %v603, 32
    %v606 = vpop.permute.xlu0 %605
    %608 = vst.msk [vmem:[#allocation3 + $0x8] sm:$0x3] %vm343, %v606
    %v609 = vld [vmem:[#allocation2 + $0xa] sm:$0x3]
    %v610 = vsel %vm277, %v606, 0
    %612 = vmatpush.msra.mxu0 0.0
    %613 = vmatpush.msra.mxu0 0.0
    %614 = vmatpush.msra.mxu0 0.0
    %615 = vmatpush.msra.mxu0 0.0
    %616 = vmatpush.msra.mxu0 0.0
    %617 = vmatpush.msra.mxu0 0.0
    %618 = vmatpush.msra.mxu0 0.0
    %619 = vmatpush.msra.mxu0 0.0
    %620 = vmatpush.msra.mxu0 0.0
    %621 = vmatpush.msra.mxu0 0.0
    %622 = vmatpush.msra.mxu0 0.0
    %623 = vmatpush.msra.mxu0 0.0
    %624 = vmatpush.msra.mxu0 %v275
    %625 = vmatpush.msra.mxu0 %v274
    %626 = vmatpush.msra.mxu0 %v273
    %627 = vmatpush.msra.mxu0 %v272
    %628 = vmatmul.f32.gmra.mxu0 %v610
    %v629 = vpop.f32.mrf.mxu0
    %v630 = vadd.f32 0.0, %v629
    %631 = vdwg.mxu0
    %v632 = vadd.f32 %v609, %v630
    %v633 = vxor.u32 %v632, 2147483648
    %v634 = vmul.f32 %v633, 1.442695
    %v635 = vpow.pop %v634
    %v636 = vadd.f32 %v635, 1.0
    %v637 = vrcp.pop %v636
    %v638 = vmul.f32 %v636, %v637
    %v639 = vsub.f32 1.0, %v638
    %v640 = vmul.f32 %v637, %v639
    %v641 = vadd.f32 %v637, %v640
    %vm642 = vweird.f32 %v636
    %vm643 = vweird.f32 %v637
    %vm644 = vmor %vm642, %vm643
    %v645 = vsel %vm644, %v637, %v641
    %v646 = vand.u32 2147483647, %v636
    %vm647 = vcmp.eq.f32.partialorder %v646, 8.507059e+37
    %v648 = vand.u32 %v636, 2147483648
    %v649 = vor.u32 1.1754944e-38, %v648
    %v650 = vsel %vm647, %v649, %v645
    %v651 = vmul.f32 1.0, %v650
    %v652 = vtanh.pop %v632
    %v653 = vmul.f32 %v651, %v597
    %655 = vrot.lane.b32.xlu0 %v652, 64
    %v656 = vpop.permute.xlu0 %655
    %v658 = vmul.f32 %v651, %v656
    %660 = vrot.lane.b32.xlu0 %v658, 32
    %v661 = vpop.permute.xlu0 %660
    %v663 = vadd.f32 %v653, %v661
    %v664 = vtanh.pop %v663
    %666 = vrot.lane.b32.xlu0 %v664, 64
    %v667 = vpop.permute.xlu0 %666
    %v669 = vmul.f32 %v651, %v667
    %671 = vrot.lane.b32.xlu0 %v669, 32
    %v672 = vpop.permute.xlu0 %671
    %674 = vst.msk [vmem:[#allocation3 + $0xa] sm:$0x3] %vm343, %v672
    %v675 = vld [vmem:[#allocation2 + $0xc] sm:$0x3]
    %v676 = vsel %vm277, %v672, 0
    %678 = vmatpush.msra.mxu0 0.0
    %679 = vmatpush.msra.mxu0 0.0
    %680 = vmatpush.msra.mxu0 0.0
    %681 = vmatpush.msra.mxu0 0.0
    %682 = vmatpush.msra.mxu0 0.0
    %683 = vmatpush.msra.mxu0 0.0
    %684 = vmatpush.msra.mxu0 0.0
    %685 = vmatpush.msra.mxu0 0.0
    %686 = vmatpush.msra.mxu0 0.0
    %687 = vmatpush.msra.mxu0 0.0
    %688 = vmatpush.msra.mxu0 0.0
    %689 = vmatpush.msra.mxu0 0.0
    %690 = vmatpush.msra.mxu0 %v275
    %691 = vmatpush.msra.mxu0 %v274
    %692 = vmatpush.msra.mxu0 %v273
    %693 = vmatpush.msra.mxu0 %v272
    %694 = vmatmul.f32.gmra.mxu0 %v676
    %v695 = vpop.f32.mrf.mxu0
    %v696 = vadd.f32 0.0, %v695
    %697 = vdwg.mxu0
    %v698 = vadd.f32 %v675, %v696
    %v699 = vxor.u32 %v698, 2147483648
    %v700 = vmul.f32 %v699, 1.442695
    %v701 = vpow.pop %v700
    %v702 = vadd.f32 %v701, 1.0
    %v703 = vrcp.pop %v702
    %v704 = vmul.f32 %v702, %v703
    %v705 = vsub.f32 1.0, %v704
    %v706 = vmul.f32 %v703, %v705
    %v707 = vadd.f32 %v703, %v706
    %vm708 = vweird.f32 %v702
    %vm709 = vweird.f32 %v703
    %vm710 = vmor %vm708, %vm709
    %v711 = vsel %vm710, %v703, %v707
    %v712 = vand.u32 2147483647, %v702
    %vm713 = vcmp.eq.f32.partialorder %v712, 8.507059e+37
    %v714 = vand.u32 %v702, 2147483648
    %v715 = vor.u32 1.1754944e-38, %v714
    %v716 = vsel %vm713, %v715, %v711
    %v717 = vmul.f32 1.0, %v716
    %v718 = vtanh.pop %v698
    %v719 = vmul.f32 %v717, %v663
    %721 = vrot.lane.b32.xlu0 %v718, 64
    %v722 = vpop.permute.xlu0 %721
    %v724 = vmul.f32 %v717, %v722
    %726 = vrot.lane.b32.xlu0 %v724, 32
    %v727 = vpop.permute.xlu0 %726
    %v729 = vadd.f32 %v719, %v727
    %v730 = vtanh.pop %v729
    %732 = vrot.lane.b32.xlu0 %v730, 64
    %v733 = vpop.permute.xlu0 %732
    %v735 = vmul.f32 %v717, %v733
    %737 = vrot.lane.b32.xlu0 %v735, 32
    %v738 = vpop.permute.xlu0 %737
    %740 = vst.msk [vmem:[#allocation3 + $0xc] sm:$0x3] %vm343, %v738
    %v741 = vld [vmem:[#allocation2 + $0xe] sm:$0x3]
    %v742 = vsel %vm277, %v738, 0
    %744 = vmatpush.msra.mxu0 0.0
    %745 = vmatpush.msra.mxu0 0.0
    %746 = vmatpush.msra.mxu0 0.0
    %747 = vmatpush.msra.mxu0 0.0
    %748 = vmatpush.msra.mxu0 0.0
    %749 = vmatpush.msra.mxu0 0.0
    %750 = vmatpush.msra.mxu0 0.0
    %751 = vmatpush.msra.mxu0 0.0
    %752 = vmatpush.msra.mxu0 0.0
    %753 = vmatpush.msra.mxu0 0.0
    %754 = vmatpush.msra.mxu0 0.0
    %755 = vmatpush.msra.mxu0 0.0
    %756 = vmatpush.msra.mxu0 %v275
    %757 = vmatpush.msra.mxu0 %v274
    %758 = vmatpush.msra.mxu0 %v273
    %759 = vmatpush.msra.mxu0 %v272
    %760 = vmatmul.f32.gmra.mxu0 %v742
    %v761 = vpop.f32.mrf.mxu0
    %v762 = vadd.f32 0.0, %v761
    %763 = vdwg.mxu0
    %v764 = vadd.f32 %v741, %v762
    %v765 = vxor.u32 %v764, 2147483648
    %v766 = vmul.f32 %v765, 1.442695
    %v767 = vpow.pop %v766
    %v768 = vadd.f32 %v767, 1.0
    %v769 = vrcp.pop %v768
    %v770 = vmul.f32 %v768, %v769
    %v771 = vsub.f32 1.0, %v770
    %v772 = vmul.f32 %v769, %v771
    %v773 = vadd.f32 %v769, %v772
    %vm774 = vweird.f32 %v768
    %vm775 = vweird.f32 %v769
    %vm776 = vmor %vm774, %vm775
    %v777 = vsel %vm776, %v769, %v773
    %v778 = vand.u32 2147483647, %v768
    %vm779 = vcmp.eq.f32.partialorder %v778, 8.507059e+37
    %v780 = vand.u32 %v768, 2147483648
    %v781 = vor.u32 1.1754944e-38, %v780
    %v782 = vsel %vm779, %v781, %v777
    %v783 = vmul.f32 1.0, %v782
    %v784 = vtanh.pop %v764
    %v785 = vmul.f32 %v783, %v729
    %787 = vrot.lane.b32.xlu0 %v784, 64
    %v788 = vpop.permute.xlu0 %787
    %v790 = vmul.f32 %v783, %v788
    %792 = vrot.lane.b32.xlu0 %v790, 32
    %v793 = vpop.permute.xlu0 %792
    %v795 = vadd.f32 %v785, %v793
    %v796 = vtanh.pop %v795
    %798 = vrot.lane.b32.xlu0 %v796, 64
    %v799 = vpop.permute.xlu0 %798
    %v801 = vmul.f32 %v783, %v799
    %803 = vrot.lane.b32.xlu0 %v801, 32
    %v804 = vpop.permute.xlu0 %803
    %806 = vst.msk [vmem:[#allocation3 + $0xe] sm:$0x3] %vm343, %v804
    %v807 = vld [vmem:[#allocation3] sm:$0xff]
    %v808 = vld [vmem:[#allocation3 + $0x8] sm:$0xff]
    %v809 = vld [vmem:[%s4] sm:$0xff]
    %v810 = vld [vmem:[%s4 + $0x8] sm:$0xff]
    %v811 = vld [vmem:[%s4 + $0x10] sm:$0xff]
    %v812 = vld [vmem:[%s4 + $0x18] sm:$0xff]
    %v813 = vld [vmem:[#allocation11] sm:$0x1]
    %v815 = vperm.slane %v813, 0
    %v818 = vsel %vm277, %v807, 0
    %v821 = vsel %vm277, %v808, 0
    %823 = vmatpush.msra.mxu0 0.0
    %824 = vmatpush.msra.mxu0 0.0
    %825 = vmatpush.msra.mxu0 0.0
    %826 = vmatpush.msra.mxu0 0.0
    %827 = vmatpush.msra.mxu0 0.0
    %828 = vmatpush.msra.mxu0 0.0
    %829 = vmatpush.msra.mxu0 0.0
    %830 = vmatpush.msra.mxu0 0.0
    %831 = vmatpush.msra.mxu0 0.0
    %832 = vmatpush.msra.mxu0 0.0
    %833 = vmatpush.msra.mxu0 0.0
    %834 = vmatpush.msra.mxu0 0.0
    %835 = vmatpush.msra.mxu0 %v812
    %836 = vmatpush.msra.mxu0 %v811
    %837 = vmatpush.msra.mxu0 %v810
    %838 = vmatpush.msra.mxu0 %v809
    %839 = vmatmul.f32.gmra.mxu0 %v818
    %v840 = vpop.f32.mrf.mxu0
    %v841 = vadd.f32 %v815, %v840
    %842 = vmatmul.f32.gmra.mxu0 %v821
    %v843 = vpop.f32.mrf.mxu0
    %v844 = vadd.f32 %v815, %v843
    %845 = vdwg.mxu0
    %846 = vst [vmem:[#allocation2] sm:$0xff] %v841
    %847 = vst [vmem:[#allocation2 + $0x8] sm:$0xff] %v844
    %v848 = vld [vmem:[#allocation10] sm:$0xff]
    %v849 = vld [vmem:[#allocation10 + $0x8] sm:$0xff]
    %v850 = vld [vmem:[#allocation10 + $0x10] sm:$0xff]
    %v851 = vld [vmem:[#allocation10 + $0x18] sm:$0xff]
    %v852 = vld [vmem:[#allocation2] sm:$0x3]
    %853 = vmatpush.msra.mxu0 0.0
    %854 = vmatpush.msra.mxu0 0.0
    %855 = vmatpush.msra.mxu0 0.0
    %856 = vmatpush.msra.mxu0 0.0
    %857 = vmatpush.msra.mxu0 0.0
    %858 = vmatpush.msra.mxu0 0.0
    %859 = vmatpush.msra.mxu0 0.0
    %860 = vmatpush.msra.mxu0 0.0
    %861 = vmatpush.msra.mxu0 0.0
    %862 = vmatpush.msra.mxu0 0.0
    %863 = vmatpush.msra.mxu0 0.0
    %864 = vmatpush.msra.mxu0 0.0
    %865 = vmatpush.msra.mxu0 %v851
    %866 = vmatpush.msra.mxu0 %v850
    %867 = vmatpush.msra.mxu0 %v849
    %868 = vmatpush.msra.mxu0 %v848
    %869 = vmatmul.f32.gmra.mxu0 %v279
    %v870 = vpop.f32.mrf.mxu0
    %v871 = vadd.f32 0.0, %v870
    %872 = vdwg.mxu0
    %v873 = vadd.f32 %v852, %v871
    %v874 = vxor.u32 %v873, 2147483648
    %v875 = vmul.f32 %v874, 1.442695
    %v876 = vpow.pop %v875
    %v877 = vadd.f32 %v876, 1.0
    %v878 = vrcp.pop %v877
    %v879 = vmul.f32 %v877, %v878
    %v880 = vsub.f32 1.0, %v879
    %v881 = vmul.f32 %v878, %v880
    %v882 = vadd.f32 %v878, %v881
    %vm883 = vweird.f32 %v877
    %vm884 = vweird.f32 %v878
    %vm885 = vmor %vm883, %vm884
    %v886 = vsel %vm885, %v878, %v882
    %v887 = vand.u32 2147483647, %v877
    %vm888 = vcmp.eq.f32.partialorder %v887, 8.507059e+37
    %v889 = vand.u32 %v877, 2147483648
    %v890 = vor.u32 1.1754944e-38, %v889
    %v891 = vsel %vm888, %v890, %v886
    %v892 = vmul.f32 1.0, %v891
    %v893 = vtanh.pop %v873
    %v894 = vmul.f32 %v892, 0.0
    %896 = vrot.lane.b32.xlu0 %v893, 64
    %v897 = vpop.permute.xlu0 %896
    %v899 = vmul.f32 %v892, %v897
    %901 = vrot.lane.b32.xlu0 %v899, 32
    %v902 = vpop.permute.xlu0 %901
    %v904 = vadd.f32 %v894, %v902
    %v905 = vtanh.pop %v904
    %907 = vrot.lane.b32.xlu0 %v905, 64
    %v908 = vpop.permute.xlu0 %907
    %v910 = vmul.f32 %v892, %v908
    %912 = vrot.lane.b32.xlu0 %v910, 32
    %v913 = vpop.permute.xlu0 %912
    %915 = vst.msk [vmem:[#allocation4] sm:$0x3] %vm343, %v913
    %v916 = vld [vmem:[#allocation2 + $0x2] sm:$0x3]
    %v917 = vsel %vm277, %v913, 0
    %919 = vmatpush.msra.mxu0 0.0
    %920 = vmatpush.msra.mxu0 0.0
    %921 = vmatpush.msra.mxu0 0.0
    %922 = vmatpush.msra.mxu0 0.0
    %923 = vmatpush.msra.mxu0 0.0
    %924 = vmatpush.msra.mxu0 0.0
    %925 = vmatpush.msra.mxu0 0.0
    %926 = vmatpush.msra.mxu0 0.0
    %927 = vmatpush.msra.mxu0 0.0
    %928 = vmatpush.msra.mxu0 0.0
    %929 = vmatpush.msra.mxu0 0.0
    %930 = vmatpush.msra.mxu0 0.0
    %931 = vmatpush.msra.mxu0 %v851
    %932 = vmatpush.msra.mxu0 %v850
    %933 = vmatpush.msra.mxu0 %v849
    %934 = vmatpush.msra.mxu0 %v848
    %935 = vmatmul.f32.gmra.mxu0 %v917
    %v936 = vpop.f32.mrf.mxu0
    %v937 = vadd.f32 0.0, %v936
    %938 = vdwg.mxu0
    %v939 = vadd.f32 %v916, %v937
    %v940 = vxor.u32 %v939, 2147483648
    %v941 = vmul.f32 %v940, 1.442695
    %v942 = vpow.pop %v941
    %v943 = vadd.f32 %v942, 1.0
    %v944 = vrcp.pop %v943
    %v945 = vmul.f32 %v943, %v944
    %v946 = vsub.f32 1.0, %v945
    %v947 = vmul.f32 %v944, %v946
    %v948 = vadd.f32 %v944, %v947
    %vm949 = vweird.f32 %v943
    %vm950 = vweird.f32 %v944
    %vm951 = vmor %vm949, %vm950
    %v952 = vsel %vm951, %v944, %v948
    %v953 = vand.u32 2147483647, %v943
    %vm954 = vcmp.eq.f32.partialorder %v953, 8.507059e+37
    %v955 = vand.u32 %v943, 2147483648
    %v956 = vor.u32 1.1754944e-38, %v955
    %v957 = vsel %vm954, %v956, %v952
    %v958 = vmul.f32 1.0, %v957
    %v959 = vtanh.pop %v939
    %v960 = vmul.f32 %v958, %v904
    %962 = vrot.lane.b32.xlu0 %v959, 64
    %v963 = vpop.permute.xlu0 %962
    %v965 = vmul.f32 %v958, %v963
    %967 = vrot.lane.b32.xlu0 %v965, 32
    %v968 = vpop.permute.xlu0 %967
    %v970 = vadd.f32 %v960, %v968
    %v971 = vtanh.pop %v970
    %973 = vrot.lane.b32.xlu0 %v971, 64
    %v974 = vpop.permute.xlu0 %973
    %v976 = vmul.f32 %v958, %v974
    %978 = vrot.lane.b32.xlu0 %v976, 32
    %v979 = vpop.permute.xlu0 %978
    %981 = vst.msk [vmem:[#allocation4 + $0x2] sm:$0x3] %vm343, %v979
    %v982 = vld [vmem:[#allocation2 + $0x4] sm:$0x3]
    %v983 = vsel %vm277, %v979, 0
    %985 = vmatpush.msra.mxu0 0.0
    %986 = vmatpush.msra.mxu0 0.0
    %987 = vmatpush.msra.mxu0 0.0
    %988 = vmatpush.msra.mxu0 0.0
    %989 = vmatpush.msra.mxu0 0.0
    %990 = vmatpush.msra.mxu0 0.0
    %991 = vmatpush.msra.mxu0 0.0
    %992 = vmatpush.msra.mxu0 0.0
    %993 = vmatpush.msra.mxu0 0.0
    %994 = vmatpush.msra.mxu0 0.0
    %995 = vmatpush.msra.mxu0 0.0
    %996 = vmatpush.msra.mxu0 0.0
    %997 = vmatpush.msra.mxu0 %v851
    %998 = vmatpush.msra.mxu0 %v850
    %999 = vmatpush.msra.mxu0 %v849
    %1000 = vmatpush.msra.mxu0 %v848
    %1001 = vmatmul.f32.gmra.mxu0 %v983
    %v1002 = vpop.f32.mrf.mxu0
    %v1003 = vadd.f32 0.0, %v1002
    %1004 = vdwg.mxu0
    %v1005 = vadd.f32 %v982, %v1003
    %v1006 = vxor.u32 %v1005, 2147483648
    %v1007 = vmul.f32 %v1006, 1.442695
    %v1008 = vpow.pop %v1007
    %v1009 = vadd.f32 %v1008, 1.0
    %v1010 = vrcp.pop %v1009
    %v1011 = vmul.f32 %v1009, %v1010
    %v1012 = vsub.f32 1.0, %v1011
    %v1013 = vmul.f32 %v1010, %v1012
    %v1014 = vadd.f32 %v1010, %v1013
    %vm1015 = vweird.f32 %v1009
    %vm1016 = vweird.f32 %v1010
    %vm1017 = vmor %vm1015, %vm1016
    %v1018 = vsel %vm1017, %v1010, %v1014
    %v1019 = vand.u32 2147483647, %v1009
    %vm1020 = vcmp.eq.f32.partialorder %v1019, 8.507059e+37
    %v1021 = vand.u32 %v1009, 2147483648
    %v1022 = vor.u32 1.1754944e-38, %v1021
    %v1023 = vsel %vm1020, %v1022, %v1018
    %v1024 = vmul.f32 1.0, %v1023
    %v1025 = vtanh.pop %v1005
    %v1026 = vmul.f32 %v1024, %v970
    %1028 = vrot.lane.b32.xlu0 %v1025, 64
    %v1029 = vpop.permute.xlu0 %1028
    %v1031 = vmul.f32 %v1024, %v1029
    %1033 = vrot.lane.b32.xlu0 %v1031, 32
    %v1034 = vpop.permute.xlu0 %1033
    %v1036 = vadd.f32 %v1026, %v1034
    %v1037 = vtanh.pop %v1036
    %1039 = vrot.lane.b32.xlu0 %v1037, 64
    %v1040 = vpop.permute.xlu0 %1039
    %v1042 = vmul.f32 %v1024, %v1040
    %1044 = vrot.lane.b32.xlu0 %v1042, 32
    %v1045 = vpop.permute.xlu0 %1044
    %1047 = vst.msk [vmem:[#allocation4 + $0x4] sm:$0x3] %vm343, %v1045
    %v1048 = vld [vmem:[#allocation2 + $0x6] sm:$0x3]
    %v1049 = vsel %vm277, %v1045, 0
    %1051 = vmatpush.msra.mxu0 0.0
    %1052 = vmatpush.msra.mxu0 0.0
    %1053 = vmatpush.msra.mxu0 0.0
    %1054 = vmatpush.msra.mxu0 0.0
    %1055 = vmatpush.msra.mxu0 0.0
    %1056 = vmatpush.msra.mxu0 0.0
    %1057 = vmatpush.msra.mxu0 0.0
    %1058 = vmatpush.msra.mxu0 0.0
    %1059 = vmatpush.msra.mxu0 0.0
    %1060 = vmatpush.msra.mxu0 0.0
    %1061 = vmatpush.msra.mxu0 0.0
    %1062 = vmatpush.msra.mxu0 0.0
    %1063 = vmatpush.msra.mxu0 %v851
    %1064 = vmatpush.msra.mxu0 %v850
    %1065 = vmatpush.msra.mxu0 %v849
    %1066 = vmatpush.msra.mxu0 %v848
    %1067 = vmatmul.f32.gmra.mxu0 %v1049
    %v1068 = vpop.f32.mrf.mxu0
    %v1069 = vadd.f32 0.0, %v1068
    %1070 = vdwg.mxu0
    %v1071 = vadd.f32 %v1048, %v1069
    %v1072 = vxor.u32 %v1071, 2147483648
    %v1073 = vmul.f32 %v1072, 1.442695
    %v1074 = vpow.pop %v1073
    %v1075 = vadd.f32 %v1074, 1.0
    %v1076 = vrcp.pop %v1075
    %v1077 = vmul.f32 %v1075, %v1076
    %v1078 = vsub.f32 1.0, %v1077
    %v1079 = vmul.f32 %v1076, %v1078
    %v1080 = vadd.f32 %v1076, %v1079
    %vm1081 = vweird.f32 %v1075
    %vm1082 = vweird.f32 %v1076
    %vm1083 = vmor %vm1081, %vm1082
    %v1084 = vsel %vm1083, %v1076, %v1080
    %v1085 = vand.u32 2147483647, %v1075
    %vm1086 = vcmp.eq.f32.partialorder %v1085, 8.507059e+37
    %v1087 = vand.u32 %v1075, 2147483648
    %v1088 = vor.u32 1.1754944e-38, %v1087
    %v1089 = vsel %vm1086, %v1088, %v1084
    %v1090 = vmul.f32 1.0, %v1089
    %v1091 = vtanh.pop %v1071
    %v1092 = vmul.f32 %v1090, %v1036
    %1094 = vrot.lane.b32.xlu0 %v1091, 64
    %v1095 = vpop.permute.xlu0 %1094
    %v1097 = vmul.f32 %v1090, %v1095
    %1099 = vrot.lane.b32.xlu0 %v1097, 32
    %v1100 = vpop.permute.xlu0 %1099
    %v1102 = vadd.f32 %v1092, %v1100
    %v1103 = vtanh.pop %v1102
    %1105 = vrot.lane.b32.xlu0 %v1103, 64
    %v1106 = vpop.permute.xlu0 %1105
    %v1108 = vmul.f32 %v1090, %v1106
    %1110 = vrot.lane.b32.xlu0 %v1108, 32
    %v1111 = vpop.permute.xlu0 %1110
    %1113 = vst.msk [vmem:[#allocation4 + $0x6] sm:$0x3] %vm343, %v1111
    %v1114 = vld [vmem:[#allocation2 + $0x8] sm:$0x3]
    %v1115 = vsel %vm277, %v1111, 0
    %1117 = vmatpush.msra.mxu0 0.0
    %1118 = vmatpush.msra.mxu0 0.0
    %1119 = vmatpush.msra.mxu0 0.0
    %1120 = vmatpush.msra.mxu0 0.0
    %1121 = vmatpush.msra.mxu0 0.0
    %1122 = vmatpush.msra.mxu0 0.0
    %1123 = vmatpush.msra.mxu0 0.0
    %1124 = vmatpush.msra.mxu0 0.0
    %1125 = vmatpush.msra.mxu0 0.0
    %1126 = vmatpush.msra.mxu0 0.0
    %1127 = vmatpush.msra.mxu0 0.0
    %1128 = vmatpush.msra.mxu0 0.0
    %1129 = vmatpush.msra.mxu0 %v851
    %1130 = vmatpush.msra.mxu0 %v850
    %1131 = vmatpush.msra.mxu0 %v849
    %1132 = vmatpush.msra.mxu0 %v848
    %1133 = vmatmul.f32.gmra.mxu0 %v1115
    %v1134 = vpop.f32.mrf.mxu0
    %v1135 = vadd.f32 0.0, %v1134
    %1136 = vdwg.mxu0
    %v1137 = vadd.f32 %v1114, %v1135
    %v1138 = vxor.u32 %v1137, 2147483648
    %v1139 = vmul.f32 %v1138, 1.442695
    %v1140 = vpow.pop %v1139
    %v1141 = vadd.f32 %v1140, 1.0
    %v1142 = vrcp.pop %v1141
    %v1143 = vmul.f32 %v1141, %v1142
    %v1144 = vsub.f32 1.0, %v1143
    %v1145 = vmul.f32 %v1142, %v1144
    %v1146 = vadd.f32 %v1142, %v1145
    %vm1147 = vweird.f32 %v1141
    %vm1148 = vweird.f32 %v1142
    %vm1149 = vmor %vm1147, %vm1148
    %v1150 = vsel %vm1149, %v1142, %v1146
    %v1151 = vand.u32 2147483647, %v1141
    %vm1152 = vcmp.eq.f32.partialorder %v1151, 8.507059e+37
    %v1153 = vand.u32 %v1141, 2147483648
    %v1154 = vor.u32 1.1754944e-38, %v1153
    %v1155 = vsel %vm1152, %v1154, %v1150
    %v1156 = vmul.f32 1.0, %v1155
    %v1157 = vtanh.pop %v1137
    %v1158 = vmul.f32 %v1156, %v1102
    %1160 = vrot.lane.b32.xlu0 %v1157, 64
    %v1161 = vpop.permute.xlu0 %1160
    %v1163 = vmul.f32 %v1156, %v1161
    %1165 = vrot.lane.b32.xlu0 %v1163, 32
    %v1166 = vpop.permute.xlu0 %1165
    %v1168 = vadd.f32 %v1158, %v1166
    %v1169 = vtanh.pop %v1168
    %1171 = vrot.lane.b32.xlu0 %v1169, 64
    %v1172 = vpop.permute.xlu0 %1171
    %v1174 = vmul.f32 %v1156, %v1172
    %1176 = vrot.lane.b32.xlu0 %v1174, 32
    %v1177 = vpop.permute.xlu0 %1176
    %1179 = vst.msk [vmem:[#allocation4 + $0x8] sm:$0x3] %vm343, %v1177
    %v1180 = vld [vmem:[#allocation2 + $0xa] sm:$0x3]
    %v1181 = vsel %vm277, %v1177, 0
    %1183 = vmatpush.msra.mxu0 0.0
    %1184 = vmatpush.msra.mxu0 0.0
    %1185 = vmatpush.msra.mxu0 0.0
    %1186 = vmatpush.msra.mxu0 0.0
    %1187 = vmatpush.msra.mxu0 0.0
    %1188 = vmatpush.msra.mxu0 0.0
    %1189 = vmatpush.msra.mxu0 0.0
    %1190 = vmatpush.msra.mxu0 0.0
    %1191 = vmatpush.msra.mxu0 0.0
    %1192 = vmatpush.msra.mxu0 0.0
    %1193 = vmatpush.msra.mxu0 0.0
    %1194 = vmatpush.msra.mxu0 0.0
    %1195 = vmatpush.msra.mxu0 %v851
    %1196 = vmatpush.msra.mxu0 %v850
    %1197 = vmatpush.msra.mxu0 %v849
    %1198 = vmatpush.msra.mxu0 %v848
    %1199 = vmatmul.f32.gmra.mxu0 %v1181
    %v1200 = vpop.f32.mrf.mxu0
    %v1201 = vadd.f32 0.0, %v1200
    %1202 = vdwg.mxu0
    %v1203 = vadd.f32 %v1180, %v1201
    %v1204 = vxor.u32 %v1203, 2147483648
    %v1205 = vmul.f32 %v1204, 1.442695
    %v1206 = vpow.pop %v1205
    %v1207 = vadd.f32 %v1206, 1.0
    %v1208 = vrcp.pop %v1207
    %v1209 = vmul.f32 %v1207, %v1208
    %v1210 = vsub.f32 1.0, %v1209
    %v1211 = vmul.f32 %v1208, %v1210
    %v1212 = vadd.f32 %v1208, %v1211
    %vm1213 = vweird.f32 %v1207
    %vm1214 = vweird.f32 %v1208
    %vm1215 = vmor %vm1213, %vm1214
    %v1216 = vsel %vm1215, %v1208, %v1212
    %v1217 = vand.u32 2147483647, %v1207
    %vm1218 = vcmp.eq.f32.partialorder %v1217, 8.507059e+37
    %v1219 = vand.u32 %v1207, 2147483648
    %v1220 = vor.u32 1.1754944e-38, %v1219
    %v1221 = vsel %vm1218, %v1220, %v1216
    %v1222 = vmul.f32 1.0, %v1221
    %v1223 = vtanh.pop %v1203
    %v1224 = vmul.f32 %v1222, %v1168
    %1226 = vrot.lane.b32.xlu0 %v1223, 64
    %v1227 = vpop.permute.xlu0 %1226
    %v1229 = vmul.f32 %v1222, %v1227
    %1231 = vrot.lane.b32.xlu0 %v1229, 32
    %v1232 = vpop.permute.xlu0 %1231
    %v1234 = vadd.f32 %v1224, %v1232
    %v1235 = vtanh.pop %v1234
    %1237 = vrot.lane.b32.xlu0 %v1235, 64
    %v1238 = vpop.permute.xlu0 %1237
    %v1240 = vmul.f32 %v1222, %v1238
    %1242 = vrot.lane.b32.xlu0 %v1240, 32
    %v1243 = vpop.permute.xlu0 %1242
    %1245 = vst.msk [vmem:[#allocation4 + $0xa] sm:$0x3] %vm343, %v1243
    %v1246 = vld [vmem:[#allocation2 + $0xc] sm:$0x3]
    %v1247 = vsel %vm277, %v1243, 0
    %1249 = vmatpush.msra.mxu0 0.0
    %1250 = vmatpush.msra.mxu0 0.0
    %1251 = vmatpush.msra.mxu0 0.0
    %1252 = vmatpush.msra.mxu0 0.0
    %1253 = vmatpush.msra.mxu0 0.0
    %1254 = vmatpush.msra.mxu0 0.0
    %1255 = vmatpush.msra.mxu0 0.0
    %1256 = vmatpush.msra.mxu0 0.0
    %1257 = vmatpush.msra.mxu0 0.0
    %1258 = vmatpush.msra.mxu0 0.0
    %1259 = vmatpush.msra.mxu0 0.0
    %1260 = vmatpush.msra.mxu0 0.0
    %1261 = vmatpush.msra.mxu0 %v851
    %1262 = vmatpush.msra.mxu0 %v850
    %1263 = vmatpush.msra.mxu0 %v849
    %1264 = vmatpush.msra.mxu0 %v848
    %1265 = vmatmul.f32.gmra.mxu0 %v1247
    %v1266 = vpop.f32.mrf.mxu0
    %v1267 = vadd.f32 0.0, %v1266
    %1268 = vdwg.mxu0
    %v1269 = vadd.f32 %v1246, %v1267
    %v1270 = vxor.u32 %v1269, 2147483648
    %v1271 = vmul.f32 %v1270, 1.442695
    %v1272 = vpow.pop %v1271
    %v1273 = vadd.f32 %v1272, 1.0
    %v1274 = vrcp.pop %v1273
    %v1275 = vmul.f32 %v1273, %v1274
    %v1276 = vsub.f32 1.0, %v1275
    %v1277 = vmul.f32 %v1274, %v1276
    %v1278 = vadd.f32 %v1274, %v1277
    %vm1279 = vweird.f32 %v1273
    %vm1280 = vweird.f32 %v1274
    %vm1281 = vmor %vm1279, %vm1280
    %v1282 = vsel %vm1281, %v1274, %v1278
    %v1283 = vand.u32 2147483647, %v1273
    %vm1284 = vcmp.eq.f32.partialorder %v1283, 8.507059e+37
    %v1285 = vand.u32 %v1273, 2147483648
    %v1286 = vor.u32 1.1754944e-38, %v1285
    %v1287 = vsel %vm1284, %v1286, %v1282
    %v1288 = vmul.f32 1.0, %v1287
    %v1289 = vtanh.pop %v1269
    %v1290 = vmul.f32 %v1288, %v1234
    %1292 = vrot.lane.b32.xlu0 %v1289, 64
    %v1293 = vpop.permute.xlu0 %1292
    %v1295 = vmul.f32 %v1288, %v1293
    %1297 = vrot.lane.b32.xlu0 %v1295, 32
    %v1298 = vpop.permute.xlu0 %1297
    %v1300 = vadd.f32 %v1290, %v1298
    %v1301 = vtanh.pop %v1300
    %1303 = vrot.lane.b32.xlu0 %v1301, 64
    %v1304 = vpop.permute.xlu0 %1303
    %v1306 = vmul.f32 %v1288, %v1304
    %1308 = vrot.lane.b32.xlu0 %v1306, 32
    %v1309 = vpop.permute.xlu0 %1308
    %1311 = vst.msk [vmem:[#allocation4 + $0xc] sm:$0x3] %vm343, %v1309
    %v1312 = vld [vmem:[#allocation2 + $0xe] sm:$0x3]
    %v1313 = vsel %vm277, %v1309, 0
    %1315 = vmatpush.msra.mxu0 0.0
    %1316 = vmatpush.msra.mxu0 0.0
    %1317 = vmatpush.msra.mxu0 0.0
    %1318 = vmatpush.msra.mxu0 0.0
    %1319 = vmatpush.msra.mxu0 0.0
    %1320 = vmatpush.msra.mxu0 0.0
    %1321 = vmatpush.msra.mxu0 0.0
    %1322 = vmatpush.msra.mxu0 0.0
    %1323 = vmatpush.msra.mxu0 0.0
    %1324 = vmatpush.msra.mxu0 0.0
    %1325 = vmatpush.msra.mxu0 0.0
    %1326 = vmatpush.msra.mxu0 0.0
    %1327 = vmatpush.msra.mxu0 %v851
    %1328 = vmatpush.msra.mxu0 %v850
    %1329 = vmatpush.msra.mxu0 %v849
    %1330 = vmatpush.msra.mxu0 %v848
    %1331 = vmatmul.f32.gmra.mxu0 %v1313
    %v1332 = vpop.f32.mrf.mxu0
    %v1333 = vadd.f32 0.0, %v1332
    %1334 = vdwg.mxu0
    %v1335 = vadd.f32 %v1312, %v1333
    %v1336 = vxor.u32 %v1335, 2147483648
    %v1337 = vmul.f32 %v1336, 1.442695
    %v1338 = vpow.pop %v1337
    %v1339 = vadd.f32 %v1338, 1.0
    %v1340 = vrcp.pop %v1339
    %v1341 = vmul.f32 %v1339, %v1340
    %v1342 = vsub.f32 1.0, %v1341
    %v1343 = vmul.f32 %v1340, %v1342
    %v1344 = vadd.f32 %v1340, %v1343
    %vm1345 = vweird.f32 %v1339
    %vm1346 = vweird.f32 %v1340
    %vm1347 = vmor %vm1345, %vm1346
    %v1348 = vsel %vm1347, %v1340, %v1344
    %v1349 = vand.u32 2147483647, %v1339
    %vm1350 = vcmp.eq.f32.partialorder %v1349, 8.507059e+37
    %v1351 = vand.u32 %v1339, 2147483648
    %v1352 = vor.u32 1.1754944e-38, %v1351
    %v1353 = vsel %vm1350, %v1352, %v1348
    %v1354 = vmul.f32 1.0, %v1353
    %v1355 = vtanh.pop %v1335
    %v1356 = vmul.f32 %v1354, %v1300
    %1358 = vrot.lane.b32.xlu0 %v1355, 64
    %v1359 = vpop.permute.xlu0 %1358
    %v1361 = vmul.f32 %v1354, %v1359
    %1363 = vrot.lane.b32.xlu0 %v1361, 32
    %v1364 = vpop.permute.xlu0 %1363
    %v1366 = vadd.f32 %v1356, %v1364
    %v1367 = vtanh.pop %v1366
    %1369 = vrot.lane.b32.xlu0 %v1367, 64
    %v1370 = vpop.permute.xlu0 %1369
    %v1372 = vmul.f32 %v1354, %v1370
    %1374 = vrot.lane.b32.xlu0 %v1372, 32
    %v1375 = vpop.permute.xlu0 %1374
    %1377 = vst.msk [vmem:[#allocation4 + $0xe] sm:$0x3] %vm343, %v1375
    %v1378 = vld [vmem:[#allocation4] sm:$0xff]
    %v1379 = vld [vmem:[#allocation4 + $0x8] sm:$0xff]
    %v1380 = vld [vmem:[#allocation13] sm:$0xff]
    %v1381 = vld [vmem:[#allocation13 + $0x8] sm:$0xff]
    %v1382 = vld [vmem:[#allocation13 + $0x10] sm:$0xff]
    %v1383 = vld [vmem:[#allocation13 + $0x18] sm:$0xff]
    %v1384 = vld [vmem:[#allocation16] sm:$0x1]
    %v1386 = vperm.slane %v1384, 0
    %v1389 = vsel %vm277, %v1378, 0
    %v1392 = vsel %vm277, %v1379, 0
    %1394 = vmatpush.msra.mxu0 0.0
    %1395 = vmatpush.msra.mxu0 0.0
    %1396 = vmatpush.msra.mxu0 0.0
    %1397 = vmatpush.msra.mxu0 0.0
    %1398 = vmatpush.msra.mxu0 0.0
    %1399 = vmatpush.msra.mxu0 0.0
    %1400 = vmatpush.msra.mxu0 0.0
    %1401 = vmatpush.msra.mxu0 0.0
    %1402 = vmatpush.msra.mxu0 0.0
    %1403 = vmatpush.msra.mxu0 0.0
    %1404 = vmatpush.msra.mxu0 0.0
    %1405 = vmatpush.msra.mxu0 0.0
    %1406 = vmatpush.msra.mxu0 %v1383
    %1407 = vmatpush.msra.mxu0 %v1382
    %1408 = vmatpush.msra.mxu0 %v1381
    %1409 = vmatpush.msra.mxu0 %v1380
    %1410 = vmatmul.f32.gmra.mxu0 %v1389
    %v1411 = vpop.f32.mrf.mxu0
    %v1412 = vadd.f32 %v1386, %v1411
    %1413 = vmatmul.f32.gmra.mxu0 %v1392
    %v1414 = vpop.f32.mrf.mxu0
    %v1415 = vadd.f32 %v1386, %v1414
    %1416 = vdwg.mxu0
    %1417 = vst [vmem:[#allocation2] sm:$0xff] %v1412
    %1418 = vst [vmem:[#allocation2 + $0x8] sm:$0xff] %v1415
    %v1419 = vld [vmem:[#allocation14] sm:$0xff]
    %v1420 = vld [vmem:[#allocation14 + $0x8] sm:$0xff]
    %v1421 = vld [vmem:[#allocation14 + $0x10] sm:$0xff]
    %v1422 = vld [vmem:[#allocation14 + $0x18] sm:$0xff]
    %v1423 = vld [vmem:[#allocation2] sm:$0x3]
    %v1424 = vsel %vm277, %v804, 0
    %1426 = vmatpush.msra.mxu0 0.0
    %1427 = vmatpush.msra.mxu0 0.0
    %1428 = vmatpush.msra.mxu0 0.0
    %1429 = vmatpush.msra.mxu0 0.0
    %1430 = vmatpush.msra.mxu0 0.0
    %1431 = vmatpush.msra.mxu0 0.0
    %1432 = vmatpush.msra.mxu0 0.0
    %1433 = vmatpush.msra.mxu0 0.0
    %1434 = vmatpush.msra.mxu0 0.0
    %1435 = vmatpush.msra.mxu0 0.0
    %1436 = vmatpush.msra.mxu0 0.0
    %1437 = vmatpush.msra.mxu0 0.0
    %1438 = vmatpush.msra.mxu0 %v1422
    %1439 = vmatpush.msra.mxu0 %v1421
    %1440 = vmatpush.msra.mxu0 %v1420
    %1441 = vmatpush.msra.mxu0 %v1419
    %1442 = vmatmul.f32.gmra.mxu0 %v1424
    %v1443 = vpop.f32.mrf.mxu0
    %v1444 = vadd.f32 0.0, %v1443
    %1445 = vdwg.mxu0
    %v1446 = vadd.f32 %v1423, %v1444
    %v1447 = vxor.u32 %v1446, 2147483648
    %v1448 = vmul.f32 %v1447, 1.442695
    %v1449 = vpow.pop %v1448
    %v1450 = vadd.f32 %v1449, 1.0
    %v1451 = vrcp.pop %v1450
    %v1452 = vmul.f32 %v1450, %v1451
    %v1453 = vsub.f32 1.0, %v1452
    %v1454 = vmul.f32 %v1451, %v1453
    %v1455 = vadd.f32 %v1451, %v1454
    %vm1456 = vweird.f32 %v1450
    %vm1457 = vweird.f32 %v1451
    %vm1458 = vmor %vm1456, %vm1457
    %v1459 = vsel %vm1458, %v1451, %v1455
    %v1460 = vand.u32 2147483647, %v1450
    %vm1461 = vcmp.eq.f32.partialorder %v1460, 8.507059e+37
    %v1462 = vand.u32 %v1450, 2147483648
    %v1463 = vor.u32 1.1754944e-38, %v1462
    %v1464 = vsel %vm1461, %v1463, %v1459
    %v1465 = vmul.f32 1.0, %v1464
    %v1466 = vtanh.pop %v1446
    %v1467 = vmul.f32 %v1465, %v795
    %1469 = vrot.lane.b32.xlu0 %v1466, 64
    %v1470 = vpop.permute.xlu0 %1469
    %v1472 = vmul.f32 %v1465, %v1470
    %1474 = vrot.lane.b32.xlu0 %v1472, 32
    %v1475 = vpop.permute.xlu0 %1474
    %v1477 = vadd.f32 %v1467, %v1475
    %v1478 = vtanh.pop %v1477
    %1480 = vrot.lane.b32.xlu0 %v1478, 64
    %v1481 = vpop.permute.xlu0 %1480
    %v1483 = vmul.f32 %v1465, %v1481
    %1485 = vrot.lane.b32.xlu0 %v1483, 32
    %v1486 = vpop.permute.xlu0 %1485
    %1488 = vst.msk [vmem:[#allocation3] sm:$0x3] %vm343, %v1486
    %v1489 = vld [vmem:[#allocation2 + $0x2] sm:$0x3]
    %v1490 = vsel %vm277, %v1486, 0
    %1492 = vmatpush.msra.mxu0 0.0
    %1493 = vmatpush.msra.mxu0 0.0
    %1494 = vmatpush.msra.mxu0 0.0
    %1495 = vmatpush.msra.mxu0 0.0
    %1496 = vmatpush.msra.mxu0 0.0
    %1497 = vmatpush.msra.mxu0 0.0
    %1498 = vmatpush.msra.mxu0 0.0
    %1499 = vmatpush.msra.mxu0 0.0
    %1500 = vmatpush.msra.mxu0 0.0
    %1501 = vmatpush.msra.mxu0 0.0
    %1502 = vmatpush.msra.mxu0 0.0
    %1503 = vmatpush.msra.mxu0 0.0
    %1504 = vmatpush.msra.mxu0 %v1422
    %1505 = vmatpush.msra.mxu0 %v1421
    %1506 = vmatpush.msra.mxu0 %v1420
    %1507 = vmatpush.msra.mxu0 %v1419
    %1508 = vmatmul.f32.gmra.mxu0 %v1490
    %v1509 = vpop.f32.mrf.mxu0
    %v1510 = vadd.f32 0.0, %v1509
    %1511 = vdwg.mxu0
    %v1512 = vadd.f32 %v1489, %v1510
    %v1513 = vxor.u32 %v1512, 2147483648
    %v1514 = vmul.f32 %v1513, 1.442695
    %v1515 = vpow.pop %v1514
    %v1516 = vadd.f32 %v1515, 1.0
    %v1517 = vrcp.pop %v1516
    %v1518 = vmul.f32 %v1516, %v1517
    %v1519 = vsub.f32 1.0, %v1518
    %v1520 = vmul.f32 %v1517, %v1519
    %v1521 = vadd.f32 %v1517, %v1520
    %vm1522 = vweird.f32 %v1516
    %vm1523 = vweird.f32 %v1517
    %vm1524 = vmor %vm1522, %vm1523
    %v1525 = vsel %vm1524, %v1517, %v1521
    %v1526 = vand.u32 2147483647, %v1516
    %vm1527 = vcmp.eq.f32.partialorder %v1526, 8.507059e+37
    %v1528 = vand.u32 %v1516, 2147483648
    %v1529 = vor.u32 1.1754944e-38, %v1528
    %v1530 = vsel %vm1527, %v1529, %v1525
    %v1531 = vmul.f32 1.0, %v1530
    %v1532 = vtanh.pop %v1512
    %v1533 = vmul.f32 %v1531, %v1477
    %1535 = vrot.lane.b32.xlu0 %v1532, 64
    %v1536 = vpop.permute.xlu0 %1535
    %v1538 = vmul.f32 %v1531, %v1536
    %1540 = vrot.lane.b32.xlu0 %v1538, 32
    %v1541 = vpop.permute.xlu0 %1540
    %v1543 = vadd.f32 %v1533, %v1541
    %v1544 = vtanh.pop %v1543
    %1546 = vrot.lane.b32.xlu0 %v1544, 64
    %v1547 = vpop.permute.xlu0 %1546
    %v1549 = vmul.f32 %v1531, %v1547
    %1551 = vrot.lane.b32.xlu0 %v1549, 32
    %v1552 = vpop.permute.xlu0 %1551
    %1554 = vst.msk [vmem:[#allocation3 + $0x2] sm:$0x3] %vm343, %v1552
    %v1555 = vld [vmem:[#allocation2 + $0x4] sm:$0x3]
    %v1556 = vsel %vm277, %v1552, 0
    %1558 = vmatpush.msra.mxu0 0.0
    %1559 = vmatpush.msra.mxu0 0.0
    %1560 = vmatpush.msra.mxu0 0.0
    %1561 = vmatpush.msra.mxu0 0.0
    %1562 = vmatpush.msra.mxu0 0.0
    %1563 = vmatpush.msra.mxu0 0.0
    %1564 = vmatpush.msra.mxu0 0.0
    %1565 = vmatpush.msra.mxu0 0.0
    %1566 = vmatpush.msra.mxu0 0.0
    %1567 = vmatpush.msra.mxu0 0.0
    %1568 = vmatpush.msra.mxu0 0.0
    %1569 = vmatpush.msra.mxu0 0.0
    %1570 = vmatpush.msra.mxu0 %v1422
    %1571 = vmatpush.msra.mxu0 %v1421
    %1572 = vmatpush.msra.mxu0 %v1420
    %1573 = vmatpush.msra.mxu0 %v1419
    %1574 = vmatmul.f32.gmra.mxu0 %v1556
    %v1575 = vpop.f32.mrf.mxu0
    %v1576 = vadd.f32 0.0, %v1575
    %1577 = vdwg.mxu0
    %v1578 = vadd.f32 %v1555, %v1576
    %v1579 = vxor.u32 %v1578, 2147483648
    %v1580 = vmul.f32 %v1579, 1.442695
    %v1581 = vpow.pop %v1580
    %v1582 = vadd.f32 %v1581, 1.0
    %v1583 = vrcp.pop %v1582
    %v1584 = vmul.f32 %v1582, %v1583
    %v1585 = vsub.f32 1.0, %v1584
    %v1586 = vmul.f32 %v1583, %v1585
    %v1587 = vadd.f32 %v1583, %v1586
    %vm1588 = vweird.f32 %v1582
    %vm1589 = vweird.f32 %v1583
    %vm1590 = vmor %vm1588, %vm1589
    %v1591 = vsel %vm1590, %v1583, %v1587
    %v1592 = vand.u32 2147483647, %v1582
    %vm1593 = vcmp.eq.f32.partialorder %v1592, 8.507059e+37
    %v1594 = vand.u32 %v1582, 2147483648
    %v1595 = vor.u32 1.1754944e-38, %v1594
    %v1596 = vsel %vm1593, %v1595, %v1591
    %v1597 = vmul.f32 1.0, %v1596
    %v1598 = vtanh.pop %v1578
    %v1599 = vmul.f32 %v1597, %v1543
    %1601 = vrot.lane.b32.xlu0 %v1598, 64
    %v1602 = vpop.permute.xlu0 %1601
    %v1604 = vmul.f32 %v1597, %v1602
    %1606 = vrot.lane.b32.xlu0 %v1604, 32
    %v1607 = vpop.permute.xlu0 %1606
    %v1609 = vadd.f32 %v1599, %v1607
    %v1610 = vtanh.pop %v1609
    %1612 = vrot.lane.b32.xlu0 %v1610, 64
    %v1613 = vpop.permute.xlu0 %1612
    %v1615 = vmul.f32 %v1597, %v1613
    %1617 = vrot.lane.b32.xlu0 %v1615, 32
    %v1618 = vpop.permute.xlu0 %1617
    %1620 = vst.msk [vmem:[#allocation3 + $0x4] sm:$0x3] %vm343, %v1618
    %v1621 = vld [vmem:[#allocation2 + $0x6] sm:$0x3]
    %v1622 = vsel %vm277, %v1618, 0
    %1624 = vmatpush.msra.mxu0 0.0
    %1625 = vmatpush.msra.mxu0 0.0
    %1626 = vmatpush.msra.mxu0 0.0
    %1627 = vmatpush.msra.mxu0 0.0
    %1628 = vmatpush.msra.mxu0 0.0
    %1629 = vmatpush.msra.mxu0 0.0
    %1630 = vmatpush.msra.mxu0 0.0
    %1631 = vmatpush.msra.mxu0 0.0
    %1632 = vmatpush.msra.mxu0 0.0
    %1633 = vmatpush.msra.mxu0 0.0
    %1634 = vmatpush.msra.mxu0 0.0
    %1635 = vmatpush.msra.mxu0 0.0
    %1636 = vmatpush.msra.mxu0 %v1422
    %1637 = vmatpush.msra.mxu0 %v1421
    %1638 = vmatpush.msra.mxu0 %v1420
    %1639 = vmatpush.msra.mxu0 %v1419
    %1640 = vmatmul.f32.gmra.mxu0 %v1622
    %v1641 = vpop.f32.mrf.mxu0
    %v1642 = vadd.f32 0.0, %v1641
    %1643 = vdwg.mxu0
    %v1644 = vadd.f32 %v1621, %v1642
    %v1645 = vxor.u32 %v1644, 2147483648
    %v1646 = vmul.f32 %v1645, 1.442695
    %v1647 = vpow.pop %v1646
    %v1648 = vadd.f32 %v1647, 1.0
    %v1649 = vrcp.pop %v1648
    %v1650 = vmul.f32 %v1648, %v1649
    %v1651 = vsub.f32 1.0, %v1650
    %v1652 = vmul.f32 %v1649, %v1651
    %v1653 = vadd.f32 %v1649, %v1652
    %vm1654 = vweird.f32 %v1648
    %vm1655 = vweird.f32 %v1649
    %vm1656 = vmor %vm1654, %vm1655
    %v1657 = vsel %vm1656, %v1649, %v1653
    %v1658 = vand.u32 2147483647, %v1648
    %vm1659 = vcmp.eq.f32.partialorder %v1658, 8.507059e+37
    %v1660 = vand.u32 %v1648, 2147483648
    %v1661 = vor.u32 1.1754944e-38, %v1660
    %v1662 = vsel %vm1659, %v1661, %v1657
    %v1663 = vmul.f32 1.0, %v1662
    %v1664 = vtanh.pop %v1644
    %v1665 = vmul.f32 %v1663, %v1609
    %1667 = vrot.lane.b32.xlu0 %v1664, 64
    %v1668 = vpop.permute.xlu0 %1667
    %v1670 = vmul.f32 %v1663, %v1668
    %1672 = vrot.lane.b32.xlu0 %v1670, 32
    %v1673 = vpop.permute.xlu0 %1672
    %v1675 = vadd.f32 %v1665, %v1673
    %v1676 = vtanh.pop %v1675
    %1678 = vrot.lane.b32.xlu0 %v1676, 64
    %v1679 = vpop.permute.xlu0 %1678
    %v1681 = vmul.f32 %v1663, %v1679
    %1683 = vrot.lane.b32.xlu0 %v1681, 32
    %v1684 = vpop.permute.xlu0 %1683
    %1686 = vst.msk [vmem:[#allocation3 + $0x6] sm:$0x3] %vm343, %v1684
    %v1687 = vld [vmem:[#allocation2 + $0x8] sm:$0x3]
    %v1688 = vsel %vm277, %v1684, 0
    %1690 = vmatpush.msra.mxu0 0.0
    %1691 = vmatpush.msra.mxu0 0.0
    %1692 = vmatpush.msra.mxu0 0.0
    %1693 = vmatpush.msra.mxu0 0.0
    %1694 = vmatpush.msra.mxu0 0.0
    %1695 = vmatpush.msra.mxu0 0.0
    %1696 = vmatpush.msra.mxu0 0.0
    %1697 = vmatpush.msra.mxu0 0.0
    %1698 = vmatpush.msra.mxu0 0.0
    %1699 = vmatpush.msra.mxu0 0.0
    %1700 = vmatpush.msra.mxu0 0.0
    %1701 = vmatpush.msra.mxu0 0.0
    %1702 = vmatpush.msra.mxu0 %v1422
    %1703 = vmatpush.msra.mxu0 %v1421
    %1704 = vmatpush.msra.mxu0 %v1420
    %1705 = vmatpush.msra.mxu0 %v1419
    %1706 = vmatmul.f32.gmra.mxu0 %v1688
    %v1707 = vpop.f32.mrf.mxu0
    %v1708 = vadd.f32 0.0, %v1707
    %1709 = vdwg.mxu0
    %v1710 = vadd.f32 %v1687, %v1708
    %v1711 = vxor.u32 %v1710, 2147483648
    %v1712 = vmul.f32 %v1711, 1.442695
    %v1713 = vpow.pop %v1712
    %v1714 = vadd.f32 %v1713, 1.0
    %v1715 = vrcp.pop %v1714
    %v1716 = vmul.f32 %v1714, %v1715
    %v1717 = vsub.f32 1.0, %v1716
    %v1718 = vmul.f32 %v1715, %v1717
    %v1719 = vadd.f32 %v1715, %v1718
    %vm1720 = vweird.f32 %v1714
    %vm1721 = vweird.f32 %v1715
    %vm1722 = vmor %vm1720, %vm1721
    %v1723 = vsel %vm1722, %v1715, %v1719
    %v1724 = vand.u32 2147483647, %v1714
    %vm1725 = vcmp.eq.f32.partialorder %v1724, 8.507059e+37
    %v1726 = vand.u32 %v1714, 2147483648
    %v1727 = vor.u32 1.1754944e-38, %v1726
    %v1728 = vsel %vm1725, %v1727, %v1723
    %v1729 = vmul.f32 1.0, %v1728
    %v1730 = vtanh.pop %v1710
    %v1731 = vmul.f32 %v1729, %v1675
    %1733 = vrot.lane.b32.xlu0 %v1730, 64
    %v1734 = vpop.permute.xlu0 %1733
    %v1736 = vmul.f32 %v1729, %v1734
    %1738 = vrot.lane.b32.xlu0 %v1736, 32
    %v1739 = vpop.permute.xlu0 %1738
    %v1741 = vadd.f32 %v1731, %v1739
    %v1742 = vtanh.pop %v1741
    %1744 = vrot.lane.b32.xlu0 %v1742, 64
    %v1745 = vpop.permute.xlu0 %1744
    %v1747 = vmul.f32 %v1729, %v1745
    %1749 = vrot.lane.b32.xlu0 %v1747, 32
    %v1750 = vpop.permute.xlu0 %1749
    %1752 = vst.msk [vmem:[#allocation3 + $0x8] sm:$0x3] %vm343, %v1750
    %v1753 = vld [vmem:[#allocation2 + $0xa] sm:$0x3]
    %v1754 = vsel %vm277, %v1750, 0
    %1756 = vmatpush.msra.mxu0 0.0
    %1757 = vmatpush.msra.mxu0 0.0
    %1758 = vmatpush.msra.mxu0 0.0
    %1759 = vmatpush.msra.mxu0 0.0
    %1760 = vmatpush.msra.mxu0 0.0
    %1761 = vmatpush.msra.mxu0 0.0
    %1762 = vmatpush.msra.mxu0 0.0
    %1763 = vmatpush.msra.mxu0 0.0
    %1764 = vmatpush.msra.mxu0 0.0
    %1765 = vmatpush.msra.mxu0 0.0
    %1766 = vmatpush.msra.mxu0 0.0
    %1767 = vmatpush.msra.mxu0 0.0
    %1768 = vmatpush.msra.mxu0 %v1422
    %1769 = vmatpush.msra.mxu0 %v1421
    %1770 = vmatpush.msra.mxu0 %v1420
    %1771 = vmatpush.msra.mxu0 %v1419
    %1772 = vmatmul.f32.gmra.mxu0 %v1754
    %v1773 = vpop.f32.mrf.mxu0
    %v1774 = vadd.f32 0.0, %v1773
    %1775 = vdwg.mxu0
    %v1776 = vadd.f32 %v1753, %v1774
    %v1777 = vxor.u32 %v1776, 2147483648
    %v1778 = vmul.f32 %v1777, 1.442695
    %v1779 = vpow.pop %v1778
    %v1780 = vadd.f32 %v1779, 1.0
    %v1781 = vrcp.pop %v1780
    %v1782 = vmul.f32 %v1780, %v1781
    %v1783 = vsub.f32 1.0, %v1782
    %v1784 = vmul.f32 %v1781, %v1783
    %v1785 = vadd.f32 %v1781, %v1784
    %vm1786 = vweird.f32 %v1780
    %vm1787 = vweird.f32 %v1781
    %vm1788 = vmor %vm1786, %vm1787
    %v1789 = vsel %vm1788, %v1781, %v1785
    %v1790 = vand.u32 2147483647, %v1780
    %vm1791 = vcmp.eq.f32.partialorder %v1790, 8.507059e+37
    %v1792 = vand.u32 %v1780, 2147483648
    %v1793 = vor.u32 1.1754944e-38, %v1792
    %v1794 = vsel %vm1791, %v1793, %v1789
    %v1795 = vmul.f32 1.0, %v1794
    %v1796 = vtanh.pop %v1776
    %v1797 = vmul.f32 %v1795, %v1741
    %1799 = vrot.lane.b32.xlu0 %v1796, 64
    %v1800 = vpop.permute.xlu0 %1799
    %v1802 = vmul.f32 %v1795, %v1800
    %1804 = vrot.lane.b32.xlu0 %v1802, 32
    %v1805 = vpop.permute.xlu0 %1804
    %v1807 = vadd.f32 %v1797, %v1805
    %v1808 = vtanh.pop %v1807
    %1810 = vrot.lane.b32.xlu0 %v1808, 64
    %v1811 = vpop.permute.xlu0 %1810
    %v1813 = vmul.f32 %v1795, %v1811
    %1815 = vrot.lane.b32.xlu0 %v1813, 32
    %v1816 = vpop.permute.xlu0 %1815
    %1818 = vst.msk [vmem:[#allocation3 + $0xa] sm:$0x3] %vm343, %v1816
    %v1819 = vld [vmem:[#allocation2 + $0xc] sm:$0x3]
    %v1820 = vsel %vm277, %v1816, 0
    %1822 = vmatpush.msra.mxu0 0.0
    %1823 = vmatpush.msra.mxu0 0.0
    %1824 = vmatpush.msra.mxu0 0.0
    %1825 = vmatpush.msra.mxu0 0.0
    %1826 = vmatpush.msra.mxu0 0.0
    %1827 = vmatpush.msra.mxu0 0.0
    %1828 = vmatpush.msra.mxu0 0.0
    %1829 = vmatpush.msra.mxu0 0.0
    %1830 = vmatpush.msra.mxu0 0.0
    %1831 = vmatpush.msra.mxu0 0.0
    %1832 = vmatpush.msra.mxu0 0.0
    %1833 = vmatpush.msra.mxu0 0.0
    %1834 = vmatpush.msra.mxu0 %v1422
    %1835 = vmatpush.msra.mxu0 %v1421
    %1836 = vmatpush.msra.mxu0 %v1420
    %1837 = vmatpush.msra.mxu0 %v1419
    %1838 = vmatmul.f32.gmra.mxu0 %v1820
    %v1839 = vpop.f32.mrf.mxu0
    %v1840 = vadd.f32 0.0, %v1839
    %1841 = vdwg.mxu0
    %v1842 = vadd.f32 %v1819, %v1840
    %v1843 = vxor.u32 %v1842, 2147483648
    %v1844 = vmul.f32 %v1843, 1.442695
    %v1845 = vpow.pop %v1844
    %v1846 = vadd.f32 %v1845, 1.0
    %v1847 = vrcp.pop %v1846
    %v1848 = vmul.f32 %v1846, %v1847
    %v1849 = vsub.f32 1.0, %v1848
    %v1850 = vmul.f32 %v1847, %v1849
    %v1851 = vadd.f32 %v1847, %v1850
    %vm1852 = vweird.f32 %v1846
    %vm1853 = vweird.f32 %v1847
    %vm1854 = vmor %vm1852, %vm1853
    %v1855 = vsel %vm1854, %v1847, %v1851
    %v1856 = vand.u32 2147483647, %v1846
    %vm1857 = vcmp.eq.f32.partialorder %v1856, 8.507059e+37
    %v1858 = vand.u32 %v1846, 2147483648
    %v1859 = vor.u32 1.1754944e-38, %v1858
    %v1860 = vsel %vm1857, %v1859, %v1855
    %v1861 = vmul.f32 1.0, %v1860
    %v1862 = vtanh.pop %v1842
    %v1863 = vmul.f32 %v1861, %v1807
    %1865 = vrot.lane.b32.xlu0 %v1862, 64
    %v1866 = vpop.permute.xlu0 %1865
    %v1868 = vmul.f32 %v1861, %v1866
    %1870 = vrot.lane.b32.xlu0 %v1868, 32
    %v1871 = vpop.permute.xlu0 %1870
    %v1873 = vadd.f32 %v1863, %v1871
    %v1874 = vtanh.pop %v1873
    %1876 = vrot.lane.b32.xlu0 %v1874, 64
    %v1877 = vpop.permute.xlu0 %1876
    %v1879 = vmul.f32 %v1861, %v1877
    %1881 = vrot.lane.b32.xlu0 %v1879, 32
    %v1882 = vpop.permute.xlu0 %1881
    %1884 = vst.msk [vmem:[#allocation3 + $0xc] sm:$0x3] %vm343, %v1882
    %v1885 = vld [vmem:[#allocation2 + $0xe] sm:$0x3]
    %v1886 = vsel %vm277, %v1882, 0
    %1888 = vmatpush.msra.mxu0 0.0
    %1889 = vmatpush.msra.mxu0 0.0
    %1890 = vmatpush.msra.mxu0 0.0
    %1891 = vmatpush.msra.mxu0 0.0
    %1892 = vmatpush.msra.mxu0 0.0
    %1893 = vmatpush.msra.mxu0 0.0
    %1894 = vmatpush.msra.mxu0 0.0
    %1895 = vmatpush.msra.mxu0 0.0
    %1896 = vmatpush.msra.mxu0 0.0
    %1897 = vmatpush.msra.mxu0 0.0
    %1898 = vmatpush.msra.mxu0 0.0
    %1899 = vmatpush.msra.mxu0 0.0
    %1900 = vmatpush.msra.mxu0 %v1422
    %1901 = vmatpush.msra.mxu0 %v1421
    %1902 = vmatpush.msra.mxu0 %v1420
    %1903 = vmatpush.msra.mxu0 %v1419
    %1904 = vmatmul.f32.gmra.mxu0 %v1886
    %v1905 = vpop.f32.mrf.mxu0
    %v1906 = vadd.f32 0.0, %v1905
    %1907 = vdwg.mxu0
    %v1908 = vadd.f32 %v1885, %v1906
    %v1909 = vxor.u32 %v1908, 2147483648
    %v1910 = vmul.f32 %v1909, 1.442695
    %v1911 = vpow.pop %v1910
    %v1912 = vadd.f32 %v1911, 1.0
    %v1913 = vrcp.pop %v1912
    %v1914 = vmul.f32 %v1912, %v1913
    %v1915 = vsub.f32 1.0, %v1914
    %v1916 = vmul.f32 %v1913, %v1915
    %v1917 = vadd.f32 %v1913, %v1916
    %vm1918 = vweird.f32 %v1912
    %vm1919 = vweird.f32 %v1913
    %vm1920 = vmor %vm1918, %vm1919
    %v1921 = vsel %vm1920, %v1913, %v1917
    %v1922 = vand.u32 2147483647, %v1912
    %vm1923 = vcmp.eq.f32.partialorder %v1922, 8.507059e+37
    %v1924 = vand.u32 %v1912, 2147483648
    %v1925 = vor.u32 1.1754944e-38, %v1924
    %v1926 = vsel %vm1923, %v1925, %v1921
    %v1927 = vmul.f32 1.0, %v1926
    %v1928 = vtanh.pop %v1908
    %v1929 = vmul.f32 %v1927, %v1873
    %1931 = vrot.lane.b32.xlu0 %v1928, 64
    %v1932 = vpop.permute.xlu0 %1931
    %v1934 = vmul.f32 %v1927, %v1932
    %1936 = vrot.lane.b32.xlu0 %v1934, 32
    %v1937 = vpop.permute.xlu0 %1936
    %v1939 = vadd.f32 %v1929, %v1937
    %v1940 = vtanh.pop %v1939
    %1942 = vrot.lane.b32.xlu0 %v1940, 64
    %v1943 = vpop.permute.xlu0 %1942
    %v1945 = vmul.f32 %v1927, %v1943
    %1947 = vrot.lane.b32.xlu0 %v1945, 32
    %v1948 = vpop.permute.xlu0 %1947
    %1950 = vst.msk [vmem:[#allocation3 + $0xe] sm:$0x3] %vm343, %v1948
    %v1951 = vld [vmem:[#allocation3] sm:$0xff]
    %v1952 = vld [vmem:[#allocation3 + $0x8] sm:$0xff]
    %v1953 = vld [vmem:[#allocation17] sm:$0xff]
    %v1954 = vld [vmem:[#allocation17 + $0x8] sm:$0xff]
    %v1955 = vld [vmem:[#allocation17 + $0x10] sm:$0xff]
    %v1956 = vld [vmem:[#allocation17 + $0x18] sm:$0xff]
    %v1957 = vld [vmem:[#allocation19] sm:$0x1]
    %v1959 = vperm.slane %v1957, 0
    %v1962 = vsel %vm277, %v1951, 0
    %v1965 = vsel %vm277, %v1952, 0
    %1967 = vmatpush.msra.mxu0 0.0
    %1968 = vmatpush.msra.mxu0 0.0
    %1969 = vmatpush.msra.mxu0 0.0
    %1970 = vmatpush.msra.mxu0 0.0
    %1971 = vmatpush.msra.mxu0 0.0
    %1972 = vmatpush.msra.mxu0 0.0
    %1973 = vmatpush.msra.mxu0 0.0
    %1974 = vmatpush.msra.mxu0 0.0
    %1975 = vmatpush.msra.mxu0 0.0
    %1976 = vmatpush.msra.mxu0 0.0
    %1977 = vmatpush.msra.mxu0 0.0
    %1978 = vmatpush.msra.mxu0 0.0
    %1979 = vmatpush.msra.mxu0 %v1956
    %1980 = vmatpush.msra.mxu0 %v1955
    %1981 = vmatpush.msra.mxu0 %v1954
    %1982 = vmatpush.msra.mxu0 %v1953
    %1983 = vmatmul.f32.gmra.mxu0 %v1962
    %v1984 = vpop.f32.mrf.mxu0
    %v1985 = vadd.f32 %v1959, %v1984
    %1986 = vmatmul.f32.gmra.mxu0 %v1965
    %v1987 = vpop.f32.mrf.mxu0
    %v1988 = vadd.f32 %v1959, %v1987
    %1989 = vdwg.mxu0
    %1990 = vst [vmem:[#allocation2] sm:$0xff] %v1985
    %1991 = vst [vmem:[#allocation2 + $0x8] sm:$0xff] %v1988
    %v1992 = vld [vmem:[%s11] sm:$0xff]
    %v1993 = vld [vmem:[%s11 + $0x8] sm:$0xff]
    %v1994 = vld [vmem:[%s11 + $0x10] sm:$0xff]
    %v1995 = vld [vmem:[%s11 + $0x18] sm:$0xff]
    %v1996 = vld [vmem:[#allocation2] sm:$0x3]
    %v1997 = vsel %vm277, %v1375, 0
    %1999 = vmatpush.msra.mxu0 0.0
    %2000 = vmatpush.msra.mxu0 0.0
    %2001 = vmatpush.msra.mxu0 0.0
    %2002 = vmatpush.msra.mxu0 0.0
    %2003 = vmatpush.msra.mxu0 0.0
    %2004 = vmatpush.msra.mxu0 0.0
    %2005 = vmatpush.msra.mxu0 0.0
    %2006 = vmatpush.msra.mxu0 0.0
    %2007 = vmatpush.msra.mxu0 0.0
    %2008 = vmatpush.msra.mxu0 0.0
    %2009 = vmatpush.msra.mxu0 0.0
    %2010 = vmatpush.msra.mxu0 0.0
    %2011 = vmatpush.msra.mxu0 %v1995
    %2012 = vmatpush.msra.mxu0 %v1994
    %2013 = vmatpush.msra.mxu0 %v1993
    %2014 = vmatpush.msra.mxu0 %v1992
    %2015 = vmatmul.f32.gmra.mxu0 %v1997
    %v2016 = vpop.f32.mrf.mxu0
    %v2017 = vadd.f32 0.0, %v2016
    %2018 = vdwg.mxu0
    %v2019 = vadd.f32 %v1996, %v2017
    %v2020 = vxor.u32 %v2019, 2147483648
    %v2021 = vmul.f32 %v2020, 1.442695
    %v2022 = vpow.pop %v2021
    %v2023 = vadd.f32 %v2022, 1.0
    %v2024 = vrcp.pop %v2023
    %v2025 = vmul.f32 %v2023, %v2024
    %v2026 = vsub.f32 1.0, %v2025
    %v2027 = vmul.f32 %v2024, %v2026
    %v2028 = vadd.f32 %v2024, %v2027
    %vm2029 = vweird.f32 %v2023
    %vm2030 = vweird.f32 %v2024
    %vm2031 = vmor %vm2029, %vm2030
    %v2032 = vsel %vm2031, %v2024, %v2028
    %v2033 = vand.u32 2147483647, %v2023
    %vm2034 = vcmp.eq.f32.partialorder %v2033, 8.507059e+37
    %v2035 = vand.u32 %v2023, 2147483648
    %v2036 = vor.u32 1.1754944e-38, %v2035
    %v2037 = vsel %vm2034, %v2036, %v2032
    %v2038 = vmul.f32 1.0, %v2037
    %v2039 = vtanh.pop %v2019
    %v2040 = vmul.f32 %v2038, %v1366
    %2042 = vrot.lane.b32.xlu0 %v2039, 64
    %v2043 = vpop.permute.xlu0 %2042
    %v2045 = vmul.f32 %v2038, %v2043
    %2047 = vrot.lane.b32.xlu0 %v2045, 32
    %v2048 = vpop.permute.xlu0 %2047
    %v2050 = vadd.f32 %v2040, %v2048
    %v2051 = vtanh.pop %v2050
    %2053 = vrot.lane.b32.xlu0 %v2051, 64
    %v2054 = vpop.permute.xlu0 %2053
    %v2056 = vmul.f32 %v2038, %v2054
    %v2057 = vld [vmem:[#allocation2 + $0x2] sm:$0x3]
    %2059 = vrot.lane.b32.xlu0 %v2056, 32
    %v2060 = vpop.permute.xlu0 %2059
    %v2061 = vsel %vm277, %v2060, 0
    %2063 = vmatpush.msra.mxu0 0.0
    %2064 = vmatpush.msra.mxu0 0.0
    %2065 = vmatpush.msra.mxu0 0.0
    %2066 = vmatpush.msra.mxu0 0.0
    %2067 = vmatpush.msra.mxu0 0.0
    %2068 = vmatpush.msra.mxu0 0.0
    %2069 = vmatpush.msra.mxu0 0.0
    %2070 = vmatpush.msra.mxu0 0.0
    %2071 = vmatpush.msra.mxu0 0.0
    %2072 = vmatpush.msra.mxu0 0.0
    %2073 = vmatpush.msra.mxu0 0.0
    %2074 = vmatpush.msra.mxu0 0.0
    %2075 = vmatpush.msra.mxu0 %v1995
    %2076 = vmatpush.msra.mxu0 %v1994
    %2077 = vmatpush.msra.mxu0 %v1993
    %2078 = vmatpush.msra.mxu0 %v1992
    %2079 = vmatmul.f32.gmra.mxu0 %v2061
    %v2080 = vpop.f32.mrf.mxu0
    %v2081 = vadd.f32 0.0, %v2080
    %2082 = vdwg.mxu0
    %v2083 = vadd.f32 %v2057, %v2081
    %v2084 = vxor.u32 %v2083, 2147483648
    %v2085 = vmul.f32 %v2084, 1.442695
    %v2086 = vpow.pop %v2085
    %v2087 = vadd.f32 %v2086, 1.0
    %v2088 = vrcp.pop %v2087
    %v2089 = vmul.f32 %v2087, %v2088
    %v2090 = vsub.f32 1.0, %v2089
    %v2091 = vmul.f32 %v2088, %v2090
    %v2092 = vadd.f32 %v2088, %v2091
    %vm2093 = vweird.f32 %v2087
    %vm2094 = vweird.f32 %v2088
    %vm2095 = vmor %vm2093, %vm2094
    %v2096 = vsel %vm2095, %v2088, %v2092
    %v2097 = vand.u32 2147483647, %v2087
    %vm2098 = vcmp.eq.f32.partialorder %v2097, 8.507059e+37
    %v2099 = vand.u32 %v2087, 2147483648
    %v2100 = vor.u32 1.1754944e-38, %v2099
    %v2101 = vsel %vm2098, %v2100, %v2096
    %v2102 = vmul.f32 1.0, %v2101
    %v2103 = vtanh.pop %v2083
    %v2104 = vmul.f32 %v2102, %v2050
    %2106 = vrot.lane.b32.xlu0 %v2103, 64
    %v2107 = vpop.permute.xlu0 %2106
    %v2109 = vmul.f32 %v2102, %v2107
    %2111 = vrot.lane.b32.xlu0 %v2109, 32
    %v2112 = vpop.permute.xlu0 %2111
    %v2114 = vadd.f32 %v2104, %v2112
    %v2115 = vtanh.pop %v2114
    %2117 = vrot.lane.b32.xlu0 %v2115, 64
    %v2118 = vpop.permute.xlu0 %2117
    %v2120 = vmul.f32 %v2102, %v2118
    %v2121 = vld [vmem:[#allocation2 + $0x4] sm:$0x3]
    %2123 = vrot.lane.b32.xlu0 %v2120, 32
    %v2124 = vpop.permute.xlu0 %2123
    %v2125 = vsel %vm277, %v2124, 0
    %2127 = vmatpush.msra.mxu0 0.0
    %2128 = vmatpush.msra.mxu0 0.0
    %2129 = vmatpush.msra.mxu0 0.0
    %2130 = vmatpush.msra.mxu0 0.0
    %2131 = vmatpush.msra.mxu0 0.0
    %2132 = vmatpush.msra.mxu0 0.0
    %2133 = vmatpush.msra.mxu0 0.0
    %2134 = vmatpush.msra.mxu0 0.0
    %2135 = vmatpush.msra.mxu0 0.0
    %2136 = vmatpush.msra.mxu0 0.0
    %2137 = vmatpush.msra.mxu0 0.0
    %2138 = vmatpush.msra.mxu0 0.0
    %2139 = vmatpush.msra.mxu0 %v1995
    %2140 = vmatpush.msra.mxu0 %v1994
    %2141 = vmatpush.msra.mxu0 %v1993
    %2142 = vmatpush.msra.mxu0 %v1992
    %2143 = vmatmul.f32.gmra.mxu0 %v2125
    %v2144 = vpop.f32.mrf.mxu0
    %v2145 = vadd.f32 0.0, %v2144
    %2146 = vdwg.mxu0
    %v2147 = vadd.f32 %v2121, %v2145
    %v2148 = vxor.u32 %v2147, 2147483648
    %v2149 = vmul.f32 %v2148, 1.442695
    %v2150 = vpow.pop %v2149
    %v2151 = vadd.f32 %v2150, 1.0
    %v2152 = vrcp.pop %v2151
    %v2153 = vmul.f32 %v2151, %v2152
    %v2154 = vsub.f32 1.0, %v2153
    %v2155 = vmul.f32 %v2152, %v2154
    %v2156 = vadd.f32 %v2152, %v2155
    %vm2157 = vweird.f32 %v2151
    %vm2158 = vweird.f32 %v2152
    %vm2159 = vmor %vm2157, %vm2158
    %v2160 = vsel %vm2159, %v2152, %v2156
    %v2161 = vand.u32 2147483647, %v2151
    %vm2162 = vcmp.eq.f32.partialorder %v2161, 8.507059e+37
    %v2163 = vand.u32 %v2151, 2147483648
    %v2164 = vor.u32 1.1754944e-38, %v2163
    %v2165 = vsel %vm2162, %v2164, %v2160
    %v2166 = vmul.f32 1.0, %v2165
    %v2167 = vtanh.pop %v2147
    %v2168 = vmul.f32 %v2166, %v2114
    %2170 = vrot.lane.b32.xlu0 %v2167, 64
    %v2171 = vpop.permute.xlu0 %2170
    %v2173 = vmul.f32 %v2166, %v2171
    %2175 = vrot.lane.b32.xlu0 %v2173, 32
    %v2176 = vpop.permute.xlu0 %2175
    %v2178 = vadd.f32 %v2168, %v2176
    %v2179 = vtanh.pop %v2178
    %2181 = vrot.lane.b32.xlu0 %v2179, 64
    %v2182 = vpop.permute.xlu0 %2181
    %v2184 = vmul.f32 %v2166, %v2182
    %v2185 = vld [vmem:[#allocation2 + $0x6] sm:$0x3]
    %2187 = vrot.lane.b32.xlu0 %v2184, 32
    %v2188 = vpop.permute.xlu0 %2187
    %v2189 = vsel %vm277, %v2188, 0
    %2191 = vmatpush.msra.mxu0 0.0
    %2192 = vmatpush.msra.mxu0 0.0
    %2193 = vmatpush.msra.mxu0 0.0
    %2194 = vmatpush.msra.mxu0 0.0
    %2195 = vmatpush.msra.mxu0 0.0
    %2196 = vmatpush.msra.mxu0 0.0
    %2197 = vmatpush.msra.mxu0 0.0
    %2198 = vmatpush.msra.mxu0 0.0
    %2199 = vmatpush.msra.mxu0 0.0
    %2200 = vmatpush.msra.mxu0 0.0
    %2201 = vmatpush.msra.mxu0 0.0
    %2202 = vmatpush.msra.mxu0 0.0
    %2203 = vmatpush.msra.mxu0 %v1995
    %2204 = vmatpush.msra.mxu0 %v1994
    %2205 = vmatpush.msra.mxu0 %v1993
    %2206 = vmatpush.msra.mxu0 %v1992
    %2207 = vmatmul.f32.gmra.mxu0 %v2189
    %v2208 = vpop.f32.mrf.mxu0
    %v2209 = vadd.f32 0.0, %v2208
    %2210 = vdwg.mxu0
    %v2211 = vadd.f32 %v2185, %v2209
    %v2212 = vxor.u32 %v2211, 2147483648
    %v2213 = vmul.f32 %v2212, 1.442695
    %v2214 = vpow.pop %v2213
    %v2215 = vadd.f32 %v2214, 1.0
    %v2216 = vrcp.pop %v2215
    %v2217 = vmul.f32 %v2215, %v2216
    %v2218 = vsub.f32 1.0, %v2217
    %v2219 = vmul.f32 %v2216, %v2218
    %v2220 = vadd.f32 %v2216, %v2219
    %vm2221 = vweird.f32 %v2215
    %vm2222 = vweird.f32 %v2216
    %vm2223 = vmor %vm2221, %vm2222
    %v2224 = vsel %vm2223, %v2216, %v2220
    %v2225 = vand.u32 2147483647, %v2215
    %vm2226 = vcmp.eq.f32.partialorder %v2225, 8.507059e+37
    %v2227 = vand.u32 %v2215, 2147483648
    %v2228 = vor.u32 1.1754944e-38, %v2227
    %v2229 = vsel %vm2226, %v2228, %v2224
    %v2230 = vmul.f32 1.0, %v2229
    %v2231 = vtanh.pop %v2211
    %v2232 = vmul.f32 %v2230, %v2178
    %2234 = vrot.lane.b32.xlu0 %v2231, 64
    %v2235 = vpop.permute.xlu0 %2234
    %v2237 = vmul.f32 %v2230, %v2235
    %2239 = vrot.lane.b32.xlu0 %v2237, 32
    %v2240 = vpop.permute.xlu0 %2239
    %v2242 = vadd.f32 %v2232, %v2240
    %v2243 = vtanh.pop %v2242
    %2245 = vrot.lane.b32.xlu0 %v2243, 64
    %v2246 = vpop.permute.xlu0 %2245
    %v2248 = vmul.f32 %v2230, %v2246
    %v2249 = vld [vmem:[#allocation2 + $0x8] sm:$0x3]
    %2251 = vrot.lane.b32.xlu0 %v2248, 32
    %v2252 = vpop.permute.xlu0 %2251
    %v2253 = vsel %vm277, %v2252, 0
    %2255 = vmatpush.msra.mxu0 0.0
    %2256 = vmatpush.msra.mxu0 0.0
    %2257 = vmatpush.msra.mxu0 0.0
    %2258 = vmatpush.msra.mxu0 0.0
    %2259 = vmatpush.msra.mxu0 0.0
    %2260 = vmatpush.msra.mxu0 0.0
    %2261 = vmatpush.msra.mxu0 0.0
    %2262 = vmatpush.msra.mxu0 0.0
    %2263 = vmatpush.msra.mxu0 0.0
    %2264 = vmatpush.msra.mxu0 0.0
    %2265 = vmatpush.msra.mxu0 0.0
    %2266 = vmatpush.msra.mxu0 0.0
    %2267 = vmatpush.msra.mxu0 %v1995
    %2268 = vmatpush.msra.mxu0 %v1994
    %2269 = vmatpush.msra.mxu0 %v1993
    %2270 = vmatpush.msra.mxu0 %v1992
    %2271 = vmatmul.f32.gmra.mxu0 %v2253
    %v2272 = vpop.f32.mrf.mxu0
    %v2273 = vadd.f32 0.0, %v2272
    %2274 = vdwg.mxu0
    %v2275 = vadd.f32 %v2249, %v2273
    %v2276 = vxor.u32 %v2275, 2147483648
    %v2277 = vmul.f32 %v2276, 1.442695
    %v2278 = vpow.pop %v2277
    %v2279 = vadd.f32 %v2278, 1.0
    %v2280 = vrcp.pop %v2279
    %v2281 = vmul.f32 %v2279, %v2280
    %v2282 = vsub.f32 1.0, %v2281
    %v2283 = vmul.f32 %v2280, %v2282
    %v2284 = vadd.f32 %v2280, %v2283
    %vm2285 = vweird.f32 %v2279
    %vm2286 = vweird.f32 %v2280
    %vm2287 = vmor %vm2285, %vm2286
    %v2288 = vsel %vm2287, %v2280, %v2284
    %v2289 = vand.u32 2147483647, %v2279
    %vm2290 = vcmp.eq.f32.partialorder %v2289, 8.507059e+37
    %v2291 = vand.u32 %v2279, 2147483648
    %v2292 = vor.u32 1.1754944e-38, %v2291
    %v2293 = vsel %vm2290, %v2292, %v2288
    %v2294 = vmul.f32 1.0, %v2293
    %v2295 = vtanh.pop %v2275
    %v2296 = vmul.f32 %v2294, %v2242
    %2298 = vrot.lane.b32.xlu0 %v2295, 64
    %v2299 = vpop.permute.xlu0 %2298
    %v2301 = vmul.f32 %v2294, %v2299
    %2303 = vrot.lane.b32.xlu0 %v2301, 32
    %v2304 = vpop.permute.xlu0 %2303
    %v2306 = vadd.f32 %v2296, %v2304
    %v2307 = vtanh.pop %v2306
    %2309 = vrot.lane.b32.xlu0 %v2307, 64
    %v2310 = vpop.permute.xlu0 %2309
    %v2312 = vmul.f32 %v2294, %v2310
    %v2313 = vld [vmem:[#allocation2 + $0xa] sm:$0x3]
    %2315 = vrot.lane.b32.xlu0 %v2312, 32
    %v2316 = vpop.permute.xlu0 %2315
    %v2317 = vsel %vm277, %v2316, 0
    %2319 = vmatpush.msra.mxu0 0.0
    %2320 = vmatpush.msra.mxu0 0.0
    %2321 = vmatpush.msra.mxu0 0.0
    %2322 = vmatpush.msra.mxu0 0.0
    %2323 = vmatpush.msra.mxu0 0.0
    %2324 = vmatpush.msra.mxu0 0.0
    %2325 = vmatpush.msra.mxu0 0.0
    %2326 = vmatpush.msra.mxu0 0.0
    %2327 = vmatpush.msra.mxu0 0.0
    %2328 = vmatpush.msra.mxu0 0.0
    %2329 = vmatpush.msra.mxu0 0.0
    %2330 = vmatpush.msra.mxu0 0.0
    %2331 = vmatpush.msra.mxu0 %v1995
    %2332 = vmatpush.msra.mxu0 %v1994
    %2333 = vmatpush.msra.mxu0 %v1993
    %2334 = vmatpush.msra.mxu0 %v1992
    %2335 = vmatmul.f32.gmra.mxu0 %v2317
    %v2336 = vpop.f32.mrf.mxu0
    %v2337 = vadd.f32 0.0, %v2336
    %2338 = vdwg.mxu0
    %v2339 = vadd.f32 %v2313, %v2337
    %v2340 = vxor.u32 %v2339, 2147483648
    %v2341 = vmul.f32 %v2340, 1.442695
    %v2342 = vpow.pop %v2341
    %v2343 = vadd.f32 %v2342, 1.0
    %v2344 = vrcp.pop %v2343
    %v2345 = vmul.f32 %v2343, %v2344
    %v2346 = vsub.f32 1.0, %v2345
    %v2347 = vmul.f32 %v2344, %v2346
    %v2348 = vadd.f32 %v2344, %v2347
    %vm2349 = vweird.f32 %v2343
    %vm2350 = vweird.f32 %v2344
    %vm2351 = vmor %vm2349, %vm2350
    %v2352 = vsel %vm2351, %v2344, %v2348
    %v2353 = vand.u32 2147483647, %v2343
    %vm2354 = vcmp.eq.f32.partialorder %v2353, 8.507059e+37
    %v2355 = vand.u32 %v2343, 2147483648
    %v2356 = vor.u32 1.1754944e-38, %v2355
    %v2357 = vsel %vm2354, %v2356, %v2352
    %v2358 = vmul.f32 1.0, %v2357
    %v2359 = vtanh.pop %v2339
    %v2360 = vmul.f32 %v2358, %v2306
    %2362 = vrot.lane.b32.xlu0 %v2359, 64
    %v2363 = vpop.permute.xlu0 %2362
    %v2365 = vmul.f32 %v2358, %v2363
    %2367 = vrot.lane.b32.xlu0 %v2365, 32
    %v2368 = vpop.permute.xlu0 %2367
    %v2370 = vadd.f32 %v2360, %v2368
    %v2371 = vtanh.pop %v2370
    %2373 = vrot.lane.b32.xlu0 %v2371, 64
    %v2374 = vpop.permute.xlu0 %2373
    %v2376 = vmul.f32 %v2358, %v2374
    %v2377 = vld [vmem:[#allocation2 + $0xc] sm:$0x3]
    %2379 = vrot.lane.b32.xlu0 %v2376, 32
    %v2380 = vpop.permute.xlu0 %2379
    %v2381 = vsel %vm277, %v2380, 0
    %2383 = vmatpush.msra.mxu0 0.0
    %2384 = vmatpush.msra.mxu0 0.0
    %2385 = vmatpush.msra.mxu0 0.0
    %2386 = vmatpush.msra.mxu0 0.0
    %2387 = vmatpush.msra.mxu0 0.0
    %2388 = vmatpush.msra.mxu0 0.0
    %2389 = vmatpush.msra.mxu0 0.0
    %2390 = vmatpush.msra.mxu0 0.0
    %2391 = vmatpush.msra.mxu0 0.0
    %2392 = vmatpush.msra.mxu0 0.0
    %2393 = vmatpush.msra.mxu0 0.0
    %2394 = vmatpush.msra.mxu0 0.0
    %2395 = vmatpush.msra.mxu0 %v1995
    %2396 = vmatpush.msra.mxu0 %v1994
    %2397 = vmatpush.msra.mxu0 %v1993
    %2398 = vmatpush.msra.mxu0 %v1992
    %2399 = vmatmul.f32.gmra.mxu0 %v2381
    %v2400 = vpop.f32.mrf.mxu0
    %v2401 = vadd.f32 0.0, %v2400
    %2402 = vdwg.mxu0
    %v2403 = vadd.f32 %v2377, %v2401
    %v2404 = vxor.u32 %v2403, 2147483648
    %v2405 = vmul.f32 %v2404, 1.442695
    %v2406 = vpow.pop %v2405
    %v2407 = vadd.f32 %v2406, 1.0
    %v2408 = vrcp.pop %v2407
    %v2409 = vmul.f32 %v2407, %v2408
    %v2410 = vsub.f32 1.0, %v2409
    %v2411 = vmul.f32 %v2408, %v2410
    %v2412 = vadd.f32 %v2408, %v2411
    %vm2413 = vweird.f32 %v2407
    %vm2414 = vweird.f32 %v2408
    %vm2415 = vmor %vm2413, %vm2414
    %v2416 = vsel %vm2415, %v2408, %v2412
    %v2417 = vand.u32 2147483647, %v2407
    %vm2418 = vcmp.eq.f32.partialorder %v2417, 8.507059e+37
    %v2419 = vand.u32 %v2407, 2147483648
    %v2420 = vor.u32 1.1754944e-38, %v2419
    %v2421 = vsel %vm2418, %v2420, %v2416
    %v2422 = vmul.f32 1.0, %v2421
    %v2423 = vtanh.pop %v2403
    %v2424 = vmul.f32 %v2422, %v2370
    %2426 = vrot.lane.b32.xlu0 %v2423, 64
    %v2427 = vpop.permute.xlu0 %2426
    %v2429 = vmul.f32 %v2422, %v2427
    %2431 = vrot.lane.b32.xlu0 %v2429, 32
    %v2432 = vpop.permute.xlu0 %2431
    %v2434 = vadd.f32 %v2424, %v2432
    %v2435 = vtanh.pop %v2434
    %2437 = vrot.lane.b32.xlu0 %v2435, 64
    %v2438 = vpop.permute.xlu0 %2437
    %v2440 = vmul.f32 %v2422, %v2438
    %v2441 = vld [vmem:[#allocation2 + $0xe] sm:$0x3]
    %2443 = vrot.lane.b32.xlu0 %v2440, 32
    %v2444 = vpop.permute.xlu0 %2443
    %v2445 = vsel %vm277, %v2444, 0
    %2447 = vmatpush.msra.mxu0 0.0
    %2448 = vmatpush.msra.mxu0 0.0
    %2449 = vmatpush.msra.mxu0 0.0
    %2450 = vmatpush.msra.mxu0 0.0
    %2451 = vmatpush.msra.mxu0 0.0
    %2452 = vmatpush.msra.mxu0 0.0
    %2453 = vmatpush.msra.mxu0 0.0
    %2454 = vmatpush.msra.mxu0 0.0
    %2455 = vmatpush.msra.mxu0 0.0
    %2456 = vmatpush.msra.mxu0 0.0
    %2457 = vmatpush.msra.mxu0 0.0
    %2458 = vmatpush.msra.mxu0 0.0
    %2459 = vmatpush.msra.mxu0 %v1995
    %2460 = vmatpush.msra.mxu0 %v1994
    %2461 = vmatpush.msra.mxu0 %v1993
    %2462 = vmatpush.msra.mxu0 %v1992
    %2463 = vmatmul.f32.gmra.mxu0 %v2445
    %v2464 = vpop.f32.mrf.mxu0
    %v2465 = vadd.f32 0.0, %v2464
    %2466 = vdwg.mxu0
    %v2467 = vadd.f32 %v2441, %v2465
    %v2468 = vxor.u32 %v2467, 2147483648
    %v2469 = vmul.f32 %v2468, 1.442695
    %v2470 = vpow.pop %v2469
    %v2471 = vadd.f32 %v2470, 1.0
    %v2472 = vrcp.pop %v2471
    %v2473 = vmul.f32 %v2471, %v2472
    %v2474 = vsub.f32 1.0, %v2473
    %v2475 = vmul.f32 %v2472, %v2474
    %v2476 = vadd.f32 %v2472, %v2475
    %vm2477 = vweird.f32 %v2471
    %vm2478 = vweird.f32 %v2472
    %vm2479 = vmor %vm2477, %vm2478
    %v2480 = vsel %vm2479, %v2472, %v2476
    %v2481 = vand.u32 2147483647, %v2471
    %vm2482 = vcmp.eq.f32.partialorder %v2481, 8.507059e+37
    %v2483 = vand.u32 %v2471, 2147483648
    %v2484 = vor.u32 1.1754944e-38, %v2483
    %v2485 = vsel %vm2482, %v2484, %v2480
    %v2486 = vmul.f32 1.0, %v2485
    %v2487 = vtanh.pop %v2467
    %v2488 = vmul.f32 %v2486, %v2434
    %2490 = vrot.lane.b32.xlu0 %v2487, 64
    %v2491 = vpop.permute.xlu0 %2490
    %v2493 = vmul.f32 %v2486, %v2491
    %2495 = vrot.lane.b32.xlu0 %v2493, 32
    %v2496 = vpop.permute.xlu0 %2495
    %v2498 = vadd.f32 %v2488, %v2496
    %v2499 = vtanh.pop %v2498
    %2501 = vrot.lane.b32.xlu0 %v2499, 64
    %v2502 = vpop.permute.xlu0 %2501
    %v2504 = vmul.f32 %v2486, %v2502
    %v2505 = vld [vmem:[#allocation20] sm:$0xff]
    %v2506 = vld [vmem:[#allocation20 + $0x8] sm:$0xff]
    %v2507 = vld [vmem:[#allocation20 + $0x10] sm:$0xff]
    %v2508 = vld [vmem:[#allocation20 + $0x18] sm:$0xff]
    %v2509 = vld [vmem:[#allocation22] sm:$0x1]
    %v2511 = vperm.slane %v2509, 0
    %2514 = vrot.lane.b32.xlu0 %v2504, 32
    %v2515 = vpop.permute.xlu0 %2514
    %v2516 = vsel %vm277, %v2515, 0
    %2518 = vmatpush.msra.mxu0 0.0
    %2519 = vmatpush.msra.mxu0 0.0
    %2520 = vmatpush.msra.mxu0 0.0
    %2521 = vmatpush.msra.mxu0 0.0
    %2522 = vmatpush.msra.mxu0 0.0
    %2523 = vmatpush.msra.mxu0 0.0
    %2524 = vmatpush.msra.mxu0 0.0
    %2525 = vmatpush.msra.mxu0 0.0
    %2526 = vmatpush.msra.mxu0 0.0
    %2527 = vmatpush.msra.mxu0 0.0
    %2528 = vmatpush.msra.mxu0 0.0
    %2529 = vmatpush.msra.mxu0 0.0
    %2530 = vmatpush.msra.mxu0 %v2508
    %2531 = vmatpush.msra.mxu0 %v2507
    %2532 = vmatpush.msra.mxu0 %v2506
    %2533 = vmatpush.msra.mxu0 %v2505
    %2534 = vmatmul.f32.gmra.mxu0 %v2516
    %v2535 = vpop.f32.mrf.mxu0
    %v2536 = vadd.f32 %v2511, %v2535
    %2537 = vdwg.mxu0
    %v2538 = vmax.f32 %v2536, 0.0
    %v2539 = vld [vmem:[%s15] sm:$0xff]
    %v2540 = vld [vmem:[%s15 + $0x8] sm:$0xff]
    %v2541 = vld [vmem:[%s15 + $0x10] sm:$0xff]
    %v2542 = vld [vmem:[%s15 + $0x18] sm:$0xff]
    %v2543 = vld [vmem:[#allocation23] sm:$0x1]
    %v2545 = vperm.slane %v2543, 0
    %v2548 = vsel %vm277, %v2538, 0
    %2550 = vmatpush.msra.mxu0 0.0
    %2551 = vmatpush.msra.mxu0 0.0
    %2552 = vmatpush.msra.mxu0 0.0
    %2553 = vmatpush.msra.mxu0 0.0
    %2554 = vmatpush.msra.mxu0 0.0
    %2555 = vmatpush.msra.mxu0 0.0
    %2556 = vmatpush.msra.mxu0 0.0
    %2557 = vmatpush.msra.mxu0 0.0
    %2558 = vmatpush.msra.mxu0 0.0
    %2559 = vmatpush.msra.mxu0 0.0
    %2560 = vmatpush.msra.mxu0 0.0
    %2561 = vmatpush.msra.mxu0 0.0
    %2562 = vmatpush.msra.mxu0 %v2542
    %2563 = vmatpush.msra.mxu0 %v2541
    %2564 = vmatpush.msra.mxu0 %v2540
    %2565 = vmatpush.msra.mxu0 %v2539
    %2566 = vmatmul.f32.gmra.mxu0 %v2548
    %v2567 = vpop.f32.mrf.mxu0
    %v2568 = vadd.f32 %v2545, %v2567
    %2569 = vdwg.mxu0
    %vm2570 = vcmask 123904
    %2571 = vst.msk [vmem:[#allocation25] sm:$0x3] %vm2570, %v2568
    // Predicated region
    $region118: #{lstm_model_forward.1} parent=1 // pred_check
      _
    $region119: #{lstm_model_forward.1} parent=1 // pred_check_branch
      %2573 = sbr.rel (0) target = $region121
    $region120: #{lstm_model_forward.1} parent=1 // pred_region
      %2575 = vsyncadd [#allocation7], 0
      %s2577 = sshll.u32 [#allocation25], 4
      %s2578 = int_to_ptr.vmem [resolvable:$true] %s2577
      %s2579 = sshll.u32 %s17, 4
      %s2580 = int_to_ptr.hbm [resolvable:$true] %s2579
      %2582 = dma.vmem_to_hbm [thread:$0]  %s2578, 32, %s2580, [#allocation7]
    $region121: #{lstm_model_forward.1} parent=1 // pred_fallthru
      _
    // Predicated region
    $region122: #{lstm_model_forward.1} parent=1 // pred_check
      _
    $region123: #{lstm_model_forward.1} parent=1 // pred_check_branch
      %2584 = sbr.rel (0) target = $region125
    $region124: #{lstm_model_forward.1} parent=1 // pred_region
      %2586 = dma.done [#allocation7], 32
    $region125: #{lstm_model_forward.1} parent=1 // pred_fallthru
      _
    %2587 = vsyncpa [#allocation6], 1
    %2588 = vsyncpa [#allocation9], 1
    %2589 = vsyncpa [#allocation12], 1
    %2590 = vsyncpa [#allocation15], 1
    %2591 = vsyncpa [#allocation18], 1
    %2592 = vsyncpa [#allocation21], 1
    %2593 = vsyncpa [#allocation24], 1
    %2594 = vsyncpa [#allocation7], 1

</llo_original>
